<compile_context>
chip_gen: v6e
topology: v6e:2x2x1
jax: 0.10.0
libtpu: 0.0.40
codegen_flags: <defaults>
</compile_context>

<pallas_src>
import math
import functools

import jax
import jax.numpy as jnp
from jax.experimental import pallas as pl
from jax.experimental.pallas import tpu as pltpu


NEG_INF = -1e30


def _layernorm(x, g, b, eps=1e-5):
    mu = jnp.mean(x, axis=-1, keepdims=True)
    var = jnp.mean((x - mu) ** 2, axis=-1, keepdims=True)
    return (x - mu) * jax.lax.rsqrt(var + eps) * g + b


# ----------------------------- fused Pallas kernel ---------------------------


def image_gpt_fused_kernel(
    tok_ref, emb_ref, pos_ref,
    ln1g_ref, ln1b_ref, wqkv_ref, bqkv_ref, wo_ref, bo_ref,
    ln2g_ref, ln2b_ref, w1_ref, b1_ref, w2_ref, b2_ref,
    wh_ref, bh_ref,
    o_ref,
    x_scr,
    *, batch_chunk, seq, heads,
):
    """Whole ImageGPT forward; grid=(batch_chunks, L)."""
    l = pl.program_id(1)
    n_layers = pl.num_programs(1)
    BC, S = batch_chunk, seq
    Mc, D = x_scr.shape                      # Mc = BC * S
    hd = D // heads

    @pl.when(l == 0)
    def _embed():
        # Embedding gather as one-hot @ table (MXU); token ids arrive already
        # SOS-shifted.  Positional add is a broadcast add (no concat copy).
        vp = emb_ref.shape[0]
        one_hot = (tok_ref[...] ==
                   jax.lax.broadcasted_iota(jnp.int32, (Mc, vp), 1)
                   ).astype(jnp.bfloat16)                             # (Mc,Vp)
        x0 = jnp.dot(one_hot, emb_ref[...],
                     preferred_element_type=jnp.float32)              # (Mc, D)
        pos = pos_ref[...].astype(jnp.float32)                        # (S, D)
        x_scr[...] = (x0.reshape(BC, S, D) + pos[None]).reshape(Mc, D)

    x = x_scr[...]                                                    # (Mc, D) f32

    # Causal mask regenerated per layer (VPU/iota compare, no resident scratch).
    row = jax.lax.broadcasted_iota(jnp.int32, (S, S), 0)
    col = jax.lax.broadcasted_iota(jnp.int32, (S, S), 1)
    causal = (row >= col)[None]                                       # (1, S, S)

    # ---- causal multi-head self-attention (pre-LN), batched over heads -------
    xn = _layernorm(x, ln1g_ref[0], ln1b_ref[0])
    qkv = jnp.dot(xn.astype(jnp.bfloat16), wqkv_ref[0],
                  preferred_element_type=jnp.float32) + bqkv_ref[0]   # (Mc, 3D)
    # 1/sqrt(hd) is pre-folded into the q columns of w_qkv / b_qkv.
    q, k, v = qkv[:, :D], qkv[:, D:2 * D], qkv[:, 2 * D:]

    def split_heads(t):
        # (Mc, D) -> (BC*heads, S, hd), head-major, via lane slices + leading
        # concat (same data movement as the (b,s,h,d)->(b,h,s,d) transpose).
        t = t.astype(jnp.bfloat16)
        parts = []
        for b in range(BC):
            tb = t[b * S:(b + 1) * S, :]
            for h in range(heads):
                parts.append(tb[:, h * hd:(h + 1) * hd].reshape(1, S, hd))
        return jnp.concatenate(parts, axis=0)

    qh, kh, vh = split_heads(q), split_heads(k), split_heads(v)
    s = jax.lax.dot_general(qh, kh, (((2,), (2,)), ((0,), (0,))),
                            preferred_element_type=jnp.float32)       # (BH,S,S)
    s = jnp.where(causal, s, NEG_INF)
    s = s - jnp.max(s, axis=-1, keepdims=True)
    p = jnp.exp(s)
    p = p * pl.reciprocal(jnp.sum(p, axis=-1, keepdims=True), approx=True)
    pv = jax.lax.dot_general(p.astype(jnp.bfloat16), vh,
                             (((2,), (1,)), ((0,), (0,))),
                             preferred_element_type=jnp.float32)      # (BH,S,hd)

    # Merge heads back along lanes -> (Mc, D), then ONE K=D W_o matmul.
    rows = []
    for b in range(BC):
        rows.append(jnp.concatenate(
            [pv[b * heads + h] for h in range(heads)], axis=-1))      # (S, D)
    attn_in = rows[0] if BC == 1 else jnp.concatenate(rows, axis=0)   # (Mc, D)
    attn = jnp.dot(attn_in.astype(jnp.bfloat16), wo_ref[0],
                   preferred_element_type=jnp.float32)
    x = x + attn + bo_ref[0]

    # ---- MLP (pre-LN, 4x, GELU) ----
    # TODO(synk): reference TransformerBlock source unavailable; GPT-2 style
    # pre-LN block with tanh-approx GELU assumed.
    xn2 = _layernorm(x, ln2g_ref[0], ln2b_ref[0])
    h1 = jnp.dot(xn2.astype(jnp.bfloat16), w1_ref[0],
                 preferred_element_type=jnp.float32) + b1_ref[0]
    h1 = jax.nn.gelu(h1, approximate=True)
    x = x + jnp.dot(h1.astype(jnp.bfloat16), w2_ref[0],
                    preferred_element_type=jnp.float32) + b2_ref[0]

    x_scr[...] = x

    @pl.when(l == n_layers - 1)
    def _head():
        # Lane-dense decoder head: (V, S) tiles (last dim = sequence, not V).
        wh = wh_ref[...]                                              # (V, D) bf16
        bh = bh_ref[...]                                              # (V, 1) f32
        for b in range(BC):
            xb = x[b * S:(b + 1) * S, :].astype(jnp.bfloat16)         # (S, D)
            lt = jax.lax.dot_general(wh, xb, (((1,), (1,)), ((), ())),
                                     preferred_element_type=jnp.float32)  # (V,S)
            o_ref[b] = lt + bh


# ----------------------------- wrapper ---------------------------------------


def image_gpt_forward(tokens, params, model_settings):
    """tokens: int32 [B, H, W] with values in [0, vocabulary_size).
    Returns logits [B, V, H, W] (PyTorch movedim(-1, 1) convention)."""
    V = model_settings["vocabulary_size"]
    heads = model_settings["attention_heads"]
    B, H, W = tokens.shape
    S = H * W
    D = params["embedding"].shape[1]
    L = params["w_qkv"].shape[0]
    assert D % heads == 0
    hd = D // heads

    # Batch chunks: 2 when possible so the leading "parallel" grid axis maps
    # v7x's two TensorCores to half the batch each (sequential on 1-TC chips).
    NBC = 2 if (B % 2 == 0 and B >= 2) else 1
    BC = B // NBC
    Mc = BC * S

    # shift-right with SOS id (== V); the embedding lookup itself is fused
    # into the Pallas kernel as a one-hot matmul.
    flat = tokens.reshape(B, S).astype(jnp.int32)
    shifted = jnp.concatenate([jnp.full((B, 1), V, jnp.int32), flat[:, :-1]],
                              axis=1)
    tok_col = shifted.reshape(B * S, 1)

    # ---- parameter prep (would be done once offline in production) ----------
    # fold 1/sqrt(hd) into the q columns; cast matmul weights / tables to bf16
    # (halves per-layer weight DMA + double-buffer footprint); keep biases and
    # LayerNorm params f32 (added after the f32 accumulation).
    scale_vec = jnp.concatenate(
        [jnp.full((D,), 1.0 / math.sqrt(hd), jnp.float32),
         jnp.ones((2 * D,), jnp.float32)])
    w_qkv = (params["w_qkv"] * scale_vec).astype(jnp.bfloat16)
    b_qkv = params["b_qkv"] * scale_vec
    w_o = params["w_o"].astype(jnp.bfloat16)
    w_mlp1 = params["w_mlp1"].astype(jnp.bfloat16)
    w_mlp2 = params["w_mlp2"].astype(jnp.bfloat16)
    w_head = params["w_head"].astype(jnp.bfloat16)
    pos_emb = params["pos_embedding"].astype(jnp.bfloat16)
    # pad embedding rows to a multiple of 16 (bf16 sublane pack); extra one-hot
    # columns never match a token id, extra rows are zero.
    Vp = ((V + 1 + 15) // 16) * 16
    emb = jnp.zeros((Vp, D), jnp.bfloat16).at[:V + 1].set(
        params["embedding"].astype(jnp.bfloat16))

    kernel = functools.partial(image_gpt_fused_kernel,
                               batch_chunk=BC, seq=S, heads=heads)

    def const(shape):
        nd = len(shape)
        return pl.BlockSpec(shape, lambda bc, l, nd=nd: (0,) * nd)

    def per_layer(shape):  # stacked (L, ...) -> block (1, ...) indexed by layer
        nd = len(shape)
        return pl.BlockSpec((1,) + tuple(shape[1:]),
                            lambda bc, l, nd=nd: (l,) + (0,) * (nd - 1))

    in_specs = [
        pl.BlockSpec((Mc, 1), lambda bc, l: (bc, 0)),   # shifted token ids
        const(emb.shape),                               # (Vp, D) bf16
        const(pos_emb.shape),                           # (S, D)  bf16
        per_layer(params["ln1_g"].shape),
        per_layer(params["ln1_b"].shape),
        per_layer(w_qkv.shape),
        per_layer(b_qkv.shape),
        per_layer(w_o.shape),
        per_layer(params["b_o"].shape),
        per_layer(params["ln2_g"].shape),
        per_layer(params["ln2_b"].shape),
        per_layer(w_mlp1.shape),
        per_layer(params["b_mlp1"].shape),
        per_layer(w_mlp2.shape),
        per_layer(params["b_mlp2"].shape),
        const(w_head.shape),                            # (V, D) bf16
        const(params["b_head"].shape),                  # (V, 1) f32
    ]

    # explicit scoped-VMEM budget: 3x per-layer weight tiles (double buffer +
    # slack) + resident constants + output + activation scratch + headroom.
    def nbytes(a):
        return int(a.size) * a.dtype.itemsize
    stacked = (w_qkv, b_qkv, w_o, params["b_o"],
               params["ln1_g"], params["ln1_b"],
               params["ln2_g"], params["ln2_b"],
               w_mlp1, params["b_mlp1"], w_mlp2, params["b_mlp2"])
    per_layer_bytes = sum(nbytes(a) // L for a in stacked)
    const_bytes = (nbytes(tok_col) + nbytes(emb) + nbytes(pos_emb)
                   + nbytes(w_head) + nbytes(params["b_head"]))
    vmem_limit = max(16 << 20,
                     3 * per_layer_bytes + 2 * (const_bytes + BC * V * S * 4)
                     + Mc * D * 4 + (4 << 20))

    logits = pl.pallas_call(
        kernel,
        out_shape=jax.ShapeDtypeStruct((B, V, S), jnp.float32),
        grid=(NBC, L),
        in_specs=in_specs,
        out_specs=pl.BlockSpec((BC, V, S), lambda bc, l: (bc, 0, 0)),
        scratch_shapes=[
            pltpu.VMEM((Mc, D), jnp.float32),   # resident activations (f32)
        ],
        compiler_params=pltpu.CompilerParams(
            dimension_semantics=("parallel", "arbitrary"),
            vmem_limit_bytes=int(vmem_limit)),
    )(
        tok_col, emb, pos_emb,
        params["ln1_g"], params["ln1_b"], w_qkv, b_qkv, w_o, params["b_o"],
        params["ln2_g"], params["ln2_b"], w_mlp1, params["b_mlp1"],
        w_mlp2, params["b_mlp2"], w_head, params["b_head"],
    )

    # (B, V, S) -> (B, V, H, W)
    return logits.reshape(B, V, H, W)


# ----------------------------- params -----------------------------------------


def init_params(key, model_settings):
    V = model_settings["vocabulary_size"]
    D = model_settings["embedding_dim"]
    S = model_settings["input_shape"][0] * model_settings["input_shape"][1]
    L = model_settings["transformer_layers"]
    std = 0.02
    keys = jax.random.split(key, 7)
    return {
        "embedding": std * jax.random.normal(keys[0], (V + 1, D), jnp.float32),
        "pos_embedding": std * jax.random.normal(keys[1], (S, D), jnp.float32),
        # per-layer weights stacked along a leading L axis
        "ln1_g": jnp.ones((L, 1, D), jnp.float32),
        "ln1_b": jnp.zeros((L, 1, D), jnp.float32),
        "w_qkv": std * jax.random.normal(keys[2], (L, D, 3 * D), jnp.float32),
        "b_qkv": jnp.zeros((L, 1, 3 * D), jnp.float32),
        "w_o": std * jax.random.normal(keys[3], (L, D, D), jnp.float32),
        "b_o": jnp.zeros((L, 1, D), jnp.float32),
        "ln2_g": jnp.ones((L, 1, D), jnp.float32),
        "ln2_b": jnp.zeros((L, 1, D), jnp.float32),
        "w_mlp1": std * jax.random.normal(keys[4], (L, D, 4 * D), jnp.float32),
        "b_mlp1": jnp.zeros((L, 1, 4 * D), jnp.float32),
        "w_mlp2": std * jax.random.normal(keys[5], (L, 4 * D, D), jnp.float32),
        "b_mlp2": jnp.zeros((L, 1, D), jnp.float32),
        # decoder head in nn.Linear layout: weight (V, D), bias as (V, 1)
        "w_head": std * jax.random.normal(keys[6], (V, D), jnp.float32),
        "b_head": jnp.zeros((V, 1), jnp.float32),
    }


# ----------------------------- pure-JAX reference -----------------------------


def _ref_block(x, l, p, heads):
    B, S, D = x.shape
    hd = D // heads
    xn = _layernorm(x, p["ln1_g"][l], p["ln1_b"][l])
    qkv = xn @ p["w_qkv"][l] + p["b_qkv"][l]
    q, k, v = qkv[..., :D], qkv[..., D:2 * D], qkv[..., 2 * D:]
    q = q.reshape(B, S, heads, hd).transpose(0, 2, 1, 3)
    k = k.reshape(B, S, heads, hd).transpose(0, 2, 1, 3)
    v = v.reshape(B, S, heads, hd).transpose(0, 2, 1, 3)
    s = jnp.einsum("bhqd,bhkd->bhqk", q, k) / math.sqrt(hd)
    mask = jnp.tril(jnp.ones((S, S), bool))
    s = jnp.where(mask, s, NEG_INF)
    pa = jax.nn.softmax(s, axis=-1)
    a = jnp.einsum("bhqk,bhkd->bhqd", pa, v).transpose(0, 2, 1, 3).reshape(B, S, D)
    x = x + a @ p["w_o"][l] + p["b_o"][l]
    xn2 = _layernorm(x, p["ln2_g"][l], p["ln2_b"][l])
    h = jax.nn.gelu(xn2 @ p["w_mlp1"][l] + p["b_mlp1"][l], approximate=True)
    return x + h @ p["w_mlp2"][l] + p["b_mlp2"][l]


def image_gpt_reference(tokens, params, model_settings):
    V = model_settings["vocabulary_size"]
    heads = model_settings["attention_heads"]
    B, H, W = tokens.shape
    S = H * W
    D = params["embedding"].shape[1]
    L = params["w_qkv"].shape[0]
    flat = tokens.reshape(B, S)
    emb = jnp.take(params["embedding"], flat, axis=0)
    sos = jnp.broadcast_to(params["embedding"][V], (B, 1, D))
    x = jnp.concatenate([sos, emb[:, :-1, :]], axis=1)
    x = x + params["pos_embedding"][None]
    for l in range(L):
        x = _ref_block(x, l, params, heads)
    logits = x @ params["w_head"].T + params["b_head"][:, 0]
    return jnp.moveaxis(logits.reshape(B, H, W, V), -1, 1)


# ----------------------------- main -------------------------------------------


if __name__ == "__main__":
    model_settings = {
        "transformer_layers": 2,
        "vocabulary_size": 16,
        "embedding_dim": 32,
        "attention_heads": 4,
        "device": "tpu",
        "input_shape": (8, 8),
    }

    key = jax.random.PRNGKey(0)
    pkey, tkey = jax.random.split(key)
    params = init_params(pkey, model_settings)

    B = 2
    H, W = model_settings["input_shape"]
    tokens = jax.random.randint(
        tkey, (B, H, W), 0, model_settings["vocabulary_size"], dtype=jnp.int32)

    fwd = jax.jit(lambda t: image_gpt_forward(t, params, model_settings))
    out = jax.block_until_ready(fwd(tokens))
    assert out.shape == (B, model_settings["vocabulary_size"], H, W), out.shape

    ref = jax.block_until_ready(image_gpt_reference(tokens, params, model_settings))
    # tolerance accounts for bf16 MXU operands (f32 accumulation) and the EUP
    # approximate-reciprocal softmax denominator; exact f32 math otherwise.
    max_err = float(jnp.max(jnp.abs(out - ref)))
    assert jnp.allclose(out, ref, atol=2e-2, rtol=2e-2), max_err

    print("KERNEL_OK")
</pallas_src>

<mosaic_0001>
module attributes {stable_mosaic.version = 11 : i64} {
  func.func @image_gpt_fused_kernel(%arg0: i32, %arg1: i32, %arg2: memref<64x1xi32, #tpu.memory_space<vmem>>, %arg3: memref<32x32xbf16, #tpu.memory_space<vmem>>, %arg4: memref<64x32xbf16, #tpu.memory_space<vmem>>, %arg5: memref<1x1x32xf32, #tpu.memory_space<vmem>>, %arg6: memref<1x1x32xf32, #tpu.memory_space<vmem>>, %arg7: memref<1x32x96xbf16, #tpu.memory_space<vmem>>, %arg8: memref<1x1x96xf32, #tpu.memory_space<vmem>>, %arg9: memref<1x32x32xbf16, #tpu.memory_space<vmem>>, %arg10: memref<1x1x32xf32, #tpu.memory_space<vmem>>, %arg11: memref<1x1x32xf32, #tpu.memory_space<vmem>>, %arg12: memref<1x1x32xf32, #tpu.memory_space<vmem>>, %arg13: memref<1x32x128xbf16, #tpu.memory_space<vmem>>, %arg14: memref<1x1x128xf32, #tpu.memory_space<vmem>>, %arg15: memref<1x128x32xbf16, #tpu.memory_space<vmem>>, %arg16: memref<1x1x32xf32, #tpu.memory_space<vmem>>, %arg17: memref<16x32xbf16, #tpu.memory_space<vmem>>, %arg18: memref<16x1xf32, #tpu.memory_space<vmem>>, %arg19: memref<1x16x64xf32, #tpu.memory_space<vmem>>, %arg20: memref<64x32xf32, #tpu.memory_space<vmem>>) attributes {dimension_semantics = [#tpu.dimension_semantics<parallel>, #tpu.dimension_semantics<arbitrary>], iteration_bounds = array<i64: 2, 2>, scalar_prefetch = 0 : i64, scratch_operands = 1 : i64, tpu.core_type = #tpu.core_type<tc>, window_params = [{transform_indices = @transform_0, window_bounds = array<i64: 64, 1>}, {pipeline_mode = #tpu.pipeline_mode<synchronous>, transform_indices = @transform_1, window_bounds = array<i64: 32, 32>}, {pipeline_mode = #tpu.pipeline_mode<synchronous>, transform_indices = @transform_2, window_bounds = array<i64: 64, 32>}, {transform_indices = @transform_3, window_bounds = array<i64: 1, 1, 32>}, {transform_indices = @transform_4, window_bounds = array<i64: 1, 1, 32>}, {transform_indices = @transform_5, window_bounds = array<i64: 1, 32, 96>}, {transform_indices = @transform_6, window_bounds = array<i64: 1, 1, 96>}, {transform_indices = @transform_7, window_bounds = array<i64: 1, 32, 32>}, {transform_indices = @transform_8, window_bounds = array<i64: 1, 1, 32>}, {transform_indices = @transform_9, window_bounds = array<i64: 1, 1, 32>}, {transform_indices = @transform_10, window_bounds = array<i64: 1, 1, 32>}, {transform_indices = @transform_11, window_bounds = array<i64: 1, 32, 128>}, {transform_indices = @transform_12, window_bounds = array<i64: 1, 1, 128>}, {transform_indices = @transform_13, window_bounds = array<i64: 1, 128, 32>}, {transform_indices = @transform_14, window_bounds = array<i64: 1, 1, 32>}, {pipeline_mode = #tpu.pipeline_mode<synchronous>, transform_indices = @transform_15, window_bounds = array<i64: 16, 32>}, {pipeline_mode = #tpu.pipeline_mode<synchronous>, transform_indices = @transform_16, window_bounds = array<i64: 16, 1>}, {transform_indices = @transform_17, window_bounds = array<i64: 1, 16, 64>}]} {
    %c0_i32 = arith.constant 0 : i32
    %0 = arith.cmpi eq, %arg1, %c0_i32 : i32
    %1 = arith.extui %0 : i1 to i32
    %c0_i32_0 = arith.constant 0 : i32
    %2 = arith.cmpi ne, %1, %c0_i32_0 : i32
    scf.if %2 {
      %c0_63 = arith.constant 0 : index
      %c0_64 = arith.constant 0 : index
      %170 = vector.load %arg2[%c0_63, %c0_64] : memref<64x1xi32, #tpu.memory_space<vmem>>, vector<64x1xi32>
      %171 = tpu.iota {dimensions = array<i32: 1>} : vector<64x32xi32>
      %172 = vector.broadcast %170 : vector<64x1xi32> to vector<64x32xi32>
      %173 = arith.cmpi eq, %172, %171 : vector<64x32xi32>
      %174 = arith.extui %173 : vector<64x32xi1> to vector<64x32xi32>
      %175 = arith.sitofp %174 : vector<64x32xi32> to vector<64x32xf32>
      %176 = arith.truncf %175 : vector<64x32xf32> to vector<64x32xbf16>
      %c0_65 = arith.constant 0 : index
      %c0_66 = arith.constant 0 : index
      %177 = vector.load %arg3[%c0_65, %c0_66] : memref<32x32xbf16, #tpu.memory_space<vmem>>, vector<32x32xbf16>
      %cst_67 = arith.constant dense<0.000000e+00> : vector<64x32xf32>
      %178 = tpu.matmul %176, %177, %cst_67 {dimension_numbers = #tpu.dot_dimension_numbers<[1], [0], [0], [1], [0, 0, 1, 1], [], []>} : vector<64x32xbf16>, vector<32x32xbf16>, vector<64x32xf32> -> vector<64x32xf32>
      %c0_68 = arith.constant 0 : index
      %c0_69 = arith.constant 0 : index
      %179 = vector.load %arg4[%c0_68, %c0_69] : memref<64x32xbf16, #tpu.memory_space<vmem>>, vector<64x32xbf16>
      %180 = arith.extf %179 : vector<64x32xbf16> to vector<64x32xf32>
      %181 = vector.shape_cast %178 : vector<64x32xf32> to vector<1x64x32xf32>
      %182 = vector.shape_cast %180 : vector<64x32xf32> to vector<1x64x32xf32>
      %183 = arith.addf %181, %182 : vector<1x64x32xf32>
      %184 = vector.shape_cast %183 : vector<1x64x32xf32> to vector<64x32xf32>
      %c0_70 = arith.constant 0 : index
      %c0_71 = arith.constant 0 : index
      %185 = vector.load %arg20[%c0_70, %c0_71] : memref<64x32xf32, #tpu.memory_space<vmem>>, vector<64x32xf32>
      tpu.vector_store %arg20[%c0_70, %c0_71], %184 {strides = array<i32>} : memref<64x32xf32, #tpu.memory_space<vmem>>, vector<64x32xf32>,
    } else {
    }
    %c0 = arith.constant 0 : index
    %c0_1 = arith.constant 0 : index
    %3 = vector.load %arg20[%c0, %c0_1] : memref<64x32xf32, #tpu.memory_space<vmem>>, vector<64x32xf32>
    %4 = tpu.iota {dimensions = array<i32: 0>} : vector<64x64xi32>
    %5 = tpu.iota {dimensions = array<i32: 1>} : vector<64x64xi32>
    %6 = arith.cmpi sge, %4, %5 : vector<64x64xi32>
    %7 = vector.shape_cast %6 : vector<64x64xi1> to vector<1x64x64xi1>
    %c0_2 = arith.constant 0 : index
    %c0_3 = arith.constant 0 : index
    %c0_4 = arith.constant 0 : index
    %8 = vector.load %arg5[%c0_2, %c0_3, %c0_4] : memref<1x1x32xf32, #tpu.memory_space<vmem>>, vector<1x1x32xf32>
    %9 = vector.shape_cast %8 : vector<1x1x32xf32> to vector<1x32xf32>
    %c0_5 = arith.constant 0 : index
    %c0_6 = arith.constant 0 : index
    %c0_7 = arith.constant 0 : index
    %10 = vector.load %arg6[%c0_5, %c0_6, %c0_7] : memref<1x1x32xf32, #tpu.memory_space<vmem>>, vector<1x1x32xf32>
    %11 = vector.shape_cast %10 : vector<1x1x32xf32> to vector<1x32xf32>
    %cst = arith.constant dense<0.000000e+00> : vector<64xf32>
    %12 = vector.multi_reduction <add>, %3, %cst [1] : vector<64x32xf32> to vector<64xf32>
    %13 = vector.shape_cast %12 : vector<64xf32> to vector<64x1xf32>
    %cst_8 = arith.constant 3.200000e+01 : f32
    %14 = vector.broadcast %cst_8 : f32 to vector<64x1xf32>
    %15 = arith.divf %13, %14 : vector<64x1xf32>
    %16 = vector.broadcast %15 : vector<64x1xf32> to vector<64x32xf32>
    %17 = arith.subf %3, %16 : vector<64x32xf32>
    %18 = arith.mulf %17, %17 : vector<64x32xf32>
    %cst_9 = arith.constant dense<0.000000e+00> : vector<64xf32>
    %19 = vector.multi_reduction <add>, %18, %cst_9 [1] : vector<64x32xf32> to vector<64xf32>
    %20 = vector.shape_cast %19 : vector<64xf32> to vector<64x1xf32>
    %cst_10 = arith.constant 3.200000e+01 : f32
    %21 = vector.broadcast %cst_10 : f32 to vector<64x1xf32>
    %22 = arith.divf %20, %21 : vector<64x1xf32>
    %23 = vector.broadcast %15 : vector<64x1xf32> to vector<64x32xf32>
    %24 = arith.subf %3, %23 : vector<64x32xf32>
    %cst_11 = arith.constant 9.99999974E-6 : f32
    %25 = vector.broadcast %cst_11 : f32 to vector<64x1xf32>
    %26 = arith.addf %22, %25 : vector<64x1xf32>
    %27 = math.rsqrt %26 : vector<64x1xf32>
    %28 = vector.broadcast %27 : vector<64x1xf32> to vector<64x32xf32>
    %29 = arith.mulf %24, %28 : vector<64x32xf32>
    %30 = vector.broadcast %9 : vector<1x32xf32> to vector<64x32xf32>
    %31 = arith.mulf %29, %30 : vector<64x32xf32>
    %32 = vector.broadcast %11 : vector<1x32xf32> to vector<64x32xf32>
    %33 = arith.addf %31, %32 : vector<64x32xf32>
    %34 = arith.truncf %33 : vector<64x32xf32> to vector<64x32xbf16>
    %c0_12 = arith.constant 0 : index
    %c0_13 = arith.constant 0 : index
    %c0_14 = arith.constant 0 : index
    %35 = vector.load %arg7[%c0_12, %c0_13, %c0_14] : memref<1x32x96xbf16, #tpu.memory_space<vmem>>, vector<1x32x96xbf16>
    %36 = vector.shape_cast %35 : vector<1x32x96xbf16> to vector<32x96xbf16>
    %cst_15 = arith.constant dense<0.000000e+00> : vector<64x96xf32>
    %37 = tpu.matmul %34, %36, %cst_15 {dimension_numbers = #tpu.dot_dimension_numbers<[1], [0], [0], [1], [0, 0, 1, 1], [], []>} : vector<64x32xbf16>, vector<32x96xbf16>, vector<64x96xf32> -> vector<64x96xf32>
    %c0_16 = arith.constant 0 : index
    %c0_17 = arith.constant 0 : index
    %c0_18 = arith.constant 0 : index
    %38 = vector.load %arg8[%c0_16, %c0_17, %c0_18] : memref<1x1x96xf32, #tpu.memory_space<vmem>>, vector<1x1x96xf32>
    %39 = vector.shape_cast %38 : vector<1x1x96xf32> to vector<1x96xf32>
    %40 = vector.broadcast %39 : vector<1x96xf32> to vector<64x96xf32>
    %41 = arith.addf %37, %40 : vector<64x96xf32>
    %42 = vector.extract_strided_slice %41 {offsets = [0, 0], sizes = [64, 32], strides = [1, 1]} : vector<64x96xf32> to vector<64x32xf32>
    %43 = vector.extract_strided_slice %41 {offsets = [0, 32], sizes = [64, 32], strides = [1, 1]} : vector<64x96xf32> to vector<64x32xf32>
    %44 = vector.extract_strided_slice %41 {offsets = [0, 64], sizes = [64, 32], strides = [1, 1]} : vector<64x96xf32> to vector<64x32xf32>
    %45 = arith.truncf %42 : vector<64x32xf32> to vector<64x32xbf16>
    %46 = vector.extract_strided_slice %45 {offsets = [0, 0], sizes = [64, 8], strides = [1, 1]} : vector<64x32xbf16> to vector<64x8xbf16>
    %47 = vector.shape_cast %46 : vector<64x8xbf16> to vector<1x64x8xbf16>
    %48 = vector.extract_strided_slice %45 {offsets = [0, 8], sizes = [64, 8], strides = [1, 1]} : vector<64x32xbf16> to vector<64x8xbf16>
    %49 = vector.shape_cast %48 : vector<64x8xbf16> to vector<1x64x8xbf16>
    %50 = vector.extract_strided_slice %45 {offsets = [0, 16], sizes = [64, 8], strides = [1, 1]} : vector<64x32xbf16> to vector<64x8xbf16>
    %51 = vector.shape_cast %50 : vector<64x8xbf16> to vector<1x64x8xbf16>
    %52 = vector.extract_strided_slice %45 {offsets = [0, 24], sizes = [64, 8], strides = [1, 1]} : vector<64x32xbf16> to vector<64x8xbf16>
    %53 = vector.shape_cast %52 : vector<64x8xbf16> to vector<1x64x8xbf16>
    %54 = tpu.concatenate %47, %49, %51, %53 in 0 : vector<1x64x8xbf16>, vector<1x64x8xbf16>, vector<1x64x8xbf16>, vector<1x64x8xbf16> -> vector<4x64x8xbf16>
    %55 = arith.truncf %43 : vector<64x32xf32> to vector<64x32xbf16>
    %56 = vector.extract_strided_slice %55 {offsets = [0, 0], sizes = [64, 8], strides = [1, 1]} : vector<64x32xbf16> to vector<64x8xbf16>
    %57 = vector.shape_cast %56 : vector<64x8xbf16> to vector<1x64x8xbf16>
    %58 = vector.extract_strided_slice %55 {offsets = [0, 8], sizes = [64, 8], strides = [1, 1]} : vector<64x32xbf16> to vector<64x8xbf16>
    %59 = vector.shape_cast %58 : vector<64x8xbf16> to vector<1x64x8xbf16>
    %60 = vector.extract_strided_slice %55 {offsets = [0, 16], sizes = [64, 8], strides = [1, 1]} : vector<64x32xbf16> to vector<64x8xbf16>
    %61 = vector.shape_cast %60 : vector<64x8xbf16> to vector<1x64x8xbf16>
    %62 = vector.extract_strided_slice %55 {offsets = [0, 24], sizes = [64, 8], strides = [1, 1]} : vector<64x32xbf16> to vector<64x8xbf16>
    %63 = vector.shape_cast %62 : vector<64x8xbf16> to vector<1x64x8xbf16>
    %64 = tpu.concatenate %57, %59, %61, %63 in 0 : vector<1x64x8xbf16>, vector<1x64x8xbf16>, vector<1x64x8xbf16>, vector<1x64x8xbf16> -> vector<4x64x8xbf16>
    %65 = arith.truncf %44 : vector<64x32xf32> to vector<64x32xbf16>
    %66 = vector.extract_strided_slice %65 {offsets = [0, 0], sizes = [64, 8], strides = [1, 1]} : vector<64x32xbf16> to vector<64x8xbf16>
    %67 = vector.shape_cast %66 : vector<64x8xbf16> to vector<1x64x8xbf16>
    %68 = vector.extract_strided_slice %65 {offsets = [0, 8], sizes = [64, 8], strides = [1, 1]} : vector<64x32xbf16> to vector<64x8xbf16>
    %69 = vector.shape_cast %68 : vector<64x8xbf16> to vector<1x64x8xbf16>
    %70 = vector.extract_strided_slice %65 {offsets = [0, 16], sizes = [64, 8], strides = [1, 1]} : vector<64x32xbf16> to vector<64x8xbf16>
    %71 = vector.shape_cast %70 : vector<64x8xbf16> to vector<1x64x8xbf16>
    %72 = vector.extract_strided_slice %65 {offsets = [0, 24], sizes = [64, 8], strides = [1, 1]} : vector<64x32xbf16> to vector<64x8xbf16>
    %73 = vector.shape_cast %72 : vector<64x8xbf16> to vector<1x64x8xbf16>
    %74 = tpu.concatenate %67, %69, %71, %73 in 0 : vector<1x64x8xbf16>, vector<1x64x8xbf16>, vector<1x64x8xbf16>, vector<1x64x8xbf16> -> vector<4x64x8xbf16>
    %cst_19 = arith.constant dense<0.000000e+00> : vector<4x64x64xf32>
    %75 = tpu.matmul %54, %64, %cst_19 {dimension_numbers = #tpu.dot_dimension_numbers<[2], [2], [1], [1], [0, 0, 0, 1, 1, 1], [0], [0]>} : vector<4x64x8xbf16>, vector<4x64x8xbf16>, vector<4x64x64xf32> -> vector<4x64x64xf32>
    %cst_20 = arith.constant -1.000000e+30 : f32
    %76 = vector.shape_cast %7 : vector<1x64x64xi1> to vector<1x64x64xi1>
    %77 = vector.broadcast %76 : vector<1x64x64xi1> to vector<4x64x64xi1>
    %78 = vector.broadcast %cst_20 : f32 to vector<4x64x64xf32>
    %79 = arith.select %77, %75, %78 : vector<4x64x64xi1>, vector<4x64x64xf32>
    %cst_21 = arith.constant dense<0xFF800000> : vector<4x64xf32>
    %80 = vector.multi_reduction <maximumf>, %79, %cst_21 [2] : vector<4x64x64xf32> to vector<4x64xf32>
    %81 = vector.shape_cast %80 : vector<4x64xf32> to vector<4x64x1xf32>
    %82 = vector.broadcast %81 : vector<4x64x1xf32> to vector<4x64x64xf32>
    %83 = arith.subf %79, %82 : vector<4x64x64xf32>
    %84 = math.exp %83 : vector<4x64x64xf32>
    %cst_22 = arith.constant dense<0.000000e+00> : vector<4x64xf32>
    %85 = vector.multi_reduction <add>, %84, %cst_22 [2] : vector<4x64x64xf32> to vector<4x64xf32>
    %86 = vector.shape_cast %85 : vector<4x64xf32> to vector<4x64x1xf32>
    %87 = tpu.reciprocal %86 {approx = true} : vector<4x64x1xf32> -> vector<4x64x1xf32>
    %88 = vector.broadcast %87 : vector<4x64x1xf32> to vector<4x64x64xf32>
    %89 = arith.mulf %84, %88 : vector<4x64x64xf32>
    %90 = arith.truncf %89 : vector<4x64x64xf32> to vector<4x64x64xbf16>
    %cst_23 = arith.constant dense<0.000000e+00> : vector<4x64x8xf32>
    %91 = tpu.matmul %90, %74, %cst_23 {dimension_numbers = #tpu.dot_dimension_numbers<[2], [1], [1], [2], [0, 0, 0, 1, 1, 2], [0], [0]>} : vector<4x64x64xbf16>, vector<4x64x8xbf16>, vector<4x64x8xf32> -> vector<4x64x8xf32>
    %92 = vector.extract_strided_slice %91 {offsets = [0, 0, 0], sizes = [1, 64, 8], strides = [1, 1, 1]} : vector<4x64x8xf32> to vector<1x64x8xf32>
    %93 = vector.shape_cast %92 : vector<1x64x8xf32> to vector<64x8xf32>
    %94 = vector.extract_strided_slice %91 {offsets = [1, 0, 0], sizes = [1, 64, 8], strides = [1, 1, 1]} : vector<4x64x8xf32> to vector<1x64x8xf32>
    %95 = vector.shape_cast %94 : vector<1x64x8xf32> to vector<64x8xf32>
    %96 = vector.extract_strided_slice %91 {offsets = [2, 0, 0], sizes = [1, 64, 8], strides = [1, 1, 1]} : vector<4x64x8xf32> to vector<1x64x8xf32>
    %97 = vector.shape_cast %96 : vector<1x64x8xf32> to vector<64x8xf32>
    %98 = vector.extract_strided_slice %91 {offsets = [3, 0, 0], sizes = [1, 64, 8], strides = [1, 1, 1]} : vector<4x64x8xf32> to vector<1x64x8xf32>
    %99 = vector.shape_cast %98 : vector<1x64x8xf32> to vector<64x8xf32>
    %100 = tpu.concatenate %93, %95, %97, %99 in 1 : vector<64x8xf32>, vector<64x8xf32>, vector<64x8xf32>, vector<64x8xf32> -> vector<64x32xf32>
    %101 = arith.truncf %100 : vector<64x32xf32> to vector<64x32xbf16>
    %c0_24 = arith.constant 0 : index
    %c0_25 = arith.constant 0 : index
    %c0_26 = arith.constant 0 : index
    %102 = vector.load %arg9[%c0_24, %c0_25, %c0_26] : memref<1x32x32xbf16, #tpu.memory_space<vmem>>, vector<1x32x32xbf16>
    %103 = vector.shape_cast %102 : vector<1x32x32xbf16> to vector<32x32xbf16>
    %cst_27 = arith.constant dense<0.000000e+00> : vector<64x32xf32>
    %104 = tpu.matmul %101, %103, %cst_27 {dimension_numbers = #tpu.dot_dimension_numbers<[1], [0], [0], [1], [0, 0, 1, 1], [], []>} : vector<64x32xbf16>, vector<32x32xbf16>, vector<64x32xf32> -> vector<64x32xf32>
    %105 = arith.addf %3, %104 : vector<64x32xf32>
    %c0_28 = arith.constant 0 : index
    %c0_29 = arith.constant 0 : index
    %c0_30 = arith.constant 0 : index
    %106 = vector.load %arg10[%c0_28, %c0_29, %c0_30] : memref<1x1x32xf32, #tpu.memory_space<vmem>>, vector<1x1x32xf32>
    %107 = vector.shape_cast %106 : vector<1x1x32xf32> to vector<1x32xf32>
    %108 = vector.broadcast %107 : vector<1x32xf32> to vector<64x32xf32>
    %109 = arith.addf %105, %108 : vector<64x32xf32>
    %c0_31 = arith.constant 0 : index
    %c0_32 = arith.constant 0 : index
    %c0_33 = arith.constant 0 : index
    %110 = vector.load %arg11[%c0_31, %c0_32, %c0_33] : memref<1x1x32xf32, #tpu.memory_space<vmem>>, vector<1x1x32xf32>
    %111 = vector.shape_cast %110 : vector<1x1x32xf32> to vector<1x32xf32>
    %c0_34 = arith.constant 0 : index
    %c0_35 = arith.constant 0 : index
    %c0_36 = arith.constant 0 : index
    %112 = vector.load %arg12[%c0_34, %c0_35, %c0_36] : memref<1x1x32xf32, #tpu.memory_space<vmem>>, vector<1x1x32xf32>
    %113 = vector.shape_cast %112 : vector<1x1x32xf32> to vector<1x32xf32>
    %cst_37 = arith.constant dense<0.000000e+00> : vector<64xf32>
    %114 = vector.multi_reduction <add>, %109, %cst_37 [1] : vector<64x32xf32> to vector<64xf32>
    %115 = vector.shape_cast %114 : vector<64xf32> to vector<64x1xf32>
    %cst_38 = arith.constant 3.200000e+01 : f32
    %116 = vector.broadcast %cst_38 : f32 to vector<64x1xf32>
    %117 = arith.divf %115, %116 : vector<64x1xf32>
    %118 = vector.broadcast %117 : vector<64x1xf32> to vector<64x32xf32>
    %119 = arith.subf %109, %118 : vector<64x32xf32>
    %120 = arith.mulf %119, %119 : vector<64x32xf32>
    %cst_39 = arith.constant dense<0.000000e+00> : vector<64xf32>
    %121 = vector.multi_reduction <add>, %120, %cst_39 [1] : vector<64x32xf32> to vector<64xf32>
    %122 = vector.shape_cast %121 : vector<64xf32> to vector<64x1xf32>
    %cst_40 = arith.constant 3.200000e+01 : f32
    %123 = vector.broadcast %cst_40 : f32 to vector<64x1xf32>
    %124 = arith.divf %122, %123 : vector<64x1xf32>
    %125 = vector.broadcast %117 : vector<64x1xf32> to vector<64x32xf32>
    %126 = arith.subf %109, %125 : vector<64x32xf32>
    %cst_41 = arith.constant 9.99999974E-6 : f32
    %127 = vector.broadcast %cst_41 : f32 to vector<64x1xf32>
    %128 = arith.addf %124, %127 : vector<64x1xf32>
    %129 = math.rsqrt %128 : vector<64x1xf32>
    %130 = vector.broadcast %129 : vector<64x1xf32> to vector<64x32xf32>
    %131 = arith.mulf %126, %130 : vector<64x32xf32>
    %132 = vector.broadcast %111 : vector<1x32xf32> to vector<64x32xf32>
    %133 = arith.mulf %131, %132 : vector<64x32xf32>
    %134 = vector.broadcast %113 : vector<1x32xf32> to vector<64x32xf32>
    %135 = arith.addf %133, %134 : vector<64x32xf32>
    %136 = arith.truncf %135 : vector<64x32xf32> to vector<64x32xbf16>
    %c0_42 = arith.constant 0 : index
    %c0_43 = arith.constant 0 : index
    %c0_44 = arith.constant 0 : index
    %137 = vector.load %arg13[%c0_42, %c0_43, %c0_44] : memref<1x32x128xbf16, #tpu.memory_space<vmem>>, vector<1x32x128xbf16>
    %138 = vector.shape_cast %137 : vector<1x32x128xbf16> to vector<32x128xbf16>
    %cst_45 = arith.constant dense<0.000000e+00> : vector<64x128xf32>
    %139 = tpu.matmul %136, %138, %cst_45 {dimension_numbers = #tpu.dot_dimension_numbers<[1], [0], [0], [1], [0, 0, 1, 1], [], []>} : vector<64x32xbf16>, vector<32x128xbf16>, vector<64x128xf32> -> vector<64x128xf32>
    %c0_46 = arith.constant 0 : index
    %c0_47 = arith.constant 0 : index
    %c0_48 = arith.constant 0 : index
    %140 = vector.load %arg14[%c0_46, %c0_47, %c0_48] : memref<1x1x128xf32, #tpu.memory_space<vmem>>, vector<1x1x128xf32>
    %141 = vector.shape_cast %140 : vector<1x1x128xf32> to vector<1x128xf32>
    %142 = vector.broadcast %141 : vector<1x128xf32> to vector<64x128xf32>
    %143 = arith.addf %139, %142 : vector<64x128xf32>
    %144 = arith.mulf %143, %143 : vector<64x128xf32>
    %145 = arith.mulf %143, %144 : vector<64x128xf32>
    %cst_49 = arith.constant 4.471500e-02 : f32
    %146 = vector.broadcast %cst_49 : f32 to vector<64x128xf32>
    %147 = arith.mulf %146, %145 : vector<64x128xf32>
    %148 = arith.addf %143, %147 : vector<64x128xf32>
    %cst_50 = arith.constant 0.797884583 : f32
    %149 = vector.broadcast %cst_50 : f32 to vector<64x128xf32>
    %150 = arith.mulf %149, %148 : vector<64x128xf32>
    %151 = math.tanh %150 : vector<64x128xf32>
    %cst_51 = arith.constant 1.000000e+00 : f32
    %152 = vector.broadcast %cst_51 : f32 to vector<64x128xf32>
    %153 = arith.addf %152, %151 : vector<64x128xf32>
    %cst_52 = arith.constant 5.000000e-01 : f32
    %154 = vector.broadcast %cst_52 : f32 to vector<64x128xf32>
    %155 = arith.mulf %154, %153 : vector<64x128xf32>
    %156 = arith.mulf %143, %155 : vector<64x128xf32>
    %157 = arith.truncf %156 : vector<64x128xf32> to vector<64x128xbf16>
    %c0_53 = arith.constant 0 : index
    %c0_54 = arith.constant 0 : index
    %c0_55 = arith.constant 0 : index
    %158 = vector.load %arg15[%c0_53, %c0_54, %c0_55] : memref<1x128x32xbf16, #tpu.memory_space<vmem>>, vector<1x128x32xbf16>
    %159 = vector.shape_cast %158 : vector<1x128x32xbf16> to vector<128x32xbf16>
    %cst_56 = arith.constant dense<0.000000e+00> : vector<64x32xf32>
    %160 = tpu.matmul %157, %159, %cst_56 {dimension_numbers = #tpu.dot_dimension_numbers<[1], [0], [0], [1], [0, 0, 1, 1], [], []>} : vector<64x128xbf16>, vector<128x32xbf16>, vector<64x32xf32> -> vector<64x32xf32>
    %161 = arith.addf %109, %160 : vector<64x32xf32>
    %c0_57 = arith.constant 0 : index
    %c0_58 = arith.constant 0 : index
    %c0_59 = arith.constant 0 : index
    %162 = vector.load %arg16[%c0_57, %c0_58, %c0_59] : memref<1x1x32xf32, #tpu.memory_space<vmem>>, vector<1x1x32xf32>
    %163 = vector.shape_cast %162 : vector<1x1x32xf32> to vector<1x32xf32>
    %164 = vector.broadcast %163 : vector<1x32xf32> to vector<64x32xf32>
    %165 = arith.addf %161, %164 : vector<64x32xf32>
    %c0_60 = arith.constant 0 : index
    %c0_61 = arith.constant 0 : index
    %166 = vector.load %arg20[%c0_60, %c0_61] : memref<64x32xf32, #tpu.memory_space<vmem>>, vector<64x32xf32>
    tpu.vector_store %arg20[%c0_60, %c0_61], %165 {strides = array<i32>} : memref<64x32xf32, #tpu.memory_space<vmem>>, vector<64x32xf32>,
    %c1_i32 = arith.constant 1 : i32
    %167 = arith.cmpi eq, %arg1, %c1_i32 : i32
    %168 = arith.extui %167 : i1 to i32
    %c0_i32_62 = arith.constant 0 : i32
    %169 = arith.cmpi ne, %168, %c0_i32_62 : i32
    scf.if %169 {
      %c0_63 = arith.constant 0 : index
      %c0_64 = arith.constant 0 : index
      %170 = vector.load %arg17[%c0_63, %c0_64] : memref<16x32xbf16, #tpu.memory_space<vmem>>, vector<16x32xbf16>
      %c0_65 = arith.constant 0 : index
      %c0_66 = arith.constant 0 : index
      %171 = vector.load %arg18[%c0_65, %c0_66] : memref<16x1xf32, #tpu.memory_space<vmem>>, vector<16x1xf32>
      %172 = arith.truncf %165 : vector<64x32xf32> to vector<64x32xbf16>
      %cst_67 = arith.constant dense<0.000000e+00> : vector<16x64xf32>
      %173 = tpu.matmul %170, %172, %cst_67 {dimension_numbers = #tpu.dot_dimension_numbers<[1], [1], [0], [0], [0, 0, 1, 0], [], []>} : vector<16x32xbf16>, vector<64x32xbf16>, vector<16x64xf32> -> vector<16x64xf32>
      %174 = vector.broadcast %171 : vector<16x1xf32> to vector<16x64xf32>
      %175 = arith.addf %173, %174 : vector<16x64xf32>
      %c0_68 = arith.constant 0 : index
      %c0_69 = arith.constant 0 : index
      %c0_70 = arith.constant 0 : index
      %176 = vector.load %arg19[%c0_68, %c0_69, %c0_70] : memref<1x16x64xf32, #tpu.memory_space<vmem>>, vector<1x16x64xf32>
      %177 = vector.shape_cast %176 : vector<1x16x64xf32> to vector<16x64xf32>
      %178 = vector.shape_cast %175 : vector<16x64xf32> to vector<1x16x64xf32>
      tpu.vector_store %arg19[%c0_68, %c0_69, %c0_70], %178 {strides = array<i32>} : memref<1x16x64xf32, #tpu.memory_space<vmem>>, vector<1x16x64xf32>,
    } else {
    }
    return
  }
  func.func @transform_0(%arg0: i32, %arg1: i32) -> (i32, i32) {
    %c0_i32 = arith.constant 0 : i32
    %c0_i32_0 = arith.constant 0 : i32
    return %arg0, %c0_i32 : i32, i32
  }
  func.func @transform_1(%arg0: i32, %arg1: i32) -> (i32, i32) {
    %c0_i32 = arith.constant 0 : i32
    %c0_i32_0 = arith.constant 0 : i32
    %c0_i32_1 = arith.constant 0 : i32
    return %c0_i32, %c0_i32_0 : i32, i32
  }
  func.func @transform_2(%arg0: i32, %arg1: i32) -> (i32, i32) {
    %c0_i32 = arith.constant 0 : i32
    %c0_i32_0 = arith.constant 0 : i32
    %c0_i32_1 = arith.constant 0 : i32
    return %c0_i32, %c0_i32_0 : i32, i32
  }
  func.func @transform_3(%arg0: i32, %arg1: i32) -> (i32, i32, i32) {
    %c0_i32 = arith.constant 0 : i32
    %c0_i32_0 = arith.constant 0 : i32
    %c0_i32_1 = arith.constant 0 : i32
    return %arg1, %c0_i32, %c0_i32_0 : i32, i32, i32
  }
  func.func @transform_4(%arg0: i32, %arg1: i32) -> (i32, i32, i32) {
    %c0_i32 = arith.constant 0 : i32
    %c0_i32_0 = arith.constant 0 : i32
    %c0_i32_1 = arith.constant 0 : i32
    return %arg1, %c0_i32, %c0_i32_0 : i32, i32, i32
  }
  func.func @transform_5(%arg0: i32, %arg1: i32) -> (i32, i32, i32) {
    %c0_i32 = arith.constant 0 : i32
    %c0_i32_0 = arith.constant 0 : i32
    %c0_i32_1 = arith.constant 0 : i32
    return %arg1, %c0_i32, %c0_i32_0 : i32, i32, i32
  }
  func.func @transform_6(%arg0: i32, %arg1: i32) -> (i32, i32, i32) {
    %c0_i32 = arith.constant 0 : i32
    %c0_i32_0 = arith.constant 0 : i32
    %c0_i32_1 = arith.constant 0 : i32
    return %arg1, %c0_i32, %c0_i32_0 : i32, i32, i32
  }
  func.func @transform_7(%arg0: i32, %arg1: i32) -> (i32, i32, i32) {
    %c0_i32 = arith.constant 0 : i32
    %c0_i32_0 = arith.constant 0 : i32
    %c0_i32_1 = arith.constant 0 : i32
    return %arg1, %c0_i32, %c0_i32_0 : i32, i32, i32
  }
  func.func @transform_8(%arg0: i32, %arg1: i32) -> (i32, i32, i32) {
    %c0_i32 = arith.constant 0 : i32
    %c0_i32_0 = arith.constant 0 : i32
    %c0_i32_1 = arith.constant 0 : i32
    return %arg1, %c0_i32, %c0_i32_0 : i32, i32, i32
  }
  func.func @transform_9(%arg0: i32, %arg1: i32) -> (i32, i32, i32) {
    %c0_i32 = arith.constant 0 : i32
    %c0_i32_0 = arith.constant 0 : i32
    %c0_i32_1 = arith.constant 0 : i32
    return %arg1, %c0_i32, %c0_i32_0 : i32, i32, i32
  }
  func.func @transform_10(%arg0: i32, %arg1: i32) -> (i32, i32, i32) {
    %c0_i32 = arith.constant 0 : i32
    %c0_i32_0 = arith.constant 0 : i32
    %c0_i32_1 = arith.constant 0 : i32
    return %arg1, %c0_i32, %c0_i32_0 : i32, i32, i32
  }
  func.func @transform_11(%arg0: i32, %arg1: i32) -> (i32, i32, i32) {
    %c0_i32 = arith.constant 0 : i32
    %c0_i32_0 = arith.constant 0 : i32
    %c0_i32_1 = arith.constant 0 : i32
    return %arg1, %c0_i32, %c0_i32_0 : i32, i32, i32
  }
  func.func @transform_12(%arg0: i32, %arg1: i32) -> (i32, i32, i32) {
    %c0_i32 = arith.constant 0 : i32
    %c0_i32_0 = arith.constant 0 : i32
    %c0_i32_1 = arith.constant 0 : i32
    return %arg1, %c0_i32, %c0_i32_0 : i32, i32, i32
  }
  func.func @transform_13(%arg0: i32, %arg1: i32) -> (i32, i32, i32) {
    %c0_i32 = arith.constant 0 : i32
    %c0_i32_0 = arith.constant 0 : i32
    %c0_i32_1 = arith.constant 0 : i32
    return %arg1, %c0_i32, %c0_i32_0 : i32, i32, i32
  }
  func.func @transform_14(%arg0: i32, %arg1: i32) -> (i32, i32, i32) {
    %c0_i32 = arith.constant 0 : i32
    %c0_i32_0 = arith.constant 0 : i32
    %c0_i32_1 = arith.constant 0 : i32
    return %arg1, %c0_i32, %c0_i32_0 : i32, i32, i32
  }
  func.func @transform_15(%arg0: i32, %arg1: i32) -> (i32, i32) {
    %c0_i32 = arith.constant 0 : i32
    %c0_i32_0 = arith.constant 0 : i32
    %c0_i32_1 = arith.constant 0 : i32
    return %c0_i32, %c0_i32_0 : i32, i32
  }
  func.func @transform_16(%arg0: i32, %arg1: i32) -> (i32, i32) {
    %c0_i32 = arith.constant 0 : i32
    %c0_i32_0 = arith.constant 0 : i32
    %c0_i32_1 = arith.constant 0 : i32
    return %c0_i32, %c0_i32_0 : i32, i32
  }
  func.func @transform_17(%arg0: i32, %arg1: i32) -> (i32, i32, i32) {
    %c0_i32 = arith.constant 0 : i32
    %c0_i32_0 = arith.constant 0 : i32
    %c0_i32_1 = arith.constant 0 : i32
    return %arg0, %c0_i32, %c0_i32_0 : i32, i32, i32
  }
}

</mosaic_0001>

<llo_original>
// kernel: _lambda_.1
$region0: #{_lambda_.1}
  #allocation0 [shape = 'u32[]', space=smem, size = 0x4, offset = 0x4, fixed_abs, tag = 'smem constant byte address 0x4 - core index']
  #allocation1 [shape = 'u32[144,128]{1,0:T(1,128)}', space=vmem, size = 0x12000, scoped, tag = 'internal scratch']
  #allocation2 [shape = 'f32[64,32]{1,0:T(8,128)}', space=vmem, size = 0x8000, scoped, tag = 'scratch operand']
  %s0 = inlined_call_operand.vmem [shape: s32[128,1], index: 0, kind: input, shape index: {}]
  %s1 = inlined_call_operand.hbm [shape: bf16[32,32], index: 1, kind: input, shape index: {}]
  %s2 = inlined_call_operand.hbm [shape: bf16[64,32], index: 2, kind: input, shape index: {}]
  %s3 = inlined_call_operand.vmem [shape: f32[2,1,32], index: 3, kind: input, shape index: {}, may-alias: {3,9}]
  %s4 = inlined_call_operand.vmem [shape: f32[2,1,32], index: 4, kind: input, shape index: {}, may-alias: {4,8,10,14}]
  %s5 = inlined_call_operand.vmem [shape: bf16[2,32,96], index: 5, kind: input, shape index: {}]
  %s6 = inlined_call_operand.vmem [shape: f32[2,1,96], index: 6, kind: input, shape index: {}]
  %s7 = inlined_call_operand.vmem [shape: bf16[2,32,32], index: 7, kind: input, shape index: {}]
  %s8 = inlined_call_operand.vmem [shape: f32[2,1,32], index: 8, kind: input, shape index: {}, may-alias: {4,8,10,14}]
  %s9 = inlined_call_operand.vmem [shape: f32[2,1,32], index: 9, kind: input, shape index: {}, may-alias: {3,9}]
  %s10 = inlined_call_operand.vmem [shape: f32[2,1,32], index: 10, kind: input, shape index: {}, may-alias: {4,8,10,14}]
  %s11 = inlined_call_operand.hbm [shape: bf16[2,32,128], index: 11, kind: input, shape index: {}]
  %s12 = inlined_call_operand.vmem [shape: f32[2,1,128], index: 12, kind: input, shape index: {}]
  %s13 = inlined_call_operand.vmem [shape: bf16[2,128,32], index: 13, kind: input, shape index: {}]
  %s14 = inlined_call_operand.vmem [shape: f32[2,1,32], index: 14, kind: input, shape index: {}, may-alias: {4,8,10,14}]
  %s15 = inlined_call_operand.hbm [shape: bf16[16,32], index: 15, kind: input, shape index: {}]
  %s16 = inlined_call_operand.vmem [shape: f32[16,1], index: 16, kind: input, shape index: {}]
  %s17 = inlined_call_operand.vmem [shape: f32[2,16,64], index: 17, kind: output, shape index: {}]
  %s18 = sld [smem:[#allocation0]]
  $region125: #{_lambda_.1} parent=0
    _
  %s20 = ssub.s32 1, %s18
  %s21 = scalar_select 0, %s20, %s18
  $region1: #{_lambda_.1} parent=0
    #allocation3 [shape = 'u8[8192]{0}', space=vmem, size = 0x2000, scoped, tag = 'input window, operand 1, single buffered']
    #allocation4 [shape = 's32[2]{0}', space=sflag, size = 0x8, scoped, tag = 'scoped memory for _lambda_.1']
    #allocation5 [shape = 'u8[16384]{0}', space=vmem, size = 0x4000, scoped, tag = 'input window, operand 2, single buffered']
    #allocation6 [shape = 's32[1]{0}', space=sflag, size = 0x4, scoped, tag = 'scoped memory for _lambda_.1']
    #allocation7 [shape = 'u8[16384]{0}', space=vmem, size = 0x4000, scoped, tag = 'input window, operand 11']
    #allocation8 [shape = 'u8[4096]{0}', space=vmem, size = 0x1000, scoped, tag = 'input window, operand 15, single buffered']
    %22 = vsyncpa [#allocation4], 0
    %23 = vsyncpa [#allocation6], 0
    loop: start=0, step=1, limit=6
    $region2: #{_lambda_.1} parent=1 // loop_pre_header
      _
    $region3: #{_lambda_.1} parent=1 // loop_header
      %s25 = sphi 0, %s29
      %p26 = scmp.ge.s32.totalorder %s25, 6
      %s32 = sphi 0, %s44
      %s33 = sphi 0, %s40
      %s34 = sphi 0, %s32
      %s35 = sphi 0, %s33
      %s36 = sphi 0, %s34
      %s37 = sphi 0, %s35
      %s47 = sphi 0, %s49
      %s50 = sphi 0, %s47
      %s51 = sphi 0, %s50
      %s67 = sphi 0, %s51
      %s71 = sphi 0, %s71
      %s73 = sphi 0, %s71
      %s74 = sphi 0, %s73
      %s88 = sphi 0, %s74
      %s92 = sphi 0, %s92
      %s94 = sphi 0, %s92
      %s95 = sphi 0, %s94
      %s109 = sphi 0, %s95
      %s115 = sphi 0, %s117
      %s118 = sphi 0, %s115
      %s119 = sphi 0, %s118
      %s135 = sphi 0, %s119
      %s141 = sphi 0, %s143
      %s144 = sphi 0, %s141
      %s145 = sphi 0, %s144
      %s161 = sphi 0, %s145
      %s167 = sphi 0, %s169
      %s170 = sphi 0, %s167
      %s171 = sphi 0, %s170
      %s187 = sphi 0, %s171
      %s193 = sphi 0, %s195
      %s196 = sphi 0, %s193
      %s197 = sphi 0, %s196
      %s213 = sphi 0, %s197
      %s219 = sphi 0, %s221
      %s222 = sphi 0, %s219
      %s223 = sphi 0, %s222
      %s239 = sphi 0, %s223
      %s245 = sphi 0, %s247
      %s248 = sphi 0, %s245
      %s249 = sphi 0, %s248
      %s265 = sphi 0, %s249
      %s271 = sphi 0, %s273
      %s274 = sphi 0, %s271
      %s275 = sphi 0, %s274
      %s291 = sphi 0, %s275
      %s297 = sphi 0, %s299
      %s300 = sphi 0, %s297
      %s301 = sphi 0, %s300
      %s317 = sphi 0, %s301
      %s323 = sphi 0, %s325
      %s326 = sphi 0, %s323
      %s327 = sphi 0, %s326
      %s343 = sphi 0, %s327
      %s349 = sphi 0, %s351
      %s352 = sphi 0, %s349
      %s353 = sphi 0, %s352
      %s369 = sphi 0, %s353
      %s375 = sphi 0, %s377
      %s378 = sphi 0, %s375
      %s379 = sphi 0, %s378
      %s395 = sphi 0, %s379
      %s401 = sphi 0, %s403
      %s404 = sphi 0, %s401
      %s405 = sphi 0, %s404
      %s421 = sphi 0, %s405
      %s425 = sphi 0, %s425
      %s427 = sphi 0, %s425
      %s428 = sphi 0, %s427
      %s442 = sphi 0, %s428
      %s446 = sphi 0, %s446
      %s448 = sphi 0, %s446
      %s449 = sphi 0, %s448
      %s463 = sphi 0, %s449
      %s469 = sphi 0, %s471
      %s472 = sphi 0, %s469
      %s473 = sphi 0, %s472
      %s489 = sphi 0, %s473
    $region4: #{_lambda_.1} parent=1 // loop_header_branch
      %28 = sbr.rel (%p26) target = $region8
    $region5: #{_lambda_.1} parent=1 // loop_body
      %s30 = ssub.s32 %s25, 1
      %s31 = ssub.s32 %s25, 2
      %s38 = sadd.s32 1, %s33
      %p39 = scmp.ge.s32.totalorder %s38, 2
      %s40 = scalar_select %p39, 0, %s38
      %s41 = sadd.s32 1, %s32
      %s42 = scalar_select %p39, %s41, %s32
      %p43 = scmp.ge.s32.totalorder %s42, 2
      %s44 = scalar_select %p43, 0, %s42
      %s45 = ssub.s32 %s32, %s44
      %p46 = scmp.eq.s32.totalorder %s45, 0
      %s48 = sadd.s32 %s47, 1
      %s49 = scalar_select %p46, %s47, %s48
      %p52 = pneg %p46
      %p53 = scmp.eq.s32.totalorder %s25, 3
      %p54 = por %p52, %p53
      %p55 = scmp.ne.s32.totalorder %s47, %s50
      %p56 = scmp.eq.s32.totalorder %s25, 0
      %p57 = por %p55, %p56
      %p58 = scmp.ne.s32.totalorder %s47, %s50
      %p59 = scmp.eq.s32.totalorder %s30, 3
      %p60 = por %p58, %p59
      %p61 = scmp.ne.s32.totalorder %s50, %s51
      %p62 = scmp.eq.s32.totalorder %s30, 0
      %p63 = por %p61, %p62
      %p64 = scmp.ne.s32.totalorder %s50, %s51
      %p65 = scmp.eq.s32.totalorder %s31, 3
      %p66 = por %p64, %p65
      %p68 = scmp.ne.s32.totalorder %s51, %s67
      %p69 = scmp.eq.s32.totalorder %s31, 0
      %p70 = por %p68, %p69
      %s72 = sadd.s32 %s71, 1
      %p75 = scmp.eq.s32.totalorder %s25, 3
      %p76 = scmp.ne.s32.totalorder %s71, %s73
      %p77 = scmp.eq.s32.totalorder %s25, 0
      %p78 = por %p76, %p77
      %p79 = scmp.ne.s32.totalorder %s71, %s73
      %p80 = scmp.eq.s32.totalorder %s30, 3
      %p81 = por %p79, %p80
      %p82 = scmp.ne.s32.totalorder %s73, %s74
      %p83 = scmp.eq.s32.totalorder %s30, 0
      %p84 = por %p82, %p83
      %p85 = scmp.ne.s32.totalorder %s73, %s74
      %p86 = scmp.eq.s32.totalorder %s31, 3
      %p87 = por %p85, %p86
      %p89 = scmp.ne.s32.totalorder %s74, %s88
      %p90 = scmp.eq.s32.totalorder %s31, 0
      %p91 = por %p89, %p90
      %s93 = sadd.s32 %s92, 1
      %p96 = scmp.eq.s32.totalorder %s25, 3
      %p97 = scmp.ne.s32.totalorder %s92, %s94
      %p98 = scmp.eq.s32.totalorder %s25, 0
      %p99 = por %p97, %p98
      %p100 = scmp.ne.s32.totalorder %s92, %s94
      %p101 = scmp.eq.s32.totalorder %s30, 3
      %p102 = por %p100, %p101
      %p103 = scmp.ne.s32.totalorder %s94, %s95
      %p104 = scmp.eq.s32.totalorder %s30, 0
      %p105 = por %p103, %p104
      %p106 = scmp.ne.s32.totalorder %s94, %s95
      %p107 = scmp.eq.s32.totalorder %s31, 3
      %p108 = por %p106, %p107
      %p110 = scmp.ne.s32.totalorder %s95, %s109
      %p111 = scmp.eq.s32.totalorder %s31, 0
      %p112 = por %p110, %p111
      %s113 = ssub.s32 %s33, %s40
      %p114 = scmp.eq.s32.totalorder %s113, 0
      %s116 = sadd.s32 %s115, 1
      %s117 = scalar_select %p114, %s115, %s116
      %p120 = pneg %p114
      %p121 = scmp.eq.s32.totalorder %s25, 3
      %p122 = por %p120, %p121
      %p123 = scmp.ne.s32.totalorder %s115, %s118
      %p124 = scmp.eq.s32.totalorder %s25, 0
      %p125 = por %p123, %p124
      %p126 = scmp.ne.s32.totalorder %s115, %s118
      %p127 = scmp.eq.s32.totalorder %s30, 3
      %p128 = por %p126, %p127
      %p129 = scmp.ne.s32.totalorder %s118, %s119
      %p130 = scmp.eq.s32.totalorder %s30, 0
      %p131 = por %p129, %p130
      %p132 = scmp.ne.s32.totalorder %s118, %s119
      %p133 = scmp.eq.s32.totalorder %s31, 3
      %p134 = por %p132, %p133
      %p136 = scmp.ne.s32.totalorder %s119, %s135
      %p137 = scmp.eq.s32.totalorder %s31, 0
      %p138 = por %p136, %p137
      %s139 = ssub.s32 %s33, %s40
      %p140 = scmp.eq.s32.totalorder %s139, 0
      %s142 = sadd.s32 %s141, 1
      %s143 = scalar_select %p140, %s141, %s142
      %p146 = pneg %p140
      %p147 = scmp.eq.s32.totalorder %s25, 3
      %p148 = por %p146, %p147
      %p149 = scmp.ne.s32.totalorder %s141, %s144
      %p150 = scmp.eq.s32.totalorder %s25, 0
      %p151 = por %p149, %p150
      %p152 = scmp.ne.s32.totalorder %s141, %s144
      %p153 = scmp.eq.s32.totalorder %s30, 3
      %p154 = por %p152, %p153
      %p155 = scmp.ne.s32.totalorder %s144, %s145
      %p156 = scmp.eq.s32.totalorder %s30, 0
      %p157 = por %p155, %p156
      %p158 = scmp.ne.s32.totalorder %s144, %s145
      %p159 = scmp.eq.s32.totalorder %s31, 3
      %p160 = por %p158, %p159
      %p162 = scmp.ne.s32.totalorder %s145, %s161
      %p163 = scmp.eq.s32.totalorder %s31, 0
      %p164 = por %p162, %p163
      %s165 = ssub.s32 %s33, %s40
      %p166 = scmp.eq.s32.totalorder %s165, 0
      %s168 = sadd.s32 %s167, 1
      %s169 = scalar_select %p166, %s167, %s168
      %p172 = pneg %p166
      %p173 = scmp.eq.s32.totalorder %s25, 3
      %p174 = por %p172, %p173
      %p175 = scmp.ne.s32.totalorder %s167, %s170
      %p176 = scmp.eq.s32.totalorder %s25, 0
      %p177 = por %p175, %p176
      %p178 = scmp.ne.s32.totalorder %s167, %s170
      %p179 = scmp.eq.s32.totalorder %s30, 3
      %p180 = por %p178, %p179
      %p181 = scmp.ne.s32.totalorder %s170, %s171
      %p182 = scmp.eq.s32.totalorder %s30, 0
      %p183 = por %p181, %p182
      %p184 = scmp.ne.s32.totalorder %s170, %s171
      %p185 = scmp.eq.s32.totalorder %s31, 3
      %p186 = por %p184, %p185
      %p188 = scmp.ne.s32.totalorder %s171, %s187
      %p189 = scmp.eq.s32.totalorder %s31, 0
      %p190 = por %p188, %p189
      %s191 = ssub.s32 %s33, %s40
      %p192 = scmp.eq.s32.totalorder %s191, 0
      %s194 = sadd.s32 %s193, 1
      %s195 = scalar_select %p192, %s193, %s194
      %p198 = pneg %p192
      %p199 = scmp.eq.s32.totalorder %s25, 3
      %p200 = por %p198, %p199
      %p201 = scmp.ne.s32.totalorder %s193, %s196
      %p202 = scmp.eq.s32.totalorder %s25, 0
      %p203 = por %p201, %p202
      %p204 = scmp.ne.s32.totalorder %s193, %s196
      %p205 = scmp.eq.s32.totalorder %s30, 3
      %p206 = por %p204, %p205
      %p207 = scmp.ne.s32.totalorder %s196, %s197
      %p208 = scmp.eq.s32.totalorder %s30, 0
      %p209 = por %p207, %p208
      %p210 = scmp.ne.s32.totalorder %s196, %s197
      %p211 = scmp.eq.s32.totalorder %s31, 3
      %p212 = por %p210, %p211
      %p214 = scmp.ne.s32.totalorder %s197, %s213
      %p215 = scmp.eq.s32.totalorder %s31, 0
      %p216 = por %p214, %p215
      %s217 = ssub.s32 %s33, %s40
      %p218 = scmp.eq.s32.totalorder %s217, 0
      %s220 = sadd.s32 %s219, 1
      %s221 = scalar_select %p218, %s219, %s220
      %p224 = pneg %p218
      %p225 = scmp.eq.s32.totalorder %s25, 3
      %p226 = por %p224, %p225
      %p227 = scmp.ne.s32.totalorder %s219, %s222
      %p228 = scmp.eq.s32.totalorder %s25, 0
      %p229 = por %p227, %p228
      %p230 = scmp.ne.s32.totalorder %s219, %s222
      %p231 = scmp.eq.s32.totalorder %s30, 3
      %p232 = por %p230, %p231
      %p233 = scmp.ne.s32.totalorder %s222, %s223
      %p234 = scmp.eq.s32.totalorder %s30, 0
      %p235 = por %p233, %p234
      %p236 = scmp.ne.s32.totalorder %s222, %s223
      %p237 = scmp.eq.s32.totalorder %s31, 3
      %p238 = por %p236, %p237
      %p240 = scmp.ne.s32.totalorder %s223, %s239
      %p241 = scmp.eq.s32.totalorder %s31, 0
      %p242 = por %p240, %p241
      %s243 = ssub.s32 %s33, %s40
      %p244 = scmp.eq.s32.totalorder %s243, 0
      %s246 = sadd.s32 %s245, 1
      %s247 = scalar_select %p244, %s245, %s246
      %p250 = pneg %p244
      %p251 = scmp.eq.s32.totalorder %s25, 3
      %p252 = por %p250, %p251
      %p253 = scmp.ne.s32.totalorder %s245, %s248
      %p254 = scmp.eq.s32.totalorder %s25, 0
      %p255 = por %p253, %p254
      %p256 = scmp.ne.s32.totalorder %s245, %s248
      %p257 = scmp.eq.s32.totalorder %s30, 3
      %p258 = por %p256, %p257
      %p259 = scmp.ne.s32.totalorder %s248, %s249
      %p260 = scmp.eq.s32.totalorder %s30, 0
      %p261 = por %p259, %p260
      %p262 = scmp.ne.s32.totalorder %s248, %s249
      %p263 = scmp.eq.s32.totalorder %s31, 3
      %p264 = por %p262, %p263
      %p266 = scmp.ne.s32.totalorder %s249, %s265
      %p267 = scmp.eq.s32.totalorder %s31, 0
      %p268 = por %p266, %p267
      %s269 = ssub.s32 %s33, %s40
      %p270 = scmp.eq.s32.totalorder %s269, 0
      %s272 = sadd.s32 %s271, 1
      %s273 = scalar_select %p270, %s271, %s272
      %p276 = pneg %p270
      %p277 = scmp.eq.s32.totalorder %s25, 3
      %p278 = por %p276, %p277
      %p279 = scmp.ne.s32.totalorder %s271, %s274
      %p280 = scmp.eq.s32.totalorder %s25, 0
      %p281 = por %p279, %p280
      %p282 = scmp.ne.s32.totalorder %s271, %s274
      %p283 = scmp.eq.s32.totalorder %s30, 3
      %p284 = por %p282, %p283
      %p285 = scmp.ne.s32.totalorder %s274, %s275
      %p286 = scmp.eq.s32.totalorder %s30, 0
      %p287 = por %p285, %p286
      %p288 = scmp.ne.s32.totalorder %s274, %s275
      %p289 = scmp.eq.s32.totalorder %s31, 3
      %p290 = por %p288, %p289
      %p292 = scmp.ne.s32.totalorder %s275, %s291
      %p293 = scmp.eq.s32.totalorder %s31, 0
      %p294 = por %p292, %p293
      %s295 = ssub.s32 %s33, %s40
      %p296 = scmp.eq.s32.totalorder %s295, 0
      %s298 = sadd.s32 %s297, 1
      %s299 = scalar_select %p296, %s297, %s298
      %p302 = pneg %p296
      %p303 = scmp.eq.s32.totalorder %s25, 3
      %p304 = por %p302, %p303
      %p305 = scmp.ne.s32.totalorder %s297, %s300
      %p306 = scmp.eq.s32.totalorder %s25, 0
      %p307 = por %p305, %p306
      %p308 = scmp.ne.s32.totalorder %s297, %s300
      %p309 = scmp.eq.s32.totalorder %s30, 3
      %p310 = por %p308, %p309
      %p311 = scmp.ne.s32.totalorder %s300, %s301
      %p312 = scmp.eq.s32.totalorder %s30, 0
      %p313 = por %p311, %p312
      %p314 = scmp.ne.s32.totalorder %s300, %s301
      %p315 = scmp.eq.s32.totalorder %s31, 3
      %p316 = por %p314, %p315
      %p318 = scmp.ne.s32.totalorder %s301, %s317
      %p319 = scmp.eq.s32.totalorder %s31, 0
      %p320 = por %p318, %p319
      %s321 = ssub.s32 %s33, %s40
      %p322 = scmp.eq.s32.totalorder %s321, 0
      %s324 = sadd.s32 %s323, 1
      %s325 = scalar_select %p322, %s323, %s324
      %p328 = pneg %p322
      %p329 = scmp.eq.s32.totalorder %s25, 3
      %p330 = por %p328, %p329
      %p331 = scmp.ne.s32.totalorder %s323, %s326
      %p332 = scmp.eq.s32.totalorder %s25, 0
      %p333 = por %p331, %p332
      %p334 = scmp.ne.s32.totalorder %s323, %s326
      %p335 = scmp.eq.s32.totalorder %s30, 3
      %p336 = por %p334, %p335
      %p337 = scmp.ne.s32.totalorder %s326, %s327
      %p338 = scmp.eq.s32.totalorder %s30, 0
      %p339 = por %p337, %p338
      %p340 = scmp.ne.s32.totalorder %s326, %s327
      %p341 = scmp.eq.s32.totalorder %s31, 3
      %p342 = por %p340, %p341
      %p344 = scmp.ne.s32.totalorder %s327, %s343
      %p345 = scmp.eq.s32.totalorder %s31, 0
      %p346 = por %p344, %p345
      %s347 = ssub.s32 %s33, %s40
      %p348 = scmp.eq.s32.totalorder %s347, 0
      %s350 = sadd.s32 %s349, 1
      %s351 = scalar_select %p348, %s349, %s350
      %p354 = pneg %p348
      %p355 = scmp.eq.s32.totalorder %s25, 3
      %p356 = por %p354, %p355
      %p357 = scmp.ne.s32.totalorder %s349, %s352
      %p358 = scmp.eq.s32.totalorder %s25, 0
      %p359 = por %p357, %p358
      %p360 = scmp.ne.s32.totalorder %s349, %s352
      %p361 = scmp.eq.s32.totalorder %s30, 3
      %p362 = por %p360, %p361
      %p363 = scmp.ne.s32.totalorder %s352, %s353
      %p364 = scmp.eq.s32.totalorder %s30, 0
      %p365 = por %p363, %p364
      %p366 = scmp.ne.s32.totalorder %s352, %s353
      %p367 = scmp.eq.s32.totalorder %s31, 3
      %p368 = por %p366, %p367
      %p370 = scmp.ne.s32.totalorder %s353, %s369
      %p371 = scmp.eq.s32.totalorder %s31, 0
      %p372 = por %p370, %p371
      %s373 = ssub.s32 %s33, %s40
      %p374 = scmp.eq.s32.totalorder %s373, 0
      %s376 = sadd.s32 %s375, 1
      %s377 = scalar_select %p374, %s375, %s376
      %p380 = pneg %p374
      %p381 = scmp.eq.s32.totalorder %s25, 3
      %p382 = por %p380, %p381
      %p383 = scmp.ne.s32.totalorder %s375, %s378
      %p384 = scmp.eq.s32.totalorder %s25, 0
      %p385 = por %p383, %p384
      %p386 = scmp.ne.s32.totalorder %s375, %s378
      %p387 = scmp.eq.s32.totalorder %s30, 3
      %p388 = por %p386, %p387
      %p389 = scmp.ne.s32.totalorder %s378, %s379
      %p390 = scmp.eq.s32.totalorder %s30, 0
      %p391 = por %p389, %p390
      %p392 = scmp.ne.s32.totalorder %s378, %s379
      %p393 = scmp.eq.s32.totalorder %s31, 3
      %p394 = por %p392, %p393
      %p396 = scmp.ne.s32.totalorder %s379, %s395
      %p397 = scmp.eq.s32.totalorder %s31, 0
      %p398 = por %p396, %p397
      %s399 = ssub.s32 %s33, %s40
      %p400 = scmp.eq.s32.totalorder %s399, 0
      %s402 = sadd.s32 %s401, 1
      %s403 = scalar_select %p400, %s401, %s402
      %p406 = pneg %p400
      %p407 = scmp.eq.s32.totalorder %s25, 3
      %p408 = por %p406, %p407
      %p409 = scmp.ne.s32.totalorder %s401, %s404
      %p410 = scmp.eq.s32.totalorder %s25, 0
      %p411 = por %p409, %p410
      %p412 = scmp.ne.s32.totalorder %s401, %s404
      %p413 = scmp.eq.s32.totalorder %s30, 3
      %p414 = por %p412, %p413
      %p415 = scmp.ne.s32.totalorder %s404, %s405
      %p416 = scmp.eq.s32.totalorder %s30, 0
      %p417 = por %p415, %p416
      %p418 = scmp.ne.s32.totalorder %s404, %s405
      %p419 = scmp.eq.s32.totalorder %s31, 3
      %p420 = por %p418, %p419
      %p422 = scmp.ne.s32.totalorder %s405, %s421
      %p423 = scmp.eq.s32.totalorder %s31, 0
      %p424 = por %p422, %p423
      %s426 = sadd.s32 %s425, 1
      %p429 = scmp.eq.s32.totalorder %s25, 3
      %p430 = scmp.ne.s32.totalorder %s425, %s427
      %p431 = scmp.eq.s32.totalorder %s25, 0
      %p432 = por %p430, %p431
      %p433 = scmp.ne.s32.totalorder %s425, %s427
      %p434 = scmp.eq.s32.totalorder %s30, 3
      %p435 = por %p433, %p434
      %p436 = scmp.ne.s32.totalorder %s427, %s428
      %p437 = scmp.eq.s32.totalorder %s30, 0
      %p438 = por %p436, %p437
      %p439 = scmp.ne.s32.totalorder %s427, %s428
      %p440 = scmp.eq.s32.totalorder %s31, 3
      %p441 = por %p439, %p440
      %p443 = scmp.ne.s32.totalorder %s428, %s442
      %p444 = scmp.eq.s32.totalorder %s31, 0
      %p445 = por %p443, %p444
      %s447 = sadd.s32 %s446, 1
      %p450 = scmp.eq.s32.totalorder %s25, 3
      %p451 = scmp.ne.s32.totalorder %s446, %s448
      %p452 = scmp.eq.s32.totalorder %s25, 0
      %p453 = por %p451, %p452
      %p454 = scmp.ne.s32.totalorder %s446, %s448
      %p455 = scmp.eq.s32.totalorder %s30, 3
      %p456 = por %p454, %p455
      %p457 = scmp.ne.s32.totalorder %s448, %s449
      %p458 = scmp.eq.s32.totalorder %s30, 0
      %p459 = por %p457, %p458
      %p460 = scmp.ne.s32.totalorder %s448, %s449
      %p461 = scmp.eq.s32.totalorder %s31, 3
      %p462 = por %p460, %p461
      %p464 = scmp.ne.s32.totalorder %s449, %s463
      %p465 = scmp.eq.s32.totalorder %s31, 0
      %p466 = por %p464, %p465
      %s467 = ssub.s32 %s32, %s44
      %p468 = scmp.eq.s32.totalorder %s467, 0
      %s470 = sadd.s32 %s469, 1
      %s471 = scalar_select %p468, %s469, %s470
      %p474 = pneg %p468
      %p475 = scmp.eq.s32.totalorder %s25, 3
      %p476 = por %p474, %p475
      %p477 = scmp.ne.s32.totalorder %s469, %s472
      %p478 = scmp.eq.s32.totalorder %s25, 0
      %p479 = por %p477, %p478
      %p480 = scmp.ne.s32.totalorder %s469, %s472
      %p481 = scmp.eq.s32.totalorder %s30, 3
      %p482 = por %p480, %p481
      %p483 = scmp.ne.s32.totalorder %s472, %s473
      %p484 = scmp.eq.s32.totalorder %s30, 0
      %p485 = por %p483, %p484
      %p486 = scmp.ne.s32.totalorder %s472, %s473
      %p487 = scmp.eq.s32.totalorder %s31, 3
      %p488 = por %p486, %p487
      %p490 = scmp.ne.s32.totalorder %s473, %s489
      %p491 = scmp.eq.s32.totalorder %s31, 0
      %p492 = por %p490, %p491
      %p493 = scmp.le.s32.totalorder 1, %s25
      %p494 = scmp.lt.s32.totalorder %s25, 5
      %p495 = pnand %p493, %p494
      %p496 = pneg %p495
      // Predicated region
      $region9: #{_lambda_.1} parent=5 // pred_check
        _
      $region10: #{_lambda_.1} parent=5 // pred_check_branch
        %498 = sbr.rel (%p495) target = $region12
      $region11: #{_lambda_.1} parent=5 // pred_region
        %s499 = ssub.s32 %s25, 1
        // Predicated region
        $region13: #{_lambda_.1} parent=11 // pred_check
          %p500 = pneg %p84
        $region14: #{_lambda_.1} parent=11 // pred_check_branch
          %502 = sbr.rel (%p500) target = $region16
        $region15: #{_lambda_.1} parent=11 // pred_region
          %s504 = ssub.s32 256, 256
          %505 = vsyncadd [#allocation4], %s504
          %s506 = sshll.u32 [#allocation3], 4
          %s507 = int_to_ptr.vmem [resolvable:$true] %s506
          %512 = dma.hbm_to_vmem [thread:$0]  %s1, 256, %s507, [#allocation4], 64, 64, 4
        $region16: #{_lambda_.1} parent=11 // pred_fallthru
          _
        // Predicated region
        $region17: #{_lambda_.1} parent=11 // pred_check
          %p513 = pneg %p105
        $region18: #{_lambda_.1} parent=11 // pred_check_branch
          %515 = sbr.rel (%p513) target = $region20
        $region19: #{_lambda_.1} parent=11 // pred_region
          %s517 = ssub.s32 512, 512
          %518 = vsyncadd [#allocation6], %s517
          %s519 = sshll.u32 [#allocation5], 4
          %s520 = int_to_ptr.vmem [resolvable:$true] %s519
          %525 = dma.hbm_to_vmem [thread:$0]  %s2, 512, %s520, [#allocation6], 64, 64, 4
        $region20: #{_lambda_.1} parent=11 // pred_fallthru
          _
        // Predicated region
        $region21: #{_lambda_.1} parent=11 // pred_check
          %p526 = pneg %p438
        $region22: #{_lambda_.1} parent=11 // pred_check_branch
          %528 = sbr.rel (%p526) target = $region24
        $region23: #{_lambda_.1} parent=11 // pred_region
          %s530 = ssub.s32 128, 128
          %531 = vsyncadd [#allocation6], %s530
          %s532 = sshll.u32 [#allocation8], 4
          %s533 = int_to_ptr.vmem [resolvable:$true] %s532
          %538 = dma.hbm_to_vmem [thread:$0]  %s15, 128, %s533, [#allocation6], 64, 64, 4
        $region24: #{_lambda_.1} parent=11 // pred_fallthru
          _
        // Predicated region
        $region25: #{_lambda_.1} parent=11 // pred_check
          %p539 = pneg %p459
        $region26: #{_lambda_.1} parent=11 // pred_check_branch
          %541 = sbr.rel (%p539) target = $region28
        $region27: #{_lambda_.1} parent=11 // pred_region
          _
        $region28: #{_lambda_.1} parent=11 // pred_fallthru
          _
      $region12: #{_lambda_.1} parent=5 // pred_fallthru
        _
      %p542 = scmp.lt.s32.totalorder %s25, 4
      // Predicated region
      $region29: #{_lambda_.1} parent=5 // pred_check
        %p543 = pneg %p542
      $region30: #{_lambda_.1} parent=5 // pred_check_branch
        %545 = sbr.rel (%p543) target = $region32
      $region31: #{_lambda_.1} parent=5 // pred_region
        // Predicated region
        $region33: #{_lambda_.1} parent=31 // pred_check
          %p546 = pneg %p57
        $region34: #{_lambda_.1} parent=31 // pred_check_branch
          %548 = sbr.rel (%p546) target = $region36
        $region35: #{_lambda_.1} parent=31 // pred_region
          %s549 = smul.u32 8, %s32
          %p550 = scmp.lt.s32.totalorder %s549, 15
          %s551 = scalar_select %p550, %s549, 15
          %s552 = smul.addr %s551, 8
          %s553 = scalar_lea.vmem %s0, %s552
          %s554 = smul.u32 8, %s32
        $region36: #{_lambda_.1} parent=31 // pred_fallthru
          _
        // Predicated region
        $region37: #{_lambda_.1} parent=31 // pred_check
          %p555 = pneg %p125
        $region38: #{_lambda_.1} parent=31 // pred_check_branch
          %557 = sbr.rel (%p555) target = $region40
        $region39: #{_lambda_.1} parent=31 // pred_region
          %p558 = scmp.lt.s32.totalorder %s33, 1
          %s559 = scalar_select %p558, %s33, 1
          %s560 = scalar_lea.vmem %s3, %s559
        $region40: #{_lambda_.1} parent=31 // pred_fallthru
          _
        // Predicated region
        $region41: #{_lambda_.1} parent=31 // pred_check
          %p561 = pneg %p151
        $region42: #{_lambda_.1} parent=31 // pred_check_branch
          %563 = sbr.rel (%p561) target = $region44
        $region43: #{_lambda_.1} parent=31 // pred_region
          %p564 = scmp.lt.s32.totalorder %s33, 1
          %s565 = scalar_select %p564, %s33, 1
          %s566 = scalar_lea.vmem %s4, %s565
        $region44: #{_lambda_.1} parent=31 // pred_fallthru
          _
        // Predicated region
        $region45: #{_lambda_.1} parent=31 // pred_check
          %p567 = pneg %p177
        $region46: #{_lambda_.1} parent=31 // pred_check_branch
          %569 = sbr.rel (%p567) target = $region48
        $region47: #{_lambda_.1} parent=31 // pred_region
          %p570 = scmp.lt.s32.totalorder %s33, 1
          %s571 = scalar_select %p570, %s33, 1
          %s572 = smul.addr %s571, 4
          %s573 = smul.addr %s572, 4
          %s574 = scalar_lea.vmem %s5, %s573
        $region48: #{_lambda_.1} parent=31 // pred_fallthru
          _
        // Predicated region
        $region49: #{_lambda_.1} parent=31 // pred_check
          %p575 = pneg %p203
        $region50: #{_lambda_.1} parent=31 // pred_check_branch
          %577 = sbr.rel (%p575) target = $region52
        $region51: #{_lambda_.1} parent=31 // pred_region
          %p578 = scmp.lt.s32.totalorder %s33, 1
          %s579 = scalar_select %p578, %s33, 1
          %s580 = scalar_lea.vmem %s6, %s579
        $region52: #{_lambda_.1} parent=31 // pred_fallthru
          _
        // Predicated region
        $region53: #{_lambda_.1} parent=31 // pred_check
          %p581 = pneg %p229
        $region54: #{_lambda_.1} parent=31 // pred_check_branch
          %583 = sbr.rel (%p581) target = $region56
        $region55: #{_lambda_.1} parent=31 // pred_region
          %p584 = scmp.lt.s32.totalorder %s33, 1
          %s585 = scalar_select %p584, %s33, 1
          %s586 = smul.addr %s585, 4
          %s587 = smul.addr %s586, 4
          %s588 = scalar_lea.vmem %s7, %s587
        $region56: #{_lambda_.1} parent=31 // pred_fallthru
          _
        // Predicated region
        $region57: #{_lambda_.1} parent=31 // pred_check
          %p589 = pneg %p255
        $region58: #{_lambda_.1} parent=31 // pred_check_branch
          %591 = sbr.rel (%p589) target = $region60
        $region59: #{_lambda_.1} parent=31 // pred_region
          %p592 = scmp.lt.s32.totalorder %s33, 1
          %s593 = scalar_select %p592, %s33, 1
          %s594 = scalar_lea.vmem %s8, %s593
        $region60: #{_lambda_.1} parent=31 // pred_fallthru
          _
        // Predicated region
        $region61: #{_lambda_.1} parent=31 // pred_check
          %p595 = pneg %p281
        $region62: #{_lambda_.1} parent=31 // pred_check_branch
          %597 = sbr.rel (%p595) target = $region64
        $region63: #{_lambda_.1} parent=31 // pred_region
          %p598 = scmp.lt.s32.totalorder %s33, 1
          %s599 = scalar_select %p598, %s33, 1
          %s600 = scalar_lea.vmem %s9, %s599
        $region64: #{_lambda_.1} parent=31 // pred_fallthru
          _
        // Predicated region
        $region65: #{_lambda_.1} parent=31 // pred_check
          %p601 = pneg %p307
        $region66: #{_lambda_.1} parent=31 // pred_check_branch
          %603 = sbr.rel (%p601) target = $region68
        $region67: #{_lambda_.1} parent=31 // pred_region
          %p604 = scmp.lt.s32.totalorder %s33, 1
          %s605 = scalar_select %p604, %s33, 1
          %s606 = scalar_lea.vmem %s10, %s605
        $region68: #{_lambda_.1} parent=31 // pred_fallthru
          _
        // Predicated region
        $region69: #{_lambda_.1} parent=31 // pred_check
          %p607 = pneg %p333
        $region70: #{_lambda_.1} parent=31 // pred_check_branch
          %609 = sbr.rel (%p607) target = $region72
        $region71: #{_lambda_.1} parent=31 // pred_region
          %s610 = sand.u32 %s25, 1
          %s611 = scalar_lea.sflag [#allocation4], %s610
          %s612 = sand.u32 %s323, 1
          %s613 = smul.addr %s612, 16
          %s614 = scalar_lea.vmem [#allocation7], %s613
          %s616 = ssub.s32 256, 256
          %617 = vsyncadd %s611, %s616
          %s618 = smul.addr %s33, 4
          %s619 = smul.addr %s618, 64
          %s620 = scalar_lea.hbm %s11, %s619
          %s621 = sshll.u32 %s614, 4
          %s622 = int_to_ptr.vmem [resolvable:$true] %s621
          %627 = dma.hbm_to_vmem [thread:$0]  %s620, 256, %s622, %s611, 64, 64, 4
        $region72: #{_lambda_.1} parent=31 // pred_fallthru
          _
        // Predicated region
        $region73: #{_lambda_.1} parent=31 // pred_check
          %p628 = pneg %p359
        $region74: #{_lambda_.1} parent=31 // pred_check_branch
          %630 = sbr.rel (%p628) target = $region76
        $region75: #{_lambda_.1} parent=31 // pred_region
          %p631 = scmp.lt.s32.totalorder %s33, 1
          %s632 = scalar_select %p631, %s33, 1
          %s633 = scalar_lea.vmem %s12, %s632
        $region76: #{_lambda_.1} parent=31 // pred_fallthru
          _
        // Predicated region
        $region77: #{_lambda_.1} parent=31 // pred_check
          %p634 = pneg %p385
        $region78: #{_lambda_.1} parent=31 // pred_check_branch
          %636 = sbr.rel (%p634) target = $region80
        $region79: #{_lambda_.1} parent=31 // pred_region
          %p637 = scmp.lt.s32.totalorder %s33, 1
          %s638 = scalar_select %p637, %s33, 1
          %s639 = smul.addr %s638, 16
          %s640 = smul.addr %s639, 4
          %s641 = scalar_lea.vmem %s13, %s640
        $region80: #{_lambda_.1} parent=31 // pred_fallthru
          _
        // Predicated region
        $region81: #{_lambda_.1} parent=31 // pred_check
          %p642 = pneg %p411
        $region82: #{_lambda_.1} parent=31 // pred_check_branch
          %644 = sbr.rel (%p642) target = $region84
        $region83: #{_lambda_.1} parent=31 // pred_region
          %p645 = scmp.lt.s32.totalorder %s33, 1
          %s646 = scalar_select %p645, %s33, 1
          %s647 = scalar_lea.vmem %s14, %s646
        $region84: #{_lambda_.1} parent=31 // pred_fallthru
          _
      $region32: #{_lambda_.1} parent=5 // pred_fallthru
        _
      %p648 = scmp.le.s32.totalorder 1, %s25
      %p649 = scmp.lt.s32.totalorder %s25, 5
      %p650 = pnand %p648, %p649
      %p651 = pneg %p650
      // Predicated region
      $region85: #{_lambda_.1} parent=5 // pred_check
        _
      $region86: #{_lambda_.1} parent=5 // pred_check_branch
        %653 = sbr.rel (%p650) target = $region88
      $region87: #{_lambda_.1} parent=5 // pred_region
        %s654 = ssub.s32 %s25, 1
        // Predicated region
        $region89: #{_lambda_.1} parent=87 // pred_check
          %p655 = pneg %p84
        $region90: #{_lambda_.1} parent=87 // pred_check_branch
          %657 = sbr.rel (%p655) target = $region92
        $region91: #{_lambda_.1} parent=87 // pred_region
          %658 = dma.done [#allocation4], 256
        $region92: #{_lambda_.1} parent=87 // pred_fallthru
          _
        // Predicated region
        $region93: #{_lambda_.1} parent=87 // pred_check
          %p659 = pneg %p105
        $region94: #{_lambda_.1} parent=87 // pred_check_branch
          %661 = sbr.rel (%p659) target = $region96
        $region95: #{_lambda_.1} parent=87 // pred_region
          %662 = dma.done [#allocation6], 512
        $region96: #{_lambda_.1} parent=87 // pred_fallthru
          _
        %s663 = sand.u32 %s30, 1
        %s664 = scalar_lea.sflag [#allocation4], %s663
        %s665 = sand.u32 %s326, 1
        %s666 = smul.addr %s665, 16
        %s667 = scalar_lea.vmem [#allocation7], %s666
        // Predicated region
        $region97: #{_lambda_.1} parent=87 // pred_check
          %p668 = pneg %p339
        $region98: #{_lambda_.1} parent=87 // pred_check_branch
          %670 = sbr.rel (%p668) target = $region100
        $region99: #{_lambda_.1} parent=87 // pred_region
          %671 = dma.done %s664, 256
        $region100: #{_lambda_.1} parent=87 // pred_fallthru
          _
        // Predicated region
        $region101: #{_lambda_.1} parent=87 // pred_check
          %p672 = pneg %p438
        $region102: #{_lambda_.1} parent=87 // pred_check_branch
          %674 = sbr.rel (%p672) target = $region104
        $region103: #{_lambda_.1} parent=87 // pred_region
          %675 = dma.done [#allocation6], 128
        $region104: #{_lambda_.1} parent=87 // pred_fallthru
          _
        %s676 = smul.u32 8, %s34
        %p677 = scmp.lt.s32.totalorder %s676, 15
        %s678 = scalar_select %p677, %s676, 15
        %s679 = smul.addr %s678, 8
        %s680 = scalar_lea.vmem %s0, %s679
        %p681 = pneg %p63
        %p682 = pneg %p60
        %p683 = pneg %p84
        %p684 = pneg %p81
        %p685 = pneg %p105
        %p686 = pneg %p102
        %p687 = scmp.lt.s32.totalorder %s35, 1
        %s688 = scalar_select %p687, %s35, 1
        %s689 = scalar_lea.vmem %s3, %s688
        %p690 = pneg %p131
        %p691 = pneg %p128
        %p692 = scmp.lt.s32.totalorder %s35, 1
        %s693 = scalar_select %p692, %s35, 1
        %s694 = scalar_lea.vmem %s4, %s693
        %p695 = pneg %p157
        %p696 = pneg %p154
        %p697 = scmp.lt.s32.totalorder %s35, 1
        %s698 = scalar_select %p697, %s35, 1
        %s699 = smul.addr %s698, 4
        %s700 = smul.addr %s699, 4
        %s701 = scalar_lea.vmem %s5, %s700
        %p702 = pneg %p183
        %p703 = pneg %p180
        %p704 = scmp.lt.s32.totalorder %s35, 1
        %s705 = scalar_select %p704, %s35, 1
        %s706 = scalar_lea.vmem %s6, %s705
        %p707 = pneg %p209
        %p708 = pneg %p206
        %p709 = scmp.lt.s32.totalorder %s35, 1
        %s710 = scalar_select %p709, %s35, 1
        %s711 = smul.addr %s710, 4
        %s712 = smul.addr %s711, 4
        %s713 = scalar_lea.vmem %s7, %s712
        %p714 = pneg %p235
        %p715 = pneg %p232
        %p716 = scmp.lt.s32.totalorder %s35, 1
        %s717 = scalar_select %p716, %s35, 1
        %s718 = scalar_lea.vmem %s8, %s717
        %p719 = pneg %p261
        %p720 = pneg %p258
        %p721 = scmp.lt.s32.totalorder %s35, 1
        %s722 = scalar_select %p721, %s35, 1
        %s723 = scalar_lea.vmem %s9, %s722
        %p724 = pneg %p287
        %p725 = pneg %p284
        %p726 = scmp.lt.s32.totalorder %s35, 1
        %s727 = scalar_select %p726, %s35, 1
        %s728 = scalar_lea.vmem %s10, %s727
        %p729 = pneg %p313
        %p730 = pneg %p310
        %s731 = sand.u32 %s30, 1
        %s732 = scalar_lea.sflag [#allocation4], %s731
        %s733 = sand.u32 %s326, 1
        %s734 = smul.addr %s733, 16
        %s735 = scalar_lea.vmem [#allocation7], %s734
        %p736 = pneg %p339
        %p737 = pneg %p336
        %p738 = scmp.lt.s32.totalorder %s35, 1
        %s739 = scalar_select %p738, %s35, 1
        %s740 = scalar_lea.vmem %s12, %s739
        %p741 = pneg %p365
        %p742 = pneg %p362
        %p743 = scmp.lt.s32.totalorder %s35, 1
        %s744 = scalar_select %p743, %s35, 1
        %s745 = smul.addr %s744, 16
        %s746 = smul.addr %s745, 4
        %s747 = scalar_lea.vmem %s13, %s746
        %p748 = pneg %p391
        %p749 = pneg %p388
        %p750 = scmp.lt.s32.totalorder %s35, 1
        %s751 = scalar_select %p750, %s35, 1
        %s752 = scalar_lea.vmem %s14, %s751
        %p753 = pneg %p417
        %p754 = pneg %p414
        %p755 = pneg %p438
        %p756 = pneg %p435
        %p757 = pneg %p459
        %p758 = pneg %p456
        %p759 = pneg %p485
        %p760 = pneg %p482
        %p761 = scmp.lt.s32.totalorder %s34, 1
        %s762 = scalar_select %p761, %s34, 1
        %s763 = smul.addr %s762, 2
        %s764 = smul.addr %s763, 8
        %s765 = scalar_lea.vmem %s17, %s764
        %s766 = smul.u32 8, %s34
        %p767 = scmp.lt.s32.totalorder %s766, 15
        %s768 = scalar_select %p767, %s766, 15
        %s769 = smul.addr %s768, 8
        %s770 = scalar_lea.vmem %s0, %s769
        %s771 = smul.u32 8, %s34
        %p772 = scmp.lt.s32.totalorder %s35, 1
        %s773 = scalar_select %p772, %s35, 1
        %s774 = scalar_lea.vmem %s3, %s773
        %p775 = scmp.lt.s32.totalorder %s35, 1
        %s776 = scalar_select %p775, %s35, 1
        %s777 = scalar_lea.vmem %s4, %s776
        %p778 = scmp.lt.s32.totalorder %s35, 1
        %s779 = scalar_select %p778, %s35, 1
        %s780 = smul.addr %s779, 4
        %s781 = smul.addr %s780, 4
        %s782 = scalar_lea.vmem %s5, %s781
        %p783 = scmp.lt.s32.totalorder %s35, 1
        %s784 = scalar_select %p783, %s35, 1
        %s785 = scalar_lea.vmem %s6, %s784
        %p786 = scmp.lt.s32.totalorder %s35, 1
        %s787 = scalar_select %p786, %s35, 1
        %s788 = smul.addr %s787, 4
        %s789 = smul.addr %s788, 4
        %s790 = scalar_lea.vmem %s7, %s789
        %p791 = scmp.lt.s32.totalorder %s35, 1
        %s792 = scalar_select %p791, %s35, 1
        %s793 = scalar_lea.vmem %s8, %s792
        %p794 = scmp.lt.s32.totalorder %s35, 1
        %s795 = scalar_select %p794, %s35, 1
        %s796 = scalar_lea.vmem %s9, %s795
        %p797 = scmp.lt.s32.totalorder %s35, 1
        %s798 = scalar_select %p797, %s35, 1
        %s799 = scalar_lea.vmem %s10, %s798
        %p800 = scmp.lt.s32.totalorder %s35, 1
        %s801 = scalar_select %p800, %s35, 1
        %s802 = scalar_lea.vmem %s12, %s801
        %p803 = scmp.lt.s32.totalorder %s35, 1
        %s804 = scalar_select %p803, %s35, 1
        %s805 = smul.addr %s804, 16
        %s806 = smul.addr %s805, 4
        %s807 = scalar_lea.vmem %s13, %s806
        %p808 = scmp.lt.s32.totalorder %s35, 1
        %s809 = scalar_select %p808, %s35, 1
        %s810 = scalar_lea.vmem %s14, %s809
        %p811 = scmp.lt.s32.totalorder %s34, 1
        %s812 = scalar_select %p811, %s34, 1
        %s813 = smul.addr %s812, 2
        %s814 = smul.addr %s813, 8
        %s815 = scalar_lea.vmem %s17, %s814
        %p817 = scmp.eq.s32.totalorder %s35, 0
        // Predicated region
        $region105: #{_lambda_.1} parent=87 // pred_check
          %p818 = pneg %p817
        $region106: #{_lambda_.1} parent=87 // pred_check_branch
          %820 = sbr.rel (%p818) target = $region108
        $region107: #{_lambda_.1} parent=87 // pred_region
          %v821 = vld [vmem:[%s770] sm:$0xff]
          %v822 = vld [vmem:[%s770 + $0x8] sm:$0xff]
          %v823 = vld [vmem:[%s770 + $0x10] sm:$0xff]
          %v824 = vld [vmem:[%s770 + $0x18] sm:$0xff]
          %v825 = vld [vmem:[%s770 + $0x20] sm:$0xff]
          %v826 = vld [vmem:[%s770 + $0x28] sm:$0xff]
          %v827 = vld [vmem:[%s770 + $0x30] sm:$0xff]
          %v828 = vld [vmem:[%s770 + $0x38] sm:$0xff]
          %v829 = vlaneseq
          %v830 = vand.u32 %v829, 127
          %831 = vset.pattern.permute.xlu0 0
          %832 = vperm.xlu0 %831, %v821
          %v833 = vpop.permute.xlu0 %832
          %834 = vset.pattern.permute.xlu0 0
          %835 = vperm.xlu0 %834, %v822
          %v836 = vpop.permute.xlu0 %835
          %837 = vset.pattern.permute.xlu0 0
          %838 = vperm.xlu0 %837, %v823
          %v839 = vpop.permute.xlu0 %838
          %840 = vset.pattern.permute.xlu0 0
          %841 = vperm.xlu0 %840, %v824
          %v842 = vpop.permute.xlu0 %841
          %843 = vset.pattern.permute.xlu0 0
          %844 = vperm.xlu0 %843, %v825
          %v845 = vpop.permute.xlu0 %844
          %846 = vset.pattern.permute.xlu0 0
          %847 = vperm.xlu0 %846, %v826
          %v848 = vpop.permute.xlu0 %847
          %849 = vset.pattern.permute.xlu0 0
          %850 = vperm.xlu0 %849, %v827
          %v851 = vpop.permute.xlu0 %850
          %852 = vset.pattern.permute.xlu0 0
          %853 = vperm.xlu0 %852, %v828
          %v854 = vpop.permute.xlu0 %853
          %vm855 = vcmp.eq.s32.totalorder %v833, %v830
          %vm856 = vcmp.eq.s32.totalorder %v836, %v830
          %vm857 = vcmp.eq.s32.totalorder %v839, %v830
          %vm858 = vcmp.eq.s32.totalorder %v842, %v830
          %vm859 = vcmp.eq.s32.totalorder %v845, %v830
          %vm860 = vcmp.eq.s32.totalorder %v848, %v830
          %vm861 = vcmp.eq.s32.totalorder %v851, %v830
          %vm862 = vcmp.eq.s32.totalorder %v854, %v830
          %v863 = vsel %vm855, 1, 0
          %v864 = vsel %vm856, 1, 0
          %v865 = vsel %vm857, 1, 0
          %v866 = vsel %vm858, 1, 0
          %v867 = vsel %vm859, 1, 0
          %v868 = vsel %vm860, 1, 0
          %v869 = vsel %vm861, 1, 0
          %v870 = vsel %vm862, 1, 0
          %v871 = vcvt.s32.f32 %v863
          %v872 = vcvt.s32.f32 %v864
          %v873 = vcvt.s32.f32 %v865
          %v874 = vcvt.s32.f32 %v866
          %v875 = vcvt.s32.f32 %v867
          %v876 = vcvt.s32.f32 %v868
          %v877 = vcvt.s32.f32 %v869
          %v878 = vcvt.s32.f32 %v870
          %v879 = vpack.c.bf16 %v872, %v871
          %v880 = vpack.c.bf16 %v874, %v873
          %v881 = vpack.c.bf16 %v876, %v875
          %v882 = vpack.c.bf16 %v878, %v877
          %v883 = vld [vmem:[#allocation3] sm:$0xf]
          %v884 = vld [vmem:[#allocation3 + $0x4] sm:$0xf]
          %v885 = vld [vmem:[#allocation3 + $0x8] sm:$0xf]
          %v886 = vld [vmem:[#allocation3 + $0xc] sm:$0xf]
          %v891 = vunpack.c.l.b16 %v883
          %v892 = vunpack.c.l.b16 %v884
          %v893 = vunpack.c.l.b16 %v885
          %v894 = vunpack.c.l.b16 %v886
          %v895 = vpack.c.b16 %v892, %v891
          %v896 = vpack.c.b16 %v894, %v893
          %vm899 = vcmask 261120
          %v901 = vsel %vm899, %v879, 0
          %v904 = vsel %vm899, %v880, 0
          %v907 = vsel %vm899, %v881, 0
          %v910 = vsel %vm899, %v882, 0
          %912 = vmatprep.subr.bf16.mxu0 0
          %913 = vmatpush1.bf16.msra.mxu0 0
          %914 = vmatprep.subr.bf16.mxu0 0
          %915 = vmatpush1.bf16.msra.mxu0 0
          %916 = vmatprep.subr.bf16.mxu0 0
          %917 = vmatpush1.bf16.msra.mxu0 0
          %918 = vmatprep.subr.bf16.mxu0 0
          %919 = vmatpush1.bf16.msra.mxu0 0
          %920 = vmatprep.subr.bf16.mxu0 0
          %921 = vmatpush1.bf16.msra.mxu0 0
          %922 = vmatprep.subr.bf16.mxu0 0
          %923 = vmatpush1.bf16.msra.mxu0 0
          %924 = vmatprep.subr.bf16.mxu0 0
          %925 = vmatpush1.bf16.msra.mxu0 %v896
          %926 = vmatprep.subr.bf16.mxu0 0
          %927 = vmatpush1.bf16.msra.mxu0 %v895
          %928 = vmatprep.subr.bf16.mxu0 0
          %929 = vmatpush2.bf16.msra.mxu0 0
          %930 = vmatprep.subr.bf16.mxu0 0
          %931 = vmatpush2.bf16.msra.mxu0 0
          %932 = vmatprep.subr.bf16.mxu0 0
          %933 = vmatpush2.bf16.msra.mxu0 0
          %934 = vmatprep.subr.bf16.mxu0 0
          %935 = vmatpush2.bf16.msra.mxu0 0
          %936 = vmatprep.subr.bf16.mxu0 0
          %937 = vmatpush2.bf16.msra.mxu0 0
          %938 = vmatprep.subr.bf16.mxu0 0
          %939 = vmatpush2.bf16.msra.mxu0 0
          %940 = vmatprep.subr.bf16.mxu0 0
          %941 = vmatpush2.bf16.msra.mxu0 0
          %942 = vmatprep.subr.bf16.mxu0 0
          %943 = vmatpush2.bf16.msra.mxu0 0
          %944 = vmatprep.mubr.bf16.mxu0 0
          %945 = vmatmul.mubr.bf16.gmra.mxu0 %v901
          %v946 = vpop.f32.mrf.mxu0
          %v947 = vadd.f32 0.0, %v946
          %v948 = vpop.f32.mrf.mxu0
          %v949 = vpop.f32.mrf.mxu0
          %v950 = vadd.f32 0.0, %v949
          %v951 = vpop.f32.mrf.mxu0
          %952 = vmatprep.mubr.bf16.mxu0 0
          %953 = vmatmul.mubr.bf16.gmra.mxu0 %v904
          %v954 = vpop.f32.mrf.mxu0
          %v955 = vadd.f32 0.0, %v954
          %v956 = vpop.f32.mrf.mxu0
          %v957 = vpop.f32.mrf.mxu0
          %v958 = vadd.f32 0.0, %v957
          %v959 = vpop.f32.mrf.mxu0
          %960 = vmatprep.mubr.bf16.mxu0 0
          %961 = vmatmul.mubr.bf16.gmra.mxu0 %v907
          %v962 = vpop.f32.mrf.mxu0
          %v963 = vadd.f32 0.0, %v962
          %v964 = vpop.f32.mrf.mxu0
          %v965 = vpop.f32.mrf.mxu0
          %v966 = vadd.f32 0.0, %v965
          %v967 = vpop.f32.mrf.mxu0
          %968 = vmatprep.mubr.bf16.mxu0 0
          %969 = vmatmul.mubr.bf16.gmra.mxu0 %v910
          %v970 = vpop.f32.mrf.mxu0
          %v971 = vadd.f32 0.0, %v970
          %v972 = vpop.f32.mrf.mxu0
          %v973 = vpop.f32.mrf.mxu0
          %v974 = vadd.f32 0.0, %v973
          %v975 = vpop.f32.mrf.mxu0
          %976 = vdwg.mxu0
          %v977 = vld [vmem:[#allocation5] sm:$0xf]
          %v978 = vld [vmem:[#allocation5 + $0x4] sm:$0xf]
          %v979 = vld [vmem:[#allocation5 + $0x8] sm:$0xf]
          %v980 = vld [vmem:[#allocation5 + $0xc] sm:$0xf]
          %v981 = vld [vmem:[#allocation5 + $0x10] sm:$0xf]
          %v982 = vld [vmem:[#allocation5 + $0x14] sm:$0xf]
          %v983 = vld [vmem:[#allocation5 + $0x18] sm:$0xf]
          %v984 = vld [vmem:[#allocation5 + $0x1c] sm:$0xf]
          %v985 = vunpack.c.l.bf16 %v977
          %v986 = vunpack.c.l.bf16 %v978
          %v987 = vunpack.c.l.bf16 %v979
          %v988 = vunpack.c.l.bf16 %v980
          %v989 = vunpack.c.l.bf16 %v981
          %v990 = vunpack.c.l.bf16 %v982
          %v991 = vunpack.c.l.bf16 %v983
          %v992 = vunpack.c.l.bf16 %v984
          %v993 = vadd.f32 %v947, %v985
          %v994 = vadd.f32 %v950, %v986
          %v995 = vadd.f32 %v955, %v987
          %v996 = vadd.f32 %v958, %v988
          %v997 = vadd.f32 %v963, %v989
          %v998 = vadd.f32 %v966, %v990
          %v999 = vadd.f32 %v971, %v991
          %v1000 = vadd.f32 %v974, %v992
          %1001 = vst.msk [vmem:[#allocation2] sm:$0xff] %vm899, %v993
          %1002 = vst.msk [vmem:[#allocation2 + $0x8] sm:$0xff] %vm899, %v994
          %1003 = vst.msk [vmem:[#allocation2 + $0x10] sm:$0xff] %vm899, %v995
          %1004 = vst.msk [vmem:[#allocation2 + $0x18] sm:$0xff] %vm899, %v996
          %1005 = vst.msk [vmem:[#allocation2 + $0x20] sm:$0xff] %vm899, %v997
          %1006 = vst.msk [vmem:[#allocation2 + $0x28] sm:$0xff] %vm899, %v998
          %1007 = vst.msk [vmem:[#allocation2 + $0x30] sm:$0xff] %vm899, %v999
          %1008 = vst.msk [vmem:[#allocation2 + $0x38] sm:$0xff] %vm899, %v1000
        $region108: #{_lambda_.1} parent=87 // pred_fallthru
          _
        %v1009 = vld [vmem:[#allocation2] sm:$0xff]
        %v1010 = vld [vmem:[#allocation2 + $0x8] sm:$0xff]
        %v1011 = vld [vmem:[#allocation2 + $0x10] sm:$0xff]
        %v1012 = vld [vmem:[#allocation2 + $0x18] sm:$0xff]
        %v1013 = vld [vmem:[#allocation2 + $0x20] sm:$0xff]
        %v1014 = vld [vmem:[#allocation2 + $0x28] sm:$0xff]
        %v1015 = vld [vmem:[#allocation2 + $0x30] sm:$0xff]
        %v1016 = vld [vmem:[#allocation2 + $0x38] sm:$0xff]
        %v1017 = vlaneseq
        %v1018 = vshrl.u32 %v1017, 7
        %v1019 = vadd.s32 %v1018, 8
        %v1020 = vadd.s32 %v1018, 16
        %v1021 = vadd.s32 %v1018, 24
        %v1022 = vadd.s32 %v1018, 32
        %v1023 = vadd.s32 %v1018, 40
        %v1024 = vadd.s32 %v1018, 48
        %v1025 = vadd.s32 %v1018, 56
        %v1026 = vlaneseq
        %v1027 = vand.u32 %v1026, 127
        %vm1028 = vcmp.ge.s32.totalorder %v1018, %v1027
        %vm1029 = vcmp.ge.s32.totalorder %v1019, %v1027
        %vm1030 = vcmp.ge.s32.totalorder %v1020, %v1027
        %vm1031 = vcmp.ge.s32.totalorder %v1021, %v1027
        %vm1032 = vcmp.ge.s32.totalorder %v1022, %v1027
        %vm1033 = vcmp.ge.s32.totalorder %v1023, %v1027
        %vm1034 = vcmp.ge.s32.totalorder %v1024, %v1027
        %vm1035 = vcmp.ge.s32.totalorder %v1025, %v1027
        %v1036 = vld [vmem:[%s774] sm:$0x1]
        %v1037 = vld [vmem:[%s777] sm:$0x1]
        %vm1038 = vcmask 261120
        %v1039 = vsel %vm1038, %v1009, 0.0
        %1040 = vadd.xlane.f32.xlu0 %v1039
        %v1041 = vpop.xlane.xlu0 %1040
        %v1042 = vsel %vm1038, %v1010, 0.0
        %1043 = vadd.xlane.f32.xlu0 %v1042
        %v1044 = vpop.xlane.xlu0 %1043
        %v1045 = vsel %vm1038, %v1011, 0.0
        %1046 = vadd.xlane.f32.xlu0 %v1045
        %v1047 = vpop.xlane.xlu0 %1046
        %v1048 = vsel %vm1038, %v1012, 0.0
        %1049 = vadd.xlane.f32.xlu0 %v1048
        %v1050 = vpop.xlane.xlu0 %1049
        %v1051 = vsel %vm1038, %v1013, 0.0
        %1052 = vadd.xlane.f32.xlu0 %v1051
        %v1053 = vpop.xlane.xlu0 %1052
        %v1054 = vsel %vm1038, %v1014, 0.0
        %1055 = vadd.xlane.f32.xlu0 %v1054
        %v1056 = vpop.xlane.xlu0 %1055
        %v1057 = vsel %vm1038, %v1015, 0.0
        %1058 = vadd.xlane.f32.xlu0 %v1057
        %v1059 = vpop.xlane.xlu0 %1058
        %v1060 = vsel %vm1038, %v1016, 0.0
        %1061 = vadd.xlane.f32.xlu0 %v1060
        %v1062 = vpop.xlane.xlu0 %1061
        %v1063 = vrcp.pop 32.0
        %v1064 = vmul.f32 %v1041, %v1063
        %v1065 = vmul.f32 %v1044, %v1063
        %v1066 = vmul.f32 %v1047, %v1063
        %v1067 = vmul.f32 %v1050, %v1063
        %v1068 = vmul.f32 %v1053, %v1063
        %v1069 = vmul.f32 %v1056, %v1063
        %v1070 = vmul.f32 %v1059, %v1063
        %v1071 = vmul.f32 %v1062, %v1063
        %v1072 = vsub.f32 %v1009, %v1064
        %v1073 = vsub.f32 %v1010, %v1065
        %v1074 = vsub.f32 %v1011, %v1066
        %v1075 = vsub.f32 %v1012, %v1067
        %v1076 = vsub.f32 %v1013, %v1068
        %v1077 = vsub.f32 %v1014, %v1069
        %v1078 = vsub.f32 %v1015, %v1070
        %v1079 = vsub.f32 %v1016, %v1071
        %v1080 = vmul.f32 %v1072, %v1072
        %v1081 = vmul.f32 %v1073, %v1073
        %v1082 = vmul.f32 %v1074, %v1074
        %v1083 = vmul.f32 %v1075, %v1075
        %v1084 = vmul.f32 %v1076, %v1076
        %v1085 = vmul.f32 %v1077, %v1077
        %v1086 = vmul.f32 %v1078, %v1078
        %v1087 = vmul.f32 %v1079, %v1079
        %v1088 = vsel %vm1038, %v1080, 0.0
        %1089 = vadd.xlane.f32.xlu0 %v1088
        %v1090 = vpop.xlane.xlu0 %1089
        %v1091 = vsel %vm1038, %v1081, 0.0
        %1092 = vadd.xlane.f32.xlu0 %v1091
        %v1093 = vpop.xlane.xlu0 %1092
        %v1094 = vsel %vm1038, %v1082, 0.0
        %1095 = vadd.xlane.f32.xlu0 %v1094
        %v1096 = vpop.xlane.xlu0 %1095
        %v1097 = vsel %vm1038, %v1083, 0.0
        %1098 = vadd.xlane.f32.xlu0 %v1097
        %v1099 = vpop.xlane.xlu0 %1098
        %v1100 = vsel %vm1038, %v1084, 0.0
        %1101 = vadd.xlane.f32.xlu0 %v1100
        %v1102 = vpop.xlane.xlu0 %1101
        %v1103 = vsel %vm1038, %v1085, 0.0
        %1104 = vadd.xlane.f32.xlu0 %v1103
        %v1105 = vpop.xlane.xlu0 %1104
        %v1106 = vsel %vm1038, %v1086, 0.0
        %1107 = vadd.xlane.f32.xlu0 %v1106
        %v1108 = vpop.xlane.xlu0 %1107
        %v1109 = vsel %vm1038, %v1087, 0.0
        %1110 = vadd.xlane.f32.xlu0 %v1109
        %v1111 = vpop.xlane.xlu0 %1110
        %v1112 = vmul.f32 %v1090, %v1063
        %v1113 = vmul.f32 %v1093, %v1063
        %v1114 = vmul.f32 %v1096, %v1063
        %v1115 = vmul.f32 %v1099, %v1063
        %v1116 = vmul.f32 %v1102, %v1063
        %v1117 = vmul.f32 %v1105, %v1063
        %v1118 = vmul.f32 %v1108, %v1063
        %v1119 = vmul.f32 %v1111, %v1063
        %v1120 = vadd.f32 %v1112, 1e-05
        %v1121 = vadd.f32 %v1113, 1e-05
        %v1122 = vadd.f32 %v1114, 1e-05
        %v1123 = vadd.f32 %v1115, 1e-05
        %v1124 = vadd.f32 %v1116, 1e-05
        %v1125 = vadd.f32 %v1117, 1e-05
        %v1126 = vadd.f32 %v1118, 1e-05
        %v1127 = vadd.f32 %v1119, 1e-05
        %v1128 = vrsqrt.pop %v1120
        %v1129 = vrsqrt.pop %v1121
        %v1130 = vrsqrt.pop %v1122
        %v1131 = vrsqrt.pop %v1123
        %v1132 = vrsqrt.pop %v1124
        %v1133 = vrsqrt.pop %v1125
        %v1134 = vrsqrt.pop %v1126
        %v1135 = vrsqrt.pop %v1127
        %v1136 = vmul.f32 %v1072, %v1128
        %v1137 = vmul.f32 %v1073, %v1129
        %v1138 = vmul.f32 %v1074, %v1130
        %v1139 = vmul.f32 %v1075, %v1131
        %v1140 = vmul.f32 %v1076, %v1132
        %v1141 = vmul.f32 %v1077, %v1133
        %v1142 = vmul.f32 %v1078, %v1134
        %v1143 = vmul.f32 %v1079, %v1135
        %v1145 = vlaneseq
        %v1146 = vshrl.u32 %v1145, 7
        %v1147 = vsub.s32 0, %v1146
        %v1148 = vrot.slane %v1036, %v1147
        %v1150 = vmul.f32 %v1136, %v1148
        %v1151 = vmul.f32 %v1137, %v1148
        %v1152 = vmul.f32 %v1138, %v1148
        %v1153 = vmul.f32 %v1139, %v1148
        %v1154 = vmul.f32 %v1140, %v1148
        %v1155 = vmul.f32 %v1141, %v1148
        %v1156 = vmul.f32 %v1142, %v1148
        %v1157 = vmul.f32 %v1143, %v1148
        %v1159 = vlaneseq
        %v1160 = vshrl.u32 %v1159, 7
        %v1161 = vsub.s32 0, %v1160
        %v1162 = vrot.slane %v1037, %v1161
        %v1164 = vadd.f32 %v1150, %v1162
        %v1165 = vadd.f32 %v1151, %v1162
        %v1166 = vadd.f32 %v1152, %v1162
        %v1167 = vadd.f32 %v1153, %v1162
        %v1168 = vadd.f32 %v1154, %v1162
        %v1169 = vadd.f32 %v1155, %v1162
        %v1170 = vadd.f32 %v1156, %v1162
        %v1171 = vadd.f32 %v1157, %v1162
        %v1172 = vpack.c.bf16 %v1165, %v1164
        %v1173 = vpack.c.bf16 %v1167, %v1166
        %v1174 = vpack.c.bf16 %v1169, %v1168
        %v1175 = vpack.c.bf16 %v1171, %v1170
        %v1176 = vld [vmem:[%s782] sm:$0xf]
        %v1177 = vld [vmem:[%s782 + $0x4] sm:$0xf]
        %v1178 = vld [vmem:[%s782 + $0x8] sm:$0xf]
        %v1179 = vld [vmem:[%s782 + $0xc] sm:$0xf]
        %v1180 = vld [vmem:[%s785] sm:$0x1]
        %v1182 = vlaneseq
        %v1183 = vshrl.u32 %v1182, 7
        %v1184 = vsub.s32 0, %v1183
        %v1185 = vrot.slane %v1180, %v1184
        %v1191 = vunpack.c.l.b16 %v1176
        %v1192 = vunpack.c.l.b16 %v1177
        %v1193 = vunpack.c.l.b16 %v1178
        %v1194 = vunpack.c.l.b16 %v1179
        %v1195 = vpack.c.b16 %v1192, %v1191
        %v1196 = vpack.c.b16 %v1194, %v1193
        %v1200 = vsel %vm1038, %v1172, 0
        %v1203 = vsel %vm1038, %v1173, 0
        %v1206 = vsel %vm1038, %v1174, 0
        %v1209 = vsel %vm1038, %v1175, 0
        %1211 = vmatprep.subr.bf16.mxu0 0
        %1212 = vmatpush1.bf16.msra.mxu0 0
        %1213 = vmatprep.subr.bf16.mxu0 0
        %1214 = vmatpush1.bf16.msra.mxu0 0
        %1215 = vmatprep.subr.bf16.mxu0 0
        %1216 = vmatpush1.bf16.msra.mxu0 0
        %1217 = vmatprep.subr.bf16.mxu0 0
        %1218 = vmatpush1.bf16.msra.mxu0 0
        %1219 = vmatprep.subr.bf16.mxu0 0
        %1220 = vmatpush1.bf16.msra.mxu0 0
        %1221 = vmatprep.subr.bf16.mxu0 0
        %1222 = vmatpush1.bf16.msra.mxu0 0
        %1223 = vmatprep.subr.bf16.mxu0 0
        %1224 = vmatpush1.bf16.msra.mxu0 %v1196
        %1225 = vmatprep.subr.bf16.mxu0 0
        %1226 = vmatpush1.bf16.msra.mxu0 %v1195
        %1227 = vmatprep.subr.bf16.mxu0 0
        %1228 = vmatpush2.bf16.msra.mxu0 0
        %1229 = vmatprep.subr.bf16.mxu0 0
        %1230 = vmatpush2.bf16.msra.mxu0 0
        %1231 = vmatprep.subr.bf16.mxu0 0
        %1232 = vmatpush2.bf16.msra.mxu0 0
        %1233 = vmatprep.subr.bf16.mxu0 0
        %1234 = vmatpush2.bf16.msra.mxu0 0
        %1235 = vmatprep.subr.bf16.mxu0 0
        %1236 = vmatpush2.bf16.msra.mxu0 0
        %1237 = vmatprep.subr.bf16.mxu0 0
        %1238 = vmatpush2.bf16.msra.mxu0 0
        %1239 = vmatprep.subr.bf16.mxu0 0
        %1240 = vmatpush2.bf16.msra.mxu0 0
        %1241 = vmatprep.subr.bf16.mxu0 0
        %1242 = vmatpush2.bf16.msra.mxu0 0
        %1243 = vmatprep.mubr.bf16.mxu0 0
        %1244 = vmatmul.mubr.bf16.gmra.mxu0 %v1200
        %v1245 = vpop.f32.mrf.mxu0
        %v1246 = vadd.f32 %v1185, %v1245
        %v1247 = vpop.f32.mrf.mxu0
        %v1248 = vpop.f32.mrf.mxu0
        %v1249 = vadd.f32 %v1185, %v1248
        %v1250 = vpop.f32.mrf.mxu0
        %1251 = vmatprep.mubr.bf16.mxu0 0
        %1252 = vmatmul.mubr.bf16.gmra.mxu0 %v1203
        %v1253 = vpop.f32.mrf.mxu0
        %v1254 = vadd.f32 %v1185, %v1253
        %v1255 = vpop.f32.mrf.mxu0
        %v1256 = vpop.f32.mrf.mxu0
        %v1257 = vadd.f32 %v1185, %v1256
        %v1258 = vpop.f32.mrf.mxu0
        %1259 = vmatprep.mubr.bf16.mxu0 0
        %1260 = vmatmul.mubr.bf16.gmra.mxu0 %v1206
        %v1261 = vpop.f32.mrf.mxu0
        %v1262 = vadd.f32 %v1185, %v1261
        %v1263 = vpop.f32.mrf.mxu0
        %v1264 = vpop.f32.mrf.mxu0
        %v1265 = vadd.f32 %v1185, %v1264
        %v1266 = vpop.f32.mrf.mxu0
        %1267 = vmatprep.mubr.bf16.mxu0 0
        %1268 = vmatmul.mubr.bf16.gmra.mxu0 %v1209
        %v1269 = vpop.f32.mrf.mxu0
        %v1270 = vadd.f32 %v1185, %v1269
        %v1271 = vpop.f32.mrf.mxu0
        %v1272 = vpop.f32.mrf.mxu0
        %v1273 = vadd.f32 %v1185, %v1272
        %v1274 = vpop.f32.mrf.mxu0
        %1275 = vdwg.mxu0
        %v1276 = vpack.c.bf16 %v1249, %v1246
        %v1277 = vpack.c.bf16 %v1257, %v1254
        %v1278 = vpack.c.bf16 %v1265, %v1262
        %v1279 = vpack.c.bf16 %v1273, %v1270
        %1284 = vrot.lane.b32.xlu0 %v1276, 120
        %v1285 = vpop.permute.xlu0 %1284
        %1286 = vrot.lane.b32.xlu0 %v1277, 120
        %v1287 = vpop.permute.xlu0 %1286
        %1288 = vrot.lane.b32.xlu0 %v1278, 120
        %v1289 = vpop.permute.xlu0 %1288
        %1290 = vrot.lane.b32.xlu0 %v1279, 120
        %v1291 = vpop.permute.xlu0 %1290
        %1292 = vrot.lane.b32.xlu0 %v1276, 112
        %v1293 = vpop.permute.xlu0 %1292
        %1294 = vrot.lane.b32.xlu0 %v1277, 112
        %v1295 = vpop.permute.xlu0 %1294
        %1296 = vrot.lane.b32.xlu0 %v1278, 112
        %v1297 = vpop.permute.xlu0 %1296
        %1298 = vrot.lane.b32.xlu0 %v1279, 112
        %v1299 = vpop.permute.xlu0 %1298
        %1300 = vrot.lane.b32.xlu0 %v1276, 104
        %v1301 = vpop.permute.xlu0 %1300
        %1302 = vrot.lane.b32.xlu0 %v1277, 104
        %v1303 = vpop.permute.xlu0 %1302
        %1304 = vrot.lane.b32.xlu0 %v1278, 104
        %v1305 = vpop.permute.xlu0 %1304
        %1306 = vrot.lane.b32.xlu0 %v1279, 104
        %v1307 = vpop.permute.xlu0 %1306
        %1308 = vrot.lane.b32.xlu0 %v1276, 96
        %v1309 = vpop.permute.xlu0 %1308
        %1310 = vrot.lane.b32.xlu0 %v1277, 96
        %v1311 = vpop.permute.xlu0 %1310
        %1312 = vrot.lane.b32.xlu0 %v1278, 96
        %v1313 = vpop.permute.xlu0 %1312
        %1314 = vrot.lane.b32.xlu0 %v1279, 96
        %v1315 = vpop.permute.xlu0 %1314
        %vm1316 = vcmask 64512
        %v1318 = vsel %vm1316, %v1276, 0
        %v1321 = vsel %vm1316, %v1277, 0
        %v1324 = vsel %vm1316, %v1278, 0
        %v1327 = vsel %vm1316, %v1279, 0
        %v1330 = vsel %vm1316, %v1309, 0
        %v1333 = vsel %vm1316, %v1311, 0
        %v1336 = vsel %vm1316, %v1313, 0
        %v1339 = vsel %vm1316, %v1315, 0
        %1341 = vmatprep.subr.bf16.mxu0 0
        %1342 = vmatpush1.bf16.xpose.msra.mxu0 0
        %1343 = vmatprep.subr.bf16.mxu0 0
        %1344 = vmatpush1.bf16.xpose.msra.mxu0 0
        %1345 = vmatprep.subr.bf16.mxu0 0
        %1346 = vmatpush1.bf16.xpose.msra.mxu0 0
        %1347 = vmatprep.subr.bf16.mxu0 0
        %1348 = vmatpush1.bf16.xpose.msra.mxu0 0
        %1349 = vmatprep.subr.bf16.mxu0 0
        %1350 = vmatpush1.bf16.xpose.msra.mxu0 %v1339
        %1351 = vmatprep.subr.bf16.mxu0 0
        %1352 = vmatpush1.bf16.xpose.msra.mxu0 %v1336
        %1353 = vmatprep.subr.bf16.mxu0 0
        %1354 = vmatpush1.bf16.xpose.msra.mxu0 %v1333
        %1355 = vmatprep.subr.bf16.mxu0 0
        %1356 = vmatpush1.bf16.xpose.msra.mxu0 %v1330
        %1357 = vmatprep.subr.bf16.mxu0 0
        %1358 = vmatpush2.bf16.xpose.msra.mxu0 0
        %1359 = vmatprep.subr.bf16.mxu0 0
        %1360 = vmatpush2.bf16.xpose.msra.mxu0 0
        %1361 = vmatprep.subr.bf16.mxu0 0
        %1362 = vmatpush2.bf16.xpose.msra.mxu0 0
        %1363 = vmatprep.subr.bf16.mxu0 0
        %1364 = vmatpush2.bf16.xpose.msra.mxu0 0
        %1365 = vmatprep.subr.bf16.mxu0 0
        %1366 = vmatpush2.bf16.xpose.msra.mxu0 0
        %1367 = vmatprep.subr.bf16.mxu0 0
        %1368 = vmatpush2.bf16.xpose.msra.mxu0 0
        %1369 = vmatprep.subr.bf16.mxu0 0
        %1370 = vmatpush2.bf16.xpose.msra.mxu0 0
        %1371 = vmatprep.subr.bf16.mxu0 0
        %1372 = vmatpush2.bf16.xpose.msra.mxu0 0
        %1373 = vmatprep.mubr.bf16.mxu0 0
        %1374 = vmatmul.mubr.bf16.gmra.mxu0 %v1318
        %v1375 = vpop.f32.mrf.mxu0
        %v1376 = vadd.f32 0.0, %v1375
        %v1377 = vpop.f32.mrf.mxu0
        %v1378 = vpop.f32.mrf.mxu0
        %v1379 = vadd.f32 0.0, %v1378
        %v1380 = vpop.f32.mrf.mxu0
        %1381 = vmatprep.mubr.bf16.mxu0 0
        %1382 = vmatmul.mubr.bf16.gmra.mxu0 %v1321
        %v1383 = vpop.f32.mrf.mxu0
        %v1384 = vadd.f32 0.0, %v1383
        %v1385 = vpop.f32.mrf.mxu0
        %v1386 = vpop.f32.mrf.mxu0
        %v1387 = vadd.f32 0.0, %v1386
        %v1388 = vpop.f32.mrf.mxu0
        %1389 = vmatprep.mubr.bf16.mxu0 0
        %1390 = vmatmul.mubr.bf16.gmra.mxu0 %v1324
        %v1391 = vpop.f32.mrf.mxu0
        %v1392 = vadd.f32 0.0, %v1391
        %v1393 = vpop.f32.mrf.mxu0
        %v1394 = vpop.f32.mrf.mxu0
        %v1395 = vadd.f32 0.0, %v1394
        %v1396 = vpop.f32.mrf.mxu0
        %1397 = vmatprep.mubr.bf16.mxu0 0
        %1398 = vmatmul.mubr.bf16.gmra.mxu0 %v1327
        %v1399 = vpop.f32.mrf.mxu0
        %v1400 = vadd.f32 0.0, %v1399
        %v1401 = vpop.f32.mrf.mxu0
        %v1402 = vpop.f32.mrf.mxu0
        %v1403 = vadd.f32 0.0, %v1402
        %v1404 = vpop.f32.mrf.mxu0
        %1405 = vdwg.mxu0
        %1406 = vrot.lane.b32.xlu0 %v1285, 96
        %v1407 = vpop.permute.xlu0 %1406
        %1408 = vrot.lane.b32.xlu0 %v1287, 96
        %v1409 = vpop.permute.xlu0 %1408
        %1410 = vrot.lane.b32.xlu0 %v1289, 96
        %v1411 = vpop.permute.xlu0 %1410
        %1412 = vrot.lane.b32.xlu0 %v1291, 96
        %v1413 = vpop.permute.xlu0 %1412
        %v1415 = vsel %vm1316, %v1285, 0
        %v1418 = vsel %vm1316, %v1287, 0
        %v1421 = vsel %vm1316, %v1289, 0
        %v1424 = vsel %vm1316, %v1291, 0
        %v1427 = vsel %vm1316, %v1407, 0
        %v1430 = vsel %vm1316, %v1409, 0
        %v1433 = vsel %vm1316, %v1411, 0
        %v1436 = vsel %vm1316, %v1413, 0
        %1438 = vmatprep.subr.bf16.mxu0 0
        %1439 = vmatpush1.bf16.xpose.msra.mxu0 0
        %1440 = vmatprep.subr.bf16.mxu0 0
        %1441 = vmatpush1.bf16.xpose.msra.mxu0 0
        %1442 = vmatprep.subr.bf16.mxu0 0
        %1443 = vmatpush1.bf16.xpose.msra.mxu0 0
        %1444 = vmatprep.subr.bf16.mxu0 0
        %1445 = vmatpush1.bf16.xpose.msra.mxu0 0
        %1446 = vmatprep.subr.bf16.mxu0 0
        %1447 = vmatpush1.bf16.xpose.msra.mxu0 %v1436
        %1448 = vmatprep.subr.bf16.mxu0 0
        %1449 = vmatpush1.bf16.xpose.msra.mxu0 %v1433
        %1450 = vmatprep.subr.bf16.mxu0 0
        %1451 = vmatpush1.bf16.xpose.msra.mxu0 %v1430
        %1452 = vmatprep.subr.bf16.mxu0 0
        %1453 = vmatpush1.bf16.xpose.msra.mxu0 %v1427
        %1454 = vmatprep.subr.bf16.mxu0 0
        %1455 = vmatpush2.bf16.xpose.msra.mxu0 0
        %1456 = vmatprep.subr.bf16.mxu0 0
        %1457 = vmatpush2.bf16.xpose.msra.mxu0 0
        %1458 = vmatprep.subr.bf16.mxu0 0
        %1459 = vmatpush2.bf16.xpose.msra.mxu0 0
        %1460 = vmatprep.subr.bf16.mxu0 0
        %1461 = vmatpush2.bf16.xpose.msra.mxu0 0
        %1462 = vmatprep.subr.bf16.mxu0 0
        %1463 = vmatpush2.bf16.xpose.msra.mxu0 0
        %1464 = vmatprep.subr.bf16.mxu0 0
        %1465 = vmatpush2.bf16.xpose.msra.mxu0 0
        %1466 = vmatprep.subr.bf16.mxu0 0
        %1467 = vmatpush2.bf16.xpose.msra.mxu0 0
        %1468 = vmatprep.subr.bf16.mxu0 0
        %1469 = vmatpush2.bf16.xpose.msra.mxu0 0
        %1470 = vmatprep.mubr.bf16.mxu0 0
        %1471 = vmatmul.mubr.bf16.gmra.mxu0 %v1415
        %v1472 = vpop.f32.mrf.mxu0
        %v1473 = vadd.f32 0.0, %v1472
        %v1474 = vpop.f32.mrf.mxu0
        %v1475 = vpop.f32.mrf.mxu0
        %v1476 = vadd.f32 0.0, %v1475
        %v1477 = vpop.f32.mrf.mxu0
        %1478 = vmatprep.mubr.bf16.mxu0 0
        %1479 = vmatmul.mubr.bf16.gmra.mxu0 %v1418
        %v1480 = vpop.f32.mrf.mxu0
        %v1481 = vadd.f32 0.0, %v1480
        %v1482 = vpop.f32.mrf.mxu0
        %v1483 = vpop.f32.mrf.mxu0
        %v1484 = vadd.f32 0.0, %v1483
        %v1485 = vpop.f32.mrf.mxu0
        %1486 = vmatprep.mubr.bf16.mxu0 0
        %1487 = vmatmul.mubr.bf16.gmra.mxu0 %v1421
        %v1488 = vpop.f32.mrf.mxu0
        %v1489 = vadd.f32 0.0, %v1488
        %v1490 = vpop.f32.mrf.mxu0
        %v1491 = vpop.f32.mrf.mxu0
        %v1492 = vadd.f32 0.0, %v1491
        %v1493 = vpop.f32.mrf.mxu0
        %1494 = vmatprep.mubr.bf16.mxu0 0
        %1495 = vmatmul.mubr.bf16.gmra.mxu0 %v1424
        %v1496 = vpop.f32.mrf.mxu0
        %v1497 = vadd.f32 0.0, %v1496
        %v1498 = vpop.f32.mrf.mxu0
        %v1499 = vpop.f32.mrf.mxu0
        %v1500 = vadd.f32 0.0, %v1499
        %v1501 = vpop.f32.mrf.mxu0
        %1502 = vdwg.mxu0
        %1503 = vrot.lane.b32.xlu0 %v1293, 96
        %v1504 = vpop.permute.xlu0 %1503
        %1505 = vrot.lane.b32.xlu0 %v1295, 96
        %v1506 = vpop.permute.xlu0 %1505
        %1507 = vrot.lane.b32.xlu0 %v1297, 96
        %v1508 = vpop.permute.xlu0 %1507
        %1509 = vrot.lane.b32.xlu0 %v1299, 96
        %v1510 = vpop.permute.xlu0 %1509
        %v1512 = vsel %vm1316, %v1293, 0
        %v1515 = vsel %vm1316, %v1295, 0
        %v1518 = vsel %vm1316, %v1297, 0
        %v1521 = vsel %vm1316, %v1299, 0
        %v1524 = vsel %vm1316, %v1504, 0
        %v1527 = vsel %vm1316, %v1506, 0
        %v1530 = vsel %vm1316, %v1508, 0
        %v1533 = vsel %vm1316, %v1510, 0
        %1535 = vmatprep.subr.bf16.mxu0 0
        %1536 = vmatpush1.bf16.xpose.msra.mxu0 0
        %1537 = vmatprep.subr.bf16.mxu0 0
        %1538 = vmatpush1.bf16.xpose.msra.mxu0 0
        %1539 = vmatprep.subr.bf16.mxu0 0
        %1540 = vmatpush1.bf16.xpose.msra.mxu0 0
        %1541 = vmatprep.subr.bf16.mxu0 0
        %1542 = vmatpush1.bf16.xpose.msra.mxu0 0
        %1543 = vmatprep.subr.bf16.mxu0 0
        %1544 = vmatpush1.bf16.xpose.msra.mxu0 %v1533
        %1545 = vmatprep.subr.bf16.mxu0 0
        %1546 = vmatpush1.bf16.xpose.msra.mxu0 %v1530
        %1547 = vmatprep.subr.bf16.mxu0 0
        %1548 = vmatpush1.bf16.xpose.msra.mxu0 %v1527
        %1549 = vmatprep.subr.bf16.mxu0 0
        %1550 = vmatpush1.bf16.xpose.msra.mxu0 %v1524
        %1551 = vmatprep.subr.bf16.mxu0 0
        %1552 = vmatpush2.bf16.xpose.msra.mxu0 0
        %1553 = vmatprep.subr.bf16.mxu0 0
        %1554 = vmatpush2.bf16.xpose.msra.mxu0 0
        %1555 = vmatprep.subr.bf16.mxu0 0
        %1556 = vmatpush2.bf16.xpose.msra.mxu0 0
        %1557 = vmatprep.subr.bf16.mxu0 0
        %1558 = vmatpush2.bf16.xpose.msra.mxu0 0
        %1559 = vmatprep.subr.bf16.mxu0 0
        %1560 = vmatpush2.bf16.xpose.msra.mxu0 0
        %1561 = vmatprep.subr.bf16.mxu0 0
        %1562 = vmatpush2.bf16.xpose.msra.mxu0 0
        %1563 = vmatprep.subr.bf16.mxu0 0
        %1564 = vmatpush2.bf16.xpose.msra.mxu0 0
        %1565 = vmatprep.subr.bf16.mxu0 0
        %1566 = vmatpush2.bf16.xpose.msra.mxu0 0
        %1567 = vmatprep.mubr.bf16.mxu0 0
        %1568 = vmatmul.mubr.bf16.gmra.mxu0 %v1512
        %v1569 = vpop.f32.mrf.mxu0
        %v1570 = vadd.f32 0.0, %v1569
        %v1571 = vpop.f32.mrf.mxu0
        %v1572 = vpop.f32.mrf.mxu0
        %v1573 = vadd.f32 0.0, %v1572
        %v1574 = vpop.f32.mrf.mxu0
        %1575 = vmatprep.mubr.bf16.mxu0 0
        %1576 = vmatmul.mubr.bf16.gmra.mxu0 %v1515
        %v1577 = vpop.f32.mrf.mxu0
        %v1578 = vadd.f32 0.0, %v1577
        %v1579 = vpop.f32.mrf.mxu0
        %v1580 = vpop.f32.mrf.mxu0
        %v1581 = vadd.f32 0.0, %v1580
        %v1582 = vpop.f32.mrf.mxu0
        %1583 = vmatprep.mubr.bf16.mxu0 0
        %1584 = vmatmul.mubr.bf16.gmra.mxu0 %v1518
        %v1585 = vpop.f32.mrf.mxu0
        %v1586 = vadd.f32 0.0, %v1585
        %v1587 = vpop.f32.mrf.mxu0
        %v1588 = vpop.f32.mrf.mxu0
        %v1589 = vadd.f32 0.0, %v1588
        %v1590 = vpop.f32.mrf.mxu0
        %1591 = vmatprep.mubr.bf16.mxu0 0
        %1592 = vmatmul.mubr.bf16.gmra.mxu0 %v1521
        %v1593 = vpop.f32.mrf.mxu0
        %v1594 = vadd.f32 0.0, %v1593
        %v1595 = vpop.f32.mrf.mxu0
        %v1596 = vpop.f32.mrf.mxu0
        %v1597 = vadd.f32 0.0, %v1596
        %v1598 = vpop.f32.mrf.mxu0
        %1599 = vdwg.mxu0
        %1600 = vrot.lane.b32.xlu0 %v1301, 96
        %v1601 = vpop.permute.xlu0 %1600
        %1602 = vrot.lane.b32.xlu0 %v1303, 96
        %v1603 = vpop.permute.xlu0 %1602
        %1604 = vrot.lane.b32.xlu0 %v1305, 96
        %v1605 = vpop.permute.xlu0 %1604
        %1606 = vrot.lane.b32.xlu0 %v1307, 96
        %v1607 = vpop.permute.xlu0 %1606
        %v1609 = vsel %vm1316, %v1301, 0
        %v1612 = vsel %vm1316, %v1303, 0
        %v1615 = vsel %vm1316, %v1305, 0
        %v1618 = vsel %vm1316, %v1307, 0
        %v1621 = vsel %vm1316, %v1601, 0
        %v1624 = vsel %vm1316, %v1603, 0
        %v1627 = vsel %vm1316, %v1605, 0
        %v1630 = vsel %vm1316, %v1607, 0
        %1632 = vmatprep.subr.bf16.mxu0 0
        %1633 = vmatpush1.bf16.xpose.msra.mxu0 0
        %1634 = vmatprep.subr.bf16.mxu0 0
        %1635 = vmatpush1.bf16.xpose.msra.mxu0 0
        %1636 = vmatprep.subr.bf16.mxu0 0
        %1637 = vmatpush1.bf16.xpose.msra.mxu0 0
        %1638 = vmatprep.subr.bf16.mxu0 0
        %1639 = vmatpush1.bf16.xpose.msra.mxu0 0
        %1640 = vmatprep.subr.bf16.mxu0 0
        %1641 = vmatpush1.bf16.xpose.msra.mxu0 %v1630
        %1642 = vmatprep.subr.bf16.mxu0 0
        %1643 = vmatpush1.bf16.xpose.msra.mxu0 %v1627
        %1644 = vmatprep.subr.bf16.mxu0 0
        %1645 = vmatpush1.bf16.xpose.msra.mxu0 %v1624
        %1646 = vmatprep.subr.bf16.mxu0 0
        %1647 = vmatpush1.bf16.xpose.msra.mxu0 %v1621
        %1648 = vmatprep.subr.bf16.mxu0 0
        %1649 = vmatpush2.bf16.xpose.msra.mxu0 0
        %1650 = vmatprep.subr.bf16.mxu0 0
        %1651 = vmatpush2.bf16.xpose.msra.mxu0 0
        %1652 = vmatprep.subr.bf16.mxu0 0
        %1653 = vmatpush2.bf16.xpose.msra.mxu0 0
        %1654 = vmatprep.subr.bf16.mxu0 0
        %1655 = vmatpush2.bf16.xpose.msra.mxu0 0
        %1656 = vmatprep.subr.bf16.mxu0 0
        %1657 = vmatpush2.bf16.xpose.msra.mxu0 0
        %1658 = vmatprep.subr.bf16.mxu0 0
        %1659 = vmatpush2.bf16.xpose.msra.mxu0 0
        %1660 = vmatprep.subr.bf16.mxu0 0
        %1661 = vmatpush2.bf16.xpose.msra.mxu0 0
        %1662 = vmatprep.subr.bf16.mxu0 0
        %1663 = vmatpush2.bf16.xpose.msra.mxu0 0
        %1664 = vmatprep.mubr.bf16.mxu0 0
        %1665 = vmatmul.mubr.bf16.gmra.mxu0 %v1609
        %v1666 = vpop.f32.mrf.mxu0
        %v1667 = vadd.f32 0.0, %v1666
        %v1668 = vpop.f32.mrf.mxu0
        %v1669 = vpop.f32.mrf.mxu0
        %v1670 = vadd.f32 0.0, %v1669
        %v1671 = vpop.f32.mrf.mxu0
        %1672 = vmatprep.mubr.bf16.mxu0 0
        %1673 = vmatmul.mubr.bf16.gmra.mxu0 %v1612
        %v1674 = vpop.f32.mrf.mxu0
        %v1675 = vadd.f32 0.0, %v1674
        %v1676 = vpop.f32.mrf.mxu0
        %v1677 = vpop.f32.mrf.mxu0
        %v1678 = vadd.f32 0.0, %v1677
        %v1679 = vpop.f32.mrf.mxu0
        %1680 = vmatprep.mubr.bf16.mxu0 0
        %1681 = vmatmul.mubr.bf16.gmra.mxu0 %v1615
        %v1682 = vpop.f32.mrf.mxu0
        %v1683 = vadd.f32 0.0, %v1682
        %v1684 = vpop.f32.mrf.mxu0
        %v1685 = vpop.f32.mrf.mxu0
        %v1686 = vadd.f32 0.0, %v1685
        %v1687 = vpop.f32.mrf.mxu0
        %1688 = vmatprep.mubr.bf16.mxu0 0
        %1689 = vmatmul.mubr.bf16.gmra.mxu0 %v1618
        %v1690 = vpop.f32.mrf.mxu0
        %v1691 = vadd.f32 0.0, %v1690
        %v1692 = vpop.f32.mrf.mxu0
        %v1693 = vpop.f32.mrf.mxu0
        %v1694 = vadd.f32 0.0, %v1693
        %v1695 = vpop.f32.mrf.mxu0
        %1696 = vdwg.mxu0
        %v1697 = vsel %vm1028, 1, 0
        %v1698 = vsel %vm1029, 1, 0
        %v1699 = vsel %vm1030, 1, 0
        %v1700 = vsel %vm1031, 1, 0
        %v1701 = vsel %vm1032, 1, 0
        %v1702 = vsel %vm1033, 1, 0
        %v1703 = vsel %vm1034, 1, 0
        %v1704 = vsel %vm1035, 1, 0
        %vm1705 = vcmp.eq.s32.totalorder %v1697, 1
        %vm1706 = vcmp.eq.s32.totalorder %v1698, 1
        %vm1707 = vcmp.eq.s32.totalorder %v1699, 1
        %vm1708 = vcmp.eq.s32.totalorder %v1700, 1
        %vm1709 = vcmp.eq.s32.totalorder %v1701, 1
        %vm1710 = vcmp.eq.s32.totalorder %v1702, 1
        %vm1711 = vcmp.eq.s32.totalorder %v1703, 1
        %vm1712 = vcmp.eq.s32.totalorder %v1704, 1
        %v1713 = vsel %vm1705, %v1376, -1e+30
        %v1714 = vsel %vm1706, %v1379, -1e+30
        %v1715 = vsel %vm1707, %v1384, -1e+30
        %v1716 = vsel %vm1708, %v1387, -1e+30
        %v1717 = vsel %vm1709, %v1392, -1e+30
        %v1718 = vsel %vm1710, %v1395, -1e+30
        %v1719 = vsel %vm1711, %v1400, -1e+30
        %v1720 = vsel %vm1712, %v1403, -1e+30
        %v1721 = vsel %vm1705, %v1473, -1e+30
        %v1722 = vsel %vm1706, %v1476, -1e+30
        %v1723 = vsel %vm1707, %v1481, -1e+30
        %v1724 = vsel %vm1708, %v1484, -1e+30
        %v1725 = vsel %vm1709, %v1489, -1e+30
        %v1726 = vsel %vm1710, %v1492, -1e+30
        %v1727 = vsel %vm1711, %v1497, -1e+30
        %v1728 = vsel %vm1712, %v1500, -1e+30
        %v1729 = vsel %vm1705, %v1570, -1e+30
        %v1730 = vsel %vm1706, %v1573, -1e+30
        %v1731 = vsel %vm1707, %v1578, -1e+30
        %v1732 = vsel %vm1708, %v1581, -1e+30
        %v1733 = vsel %vm1709, %v1586, -1e+30
        %v1734 = vsel %vm1710, %v1589, -1e+30
        %v1735 = vsel %vm1711, %v1594, -1e+30
        %v1736 = vsel %vm1712, %v1597, -1e+30
        %v1737 = vsel %vm1705, %v1667, -1e+30
        %v1738 = vsel %vm1706, %v1670, -1e+30
        %v1739 = vsel %vm1707, %v1675, -1e+30
        %v1740 = vsel %vm1708, %v1678, -1e+30
        %v1741 = vsel %vm1709, %v1683, -1e+30
        %v1742 = vsel %vm1710, %v1686, -1e+30
        %v1743 = vsel %vm1711, %v1691, -1e+30
        %v1744 = vsel %vm1712, %v1694, -1e+30
        %vm1745 = vcmask 523264
        %v1746 = vsel %vm1745, %v1713, -inf
        %1747 = vmax.xlane.f32.xlu0 %v1746
        %v1748 = vpop.xlane.xlu0 %1747
        %v1749 = vsel %vm1745, %v1714, -inf
        %1750 = vmax.xlane.f32.xlu0 %v1749
        %v1751 = vpop.xlane.xlu0 %1750
        %v1752 = vsel %vm1745, %v1715, -inf
        %1753 = vmax.xlane.f32.xlu0 %v1752
        %v1754 = vpop.xlane.xlu0 %1753
        %v1755 = vsel %vm1745, %v1716, -inf
        %1756 = vmax.xlane.f32.xlu0 %v1755
        %v1757 = vpop.xlane.xlu0 %1756
        %v1758 = vsel %vm1745, %v1717, -inf
        %1759 = vmax.xlane.f32.xlu0 %v1758
        %v1760 = vpop.xlane.xlu0 %1759
        %v1761 = vsel %vm1745, %v1718, -inf
        %1762 = vmax.xlane.f32.xlu0 %v1761
        %v1763 = vpop.xlane.xlu0 %1762
        %v1764 = vsel %vm1745, %v1719, -inf
        %1765 = vmax.xlane.f32.xlu0 %v1764
        %v1766 = vpop.xlane.xlu0 %1765
        %v1767 = vsel %vm1745, %v1720, -inf
        %1768 = vmax.xlane.f32.xlu0 %v1767
        %v1769 = vpop.xlane.xlu0 %1768
        %v1770 = vsel %vm1745, %v1721, -inf
        %1771 = vmax.xlane.f32.xlu0 %v1770
        %v1772 = vpop.xlane.xlu0 %1771
        %v1773 = vsel %vm1745, %v1722, -inf
        %1774 = vmax.xlane.f32.xlu0 %v1773
        %v1775 = vpop.xlane.xlu0 %1774
        %v1776 = vsel %vm1745, %v1723, -inf
        %1777 = vmax.xlane.f32.xlu0 %v1776
        %v1778 = vpop.xlane.xlu0 %1777
        %v1779 = vsel %vm1745, %v1724, -inf
        %1780 = vmax.xlane.f32.xlu0 %v1779
        %v1781 = vpop.xlane.xlu0 %1780
        %v1782 = vsel %vm1745, %v1725, -inf
        %1783 = vmax.xlane.f32.xlu0 %v1782
        %v1784 = vpop.xlane.xlu0 %1783
        %v1785 = vsel %vm1745, %v1726, -inf
        %1786 = vmax.xlane.f32.xlu0 %v1785
        %v1787 = vpop.xlane.xlu0 %1786
        %v1788 = vsel %vm1745, %v1727, -inf
        %1789 = vmax.xlane.f32.xlu0 %v1788
        %v1790 = vpop.xlane.xlu0 %1789
        %v1791 = vsel %vm1745, %v1728, -inf
        %1792 = vmax.xlane.f32.xlu0 %v1791
        %v1793 = vpop.xlane.xlu0 %1792
        %v1794 = vsel %vm1745, %v1729, -inf
        %1795 = vmax.xlane.f32.xlu0 %v1794
        %v1796 = vpop.xlane.xlu0 %1795
        %v1797 = vsel %vm1745, %v1730, -inf
        %1798 = vmax.xlane.f32.xlu0 %v1797
        %v1799 = vpop.xlane.xlu0 %1798
        %v1800 = vsel %vm1745, %v1731, -inf
        %1801 = vmax.xlane.f32.xlu0 %v1800
        %v1802 = vpop.xlane.xlu0 %1801
        %v1803 = vsel %vm1745, %v1732, -inf
        %1804 = vmax.xlane.f32.xlu0 %v1803
        %v1805 = vpop.xlane.xlu0 %1804
        %v1806 = vsel %vm1745, %v1733, -inf
        %1807 = vmax.xlane.f32.xlu0 %v1806
        %v1808 = vpop.xlane.xlu0 %1807
        %v1809 = vsel %vm1745, %v1734, -inf
        %1810 = vmax.xlane.f32.xlu0 %v1809
        %v1811 = vpop.xlane.xlu0 %1810
        %v1812 = vsel %vm1745, %v1735, -inf
        %1813 = vmax.xlane.f32.xlu0 %v1812
        %v1814 = vpop.xlane.xlu0 %1813
        %v1815 = vsel %vm1745, %v1736, -inf
        %1816 = vmax.xlane.f32.xlu0 %v1815
        %v1817 = vpop.xlane.xlu0 %1816
        %v1818 = vsel %vm1745, %v1737, -inf
        %1819 = vmax.xlane.f32.xlu0 %v1818
        %v1820 = vpop.xlane.xlu0 %1819
        %v1821 = vsel %vm1745, %v1738, -inf
        %1822 = vmax.xlane.f32.xlu0 %v1821
        %v1823 = vpop.xlane.xlu0 %1822
        %v1824 = vsel %vm1745, %v1739, -inf
        %1825 = vmax.xlane.f32.xlu0 %v1824
        %v1826 = vpop.xlane.xlu0 %1825
        %v1827 = vsel %vm1745, %v1740, -inf
        %1828 = vmax.xlane.f32.xlu0 %v1827
        %v1829 = vpop.xlane.xlu0 %1828
        %v1830 = vsel %vm1745, %v1741, -inf
        %1831 = vmax.xlane.f32.xlu0 %v1830
        %v1832 = vpop.xlane.xlu0 %1831
        %v1833 = vsel %vm1745, %v1742, -inf
        %1834 = vmax.xlane.f32.xlu0 %v1833
        %v1835 = vpop.xlane.xlu0 %1834
        %v1836 = vsel %vm1745, %v1743, -inf
        %1837 = vmax.xlane.f32.xlu0 %v1836
        %v1838 = vpop.xlane.xlu0 %1837
        %v1839 = vsel %vm1745, %v1744, -inf
        %1840 = vmax.xlane.f32.xlu0 %v1839
        %v1841 = vpop.xlane.xlu0 %1840
        %v1842 = vsub.f32 %v1713, %v1748
        %v1843 = vsub.f32 %v1714, %v1751
        %v1844 = vsub.f32 %v1715, %v1754
        %v1845 = vsub.f32 %v1716, %v1757
        %v1846 = vsub.f32 %v1717, %v1760
        %v1847 = vsub.f32 %v1718, %v1763
        %v1848 = vsub.f32 %v1719, %v1766
        %v1849 = vsub.f32 %v1720, %v1769
        %v1850 = vsub.f32 %v1721, %v1772
        %v1851 = vsub.f32 %v1722, %v1775
        %v1852 = vsub.f32 %v1723, %v1778
        %v1853 = vsub.f32 %v1724, %v1781
        %v1854 = vsub.f32 %v1725, %v1784
        %v1855 = vsub.f32 %v1726, %v1787
        %v1856 = vsub.f32 %v1727, %v1790
        %v1857 = vsub.f32 %v1728, %v1793
        %v1858 = vsub.f32 %v1729, %v1796
        %v1859 = vsub.f32 %v1730, %v1799
        %v1860 = vsub.f32 %v1731, %v1802
        %v1861 = vsub.f32 %v1732, %v1805
        %v1862 = vsub.f32 %v1733, %v1808
        %v1863 = vsub.f32 %v1734, %v1811
        %v1864 = vsub.f32 %v1735, %v1814
        %v1865 = vsub.f32 %v1736, %v1817
        %v1866 = vsub.f32 %v1737, %v1820
        %v1867 = vsub.f32 %v1738, %v1823
        %v1868 = vsub.f32 %v1739, %v1826
        %v1869 = vsub.f32 %v1740, %v1829
        %v1870 = vsub.f32 %v1741, %v1832
        %v1871 = vsub.f32 %v1742, %v1835
        %v1872 = vsub.f32 %v1743, %v1838
        %v1873 = vsub.f32 %v1744, %v1841
        %v1874 = vmul.f32 %v1842, 1.442695
        %v1875 = vpow.pop %v1874
        %v1876 = vmul.f32 %v1843, 1.442695
        %v1877 = vpow.pop %v1876
        %v1878 = vmul.f32 %v1844, 1.442695
        %v1879 = vpow.pop %v1878
        %v1880 = vmul.f32 %v1845, 1.442695
        %v1881 = vpow.pop %v1880
        %v1882 = vmul.f32 %v1846, 1.442695
        %v1883 = vpow.pop %v1882
        %v1884 = vmul.f32 %v1847, 1.442695
        %v1885 = vpow.pop %v1884
        %v1886 = vmul.f32 %v1848, 1.442695
        %v1887 = vpow.pop %v1886
        %v1888 = vmul.f32 %v1849, 1.442695
        %v1889 = vpow.pop %v1888
        %v1890 = vmul.f32 %v1850, 1.442695
        %v1891 = vpow.pop %v1890
        %v1892 = vmul.f32 %v1851, 1.442695
        %v1893 = vpow.pop %v1892
        %v1894 = vmul.f32 %v1852, 1.442695
        %v1895 = vpow.pop %v1894
        %v1896 = vmul.f32 %v1853, 1.442695
        %v1897 = vpow.pop %v1896
        %v1898 = vmul.f32 %v1854, 1.442695
        %v1899 = vpow.pop %v1898
        %v1900 = vmul.f32 %v1855, 1.442695
        %v1901 = vpow.pop %v1900
        %v1902 = vmul.f32 %v1856, 1.442695
        %v1903 = vpow.pop %v1902
        %v1904 = vmul.f32 %v1857, 1.442695
        %v1905 = vpow.pop %v1904
        %v1906 = vmul.f32 %v1858, 1.442695
        %v1907 = vpow.pop %v1906
        %v1908 = vmul.f32 %v1859, 1.442695
        %v1909 = vpow.pop %v1908
        %v1910 = vmul.f32 %v1860, 1.442695
        %v1911 = vpow.pop %v1910
        %v1912 = vmul.f32 %v1861, 1.442695
        %v1913 = vpow.pop %v1912
        %v1914 = vmul.f32 %v1862, 1.442695
        %v1915 = vpow.pop %v1914
        %v1916 = vmul.f32 %v1863, 1.442695
        %v1917 = vpow.pop %v1916
        %v1918 = vmul.f32 %v1864, 1.442695
        %v1919 = vpow.pop %v1918
        %v1920 = vmul.f32 %v1865, 1.442695
        %v1921 = vpow.pop %v1920
        %v1922 = vmul.f32 %v1866, 1.442695
        %v1923 = vpow.pop %v1922
        %v1924 = vmul.f32 %v1867, 1.442695
        %v1925 = vpow.pop %v1924
        %v1926 = vmul.f32 %v1868, 1.442695
        %v1927 = vpow.pop %v1926
        %v1928 = vmul.f32 %v1869, 1.442695
        %v1929 = vpow.pop %v1928
        %v1930 = vmul.f32 %v1870, 1.442695
        %v1931 = vpow.pop %v1930
        %v1932 = vmul.f32 %v1871, 1.442695
        %v1933 = vpow.pop %v1932
        %v1934 = vmul.f32 %v1872, 1.442695
        %v1935 = vpow.pop %v1934
        %v1936 = vmul.f32 %v1873, 1.442695
        %v1937 = vpow.pop %v1936
        %v1938 = vsel %vm1745, %v1875, 0.0
        %1939 = vadd.xlane.f32.xlu0 %v1938
        %v1940 = vpop.xlane.xlu0 %1939
        %v1941 = vsel %vm1745, %v1877, 0.0
        %1942 = vadd.xlane.f32.xlu0 %v1941
        %v1943 = vpop.xlane.xlu0 %1942
        %v1944 = vsel %vm1745, %v1879, 0.0
        %1945 = vadd.xlane.f32.xlu0 %v1944
        %v1946 = vpop.xlane.xlu0 %1945
        %v1947 = vsel %vm1745, %v1881, 0.0
        %1948 = vadd.xlane.f32.xlu0 %v1947
        %v1949 = vpop.xlane.xlu0 %1948
        %v1950 = vsel %vm1745, %v1883, 0.0
        %1951 = vadd.xlane.f32.xlu0 %v1950
        %v1952 = vpop.xlane.xlu0 %1951
        %v1953 = vsel %vm1745, %v1885, 0.0
        %1954 = vadd.xlane.f32.xlu0 %v1953
        %v1955 = vpop.xlane.xlu0 %1954
        %v1956 = vsel %vm1745, %v1887, 0.0
        %1957 = vadd.xlane.f32.xlu0 %v1956
        %v1958 = vpop.xlane.xlu0 %1957
        %v1959 = vsel %vm1745, %v1889, 0.0
        %1960 = vadd.xlane.f32.xlu0 %v1959
        %v1961 = vpop.xlane.xlu0 %1960
        %v1962 = vsel %vm1745, %v1891, 0.0
        %1963 = vadd.xlane.f32.xlu0 %v1962
        %v1964 = vpop.xlane.xlu0 %1963
        %v1965 = vsel %vm1745, %v1893, 0.0
        %1966 = vadd.xlane.f32.xlu0 %v1965
        %v1967 = vpop.xlane.xlu0 %1966
        %v1968 = vsel %vm1745, %v1895, 0.0
        %1969 = vadd.xlane.f32.xlu0 %v1968
        %v1970 = vpop.xlane.xlu0 %1969
        %v1971 = vsel %vm1745, %v1897, 0.0
        %1972 = vadd.xlane.f32.xlu0 %v1971
        %v1973 = vpop.xlane.xlu0 %1972
        %v1974 = vsel %vm1745, %v1899, 0.0
        %1975 = vadd.xlane.f32.xlu0 %v1974
        %v1976 = vpop.xlane.xlu0 %1975
        %v1977 = vsel %vm1745, %v1901, 0.0
        %1978 = vadd.xlane.f32.xlu0 %v1977
        %v1979 = vpop.xlane.xlu0 %1978
        %v1980 = vsel %vm1745, %v1903, 0.0
        %1981 = vadd.xlane.f32.xlu0 %v1980
        %v1982 = vpop.xlane.xlu0 %1981
        %v1983 = vsel %vm1745, %v1905, 0.0
        %1984 = vadd.xlane.f32.xlu0 %v1983
        %v1985 = vpop.xlane.xlu0 %1984
        %v1986 = vsel %vm1745, %v1907, 0.0
        %1987 = vadd.xlane.f32.xlu0 %v1986
        %v1988 = vpop.xlane.xlu0 %1987
        %v1989 = vsel %vm1745, %v1909, 0.0
        %1990 = vadd.xlane.f32.xlu0 %v1989
        %v1991 = vpop.xlane.xlu0 %1990
        %v1992 = vsel %vm1745, %v1911, 0.0
        %1993 = vadd.xlane.f32.xlu0 %v1992
        %v1994 = vpop.xlane.xlu0 %1993
        %v1995 = vsel %vm1745, %v1913, 0.0
        %1996 = vadd.xlane.f32.xlu0 %v1995
        %v1997 = vpop.xlane.xlu0 %1996
        %v1998 = vsel %vm1745, %v1915, 0.0
        %1999 = vadd.xlane.f32.xlu0 %v1998
        %v2000 = vpop.xlane.xlu0 %1999
        %v2001 = vsel %vm1745, %v1917, 0.0
        %2002 = vadd.xlane.f32.xlu0 %v2001
        %v2003 = vpop.xlane.xlu0 %2002
        %v2004 = vsel %vm1745, %v1919, 0.0
        %2005 = vadd.xlane.f32.xlu0 %v2004
        %v2006 = vpop.xlane.xlu0 %2005
        %v2007 = vsel %vm1745, %v1921, 0.0
        %2008 = vadd.xlane.f32.xlu0 %v2007
        %v2009 = vpop.xlane.xlu0 %2008
        %v2010 = vsel %vm1745, %v1923, 0.0
        %2011 = vadd.xlane.f32.xlu0 %v2010
        %v2012 = vpop.xlane.xlu0 %2011
        %v2013 = vsel %vm1745, %v1925, 0.0
        %2014 = vadd.xlane.f32.xlu0 %v2013
        %v2015 = vpop.xlane.xlu0 %2014
        %v2016 = vsel %vm1745, %v1927, 0.0
        %2017 = vadd.xlane.f32.xlu0 %v2016
        %v2018 = vpop.xlane.xlu0 %2017
        %v2019 = vsel %vm1745, %v1929, 0.0
        %2020 = vadd.xlane.f32.xlu0 %v2019
        %v2021 = vpop.xlane.xlu0 %2020
        %v2022 = vsel %vm1745, %v1931, 0.0
        %2023 = vadd.xlane.f32.xlu0 %v2022
        %v2024 = vpop.xlane.xlu0 %2023
        %v2025 = vsel %vm1745, %v1933, 0.0
        %2026 = vadd.xlane.f32.xlu0 %v2025
        %v2027 = vpop.xlane.xlu0 %2026
        %v2028 = vsel %vm1745, %v1935, 0.0
        %2029 = vadd.xlane.f32.xlu0 %v2028
        %v2030 = vpop.xlane.xlu0 %2029
        %v2031 = vsel %vm1745, %v1937, 0.0
        %2032 = vadd.xlane.f32.xlu0 %v2031
        %v2033 = vpop.xlane.xlu0 %2032
        %v2034 = vrcp.pop %v1940
        %v2035 = vrcp.pop %v1943
        %v2036 = vrcp.pop %v1946
        %v2037 = vrcp.pop %v1949
        %v2038 = vrcp.pop %v1952
        %v2039 = vrcp.pop %v1955
        %v2040 = vrcp.pop %v1958
        %v2041 = vrcp.pop %v1961
        %v2042 = vrcp.pop %v1964
        %v2043 = vrcp.pop %v1967
        %v2044 = vrcp.pop %v1970
        %v2045 = vrcp.pop %v1973
        %v2046 = vrcp.pop %v1976
        %v2047 = vrcp.pop %v1979
        %v2048 = vrcp.pop %v1982
        %v2049 = vrcp.pop %v1985
        %v2050 = vrcp.pop %v1988
        %v2051 = vrcp.pop %v1991
        %v2052 = vrcp.pop %v1994
        %v2053 = vrcp.pop %v1997
        %v2054 = vrcp.pop %v2000
        %v2055 = vrcp.pop %v2003
        %v2056 = vrcp.pop %v2006
        %v2057 = vrcp.pop %v2009
        %v2058 = vrcp.pop %v2012
        %v2059 = vrcp.pop %v2015
        %v2060 = vrcp.pop %v2018
        %v2061 = vrcp.pop %v2021
        %v2062 = vrcp.pop %v2024
        %v2063 = vrcp.pop %v2027
        %v2064 = vrcp.pop %v2030
        %v2065 = vrcp.pop %v2033
        %v2066 = vmul.f32 %v1875, %v2034
        %v2067 = vmul.f32 %v1877, %v2035
        %v2068 = vmul.f32 %v1879, %v2036
        %v2069 = vmul.f32 %v1881, %v2037
        %v2070 = vmul.f32 %v1883, %v2038
        %v2071 = vmul.f32 %v1885, %v2039
        %v2072 = vmul.f32 %v1887, %v2040
        %v2073 = vmul.f32 %v1889, %v2041
        %v2074 = vmul.f32 %v1891, %v2042
        %v2075 = vmul.f32 %v1893, %v2043
        %v2076 = vmul.f32 %v1895, %v2044
        %v2077 = vmul.f32 %v1897, %v2045
        %v2078 = vmul.f32 %v1899, %v2046
        %v2079 = vmul.f32 %v1901, %v2047
        %v2080 = vmul.f32 %v1903, %v2048
        %v2081 = vmul.f32 %v1905, %v2049
        %v2082 = vmul.f32 %v1907, %v2050
        %v2083 = vmul.f32 %v1909, %v2051
        %v2084 = vmul.f32 %v1911, %v2052
        %v2085 = vmul.f32 %v1913, %v2053
        %v2086 = vmul.f32 %v1915, %v2054
        %v2087 = vmul.f32 %v1917, %v2055
        %v2088 = vmul.f32 %v1919, %v2056
        %v2089 = vmul.f32 %v1921, %v2057
        %v2090 = vmul.f32 %v1923, %v2058
        %v2091 = vmul.f32 %v1925, %v2059
        %v2092 = vmul.f32 %v1927, %v2060
        %v2093 = vmul.f32 %v1929, %v2061
        %v2094 = vmul.f32 %v1931, %v2062
        %v2095 = vmul.f32 %v1933, %v2063
        %v2096 = vmul.f32 %v1935, %v2064
        %v2097 = vmul.f32 %v1937, %v2065
        %v2098 = vpack.c.bf16 %v2067, %v2066
        %v2099 = vpack.c.bf16 %v2069, %v2068
        %v2100 = vpack.c.bf16 %v2071, %v2070
        %v2101 = vpack.c.bf16 %v2073, %v2072
        %v2102 = vpack.c.bf16 %v2075, %v2074
        %v2103 = vpack.c.bf16 %v2077, %v2076
        %v2104 = vpack.c.bf16 %v2079, %v2078
        %v2105 = vpack.c.bf16 %v2081, %v2080
        %v2106 = vpack.c.bf16 %v2083, %v2082
        %v2107 = vpack.c.bf16 %v2085, %v2084
        %v2108 = vpack.c.bf16 %v2087, %v2086
        %v2109 = vpack.c.bf16 %v2089, %v2088
        %v2110 = vpack.c.bf16 %v2091, %v2090
        %v2111 = vpack.c.bf16 %v2093, %v2092
        %v2112 = vpack.c.bf16 %v2095, %v2094
        %v2113 = vpack.c.bf16 %v2097, %v2096
        %2114 = vrot.lane.b32.xlu0 %v1276, 64
        %v2115 = vpop.permute.xlu0 %2114
        %2116 = vrot.lane.b32.xlu0 %v1277, 64
        %v2117 = vpop.permute.xlu0 %2116
        %2118 = vrot.lane.b32.xlu0 %v1278, 64
        %v2119 = vpop.permute.xlu0 %2118
        %2120 = vrot.lane.b32.xlu0 %v1279, 64
        %v2121 = vpop.permute.xlu0 %2120
        %v2127 = vsel %vm1745, %v2098, 0
        %v2130 = vsel %vm1745, %v2099, 0
        %v2133 = vsel %vm1745, %v2100, 0
        %v2136 = vsel %vm1745, %v2101, 0
        %2138 = vmatprep.subr.bf16.mxu0 0
        %2139 = vmatpush1.bf16.msra.mxu0 0
        %2140 = vmatprep.subr.bf16.mxu0 0
        %2141 = vmatpush1.bf16.msra.mxu0 0
        %2142 = vmatprep.subr.bf16.mxu0 0
        %2143 = vmatpush1.bf16.msra.mxu0 0
        %2144 = vmatprep.subr.bf16.mxu0 0
        %2145 = vmatpush1.bf16.msra.mxu0 0
        %2146 = vmatprep.subr.bf16.mxu0 0
        %2147 = vmatpush1.bf16.msra.mxu0 %v2121
        %2148 = vmatprep.subr.bf16.mxu0 0
        %2149 = vmatpush1.bf16.msra.mxu0 %v2119
        %2150 = vmatprep.subr.bf16.mxu0 0
        %2151 = vmatpush1.bf16.msra.mxu0 %v2117
        %2152 = vmatprep.subr.bf16.mxu0 0
        %2153 = vmatpush1.bf16.msra.mxu0 %v2115
        %2154 = vmatprep.subr.bf16.mxu0 0
        %2155 = vmatpush2.bf16.msra.mxu0 0
        %2156 = vmatprep.subr.bf16.mxu0 0
        %2157 = vmatpush2.bf16.msra.mxu0 0
        %2158 = vmatprep.subr.bf16.mxu0 0
        %2159 = vmatpush2.bf16.msra.mxu0 0
        %2160 = vmatprep.subr.bf16.mxu0 0
        %2161 = vmatpush2.bf16.msra.mxu0 0
        %2162 = vmatprep.subr.bf16.mxu0 0
        %2163 = vmatpush2.bf16.msra.mxu0 0
        %2164 = vmatprep.subr.bf16.mxu0 0
        %2165 = vmatpush2.bf16.msra.mxu0 0
        %2166 = vmatprep.subr.bf16.mxu0 0
        %2167 = vmatpush2.bf16.msra.mxu0 0
        %2168 = vmatprep.subr.bf16.mxu0 0
        %2169 = vmatpush2.bf16.msra.mxu0 0
        %2170 = vmatprep.mubr.bf16.mxu0 0
        %2171 = vmatmul.mubr.bf16.gmra.mxu0 %v2127
        %v2172 = vpop.f32.mrf.mxu0
        %v2173 = vadd.f32 0.0, %v2172
        %v2174 = vpop.f32.mrf.mxu0
        %v2175 = vpop.f32.mrf.mxu0
        %v2176 = vadd.f32 0.0, %v2175
        %v2177 = vpop.f32.mrf.mxu0
        %2178 = vmatprep.mubr.bf16.mxu0 0
        %2179 = vmatmul.mubr.bf16.gmra.mxu0 %v2130
        %v2180 = vpop.f32.mrf.mxu0
        %v2181 = vadd.f32 0.0, %v2180
        %v2182 = vpop.f32.mrf.mxu0
        %v2183 = vpop.f32.mrf.mxu0
        %v2184 = vadd.f32 0.0, %v2183
        %v2185 = vpop.f32.mrf.mxu0
        %2186 = vmatprep.mubr.bf16.mxu0 0
        %2187 = vmatmul.mubr.bf16.gmra.mxu0 %v2133
        %v2188 = vpop.f32.mrf.mxu0
        %v2189 = vadd.f32 0.0, %v2188
        %v2190 = vpop.f32.mrf.mxu0
        %v2191 = vpop.f32.mrf.mxu0
        %v2192 = vadd.f32 0.0, %v2191
        %v2193 = vpop.f32.mrf.mxu0
        %2194 = vmatprep.mubr.bf16.mxu0 0
        %2195 = vmatmul.mubr.bf16.gmra.mxu0 %v2136
        %v2196 = vpop.f32.mrf.mxu0
        %v2197 = vadd.f32 0.0, %v2196
        %v2198 = vpop.f32.mrf.mxu0
        %v2199 = vpop.f32.mrf.mxu0
        %v2200 = vadd.f32 0.0, %v2199
        %v2201 = vpop.f32.mrf.mxu0
        %2202 = vdwg.mxu0
        %2203 = vrot.lane.b32.xlu0 %v1285, 64
        %v2204 = vpop.permute.xlu0 %2203
        %2205 = vrot.lane.b32.xlu0 %v1287, 64
        %v2206 = vpop.permute.xlu0 %2205
        %2207 = vrot.lane.b32.xlu0 %v1289, 64
        %v2208 = vpop.permute.xlu0 %2207
        %2209 = vrot.lane.b32.xlu0 %v1291, 64
        %v2210 = vpop.permute.xlu0 %2209
        %v2216 = vsel %vm1745, %v2102, 0
        %v2219 = vsel %vm1745, %v2103, 0
        %v2222 = vsel %vm1745, %v2104, 0
        %v2225 = vsel %vm1745, %v2105, 0
        %2227 = vmatprep.subr.bf16.mxu0 0
        %2228 = vmatpush1.bf16.msra.mxu0 0
        %2229 = vmatprep.subr.bf16.mxu0 0
        %2230 = vmatpush1.bf16.msra.mxu0 0
        %2231 = vmatprep.subr.bf16.mxu0 0
        %2232 = vmatpush1.bf16.msra.mxu0 0
        %2233 = vmatprep.subr.bf16.mxu0 0
        %2234 = vmatpush1.bf16.msra.mxu0 0
        %2235 = vmatprep.subr.bf16.mxu0 0
        %2236 = vmatpush1.bf16.msra.mxu0 %v2210
        %2237 = vmatprep.subr.bf16.mxu0 0
        %2238 = vmatpush1.bf16.msra.mxu0 %v2208
        %2239 = vmatprep.subr.bf16.mxu0 0
        %2240 = vmatpush1.bf16.msra.mxu0 %v2206
        %2241 = vmatprep.subr.bf16.mxu0 0
        %2242 = vmatpush1.bf16.msra.mxu0 %v2204
        %2243 = vmatprep.subr.bf16.mxu0 0
        %2244 = vmatpush2.bf16.msra.mxu0 0
        %2245 = vmatprep.subr.bf16.mxu0 0
        %2246 = vmatpush2.bf16.msra.mxu0 0
        %2247 = vmatprep.subr.bf16.mxu0 0
        %2248 = vmatpush2.bf16.msra.mxu0 0
        %2249 = vmatprep.subr.bf16.mxu0 0
        %2250 = vmatpush2.bf16.msra.mxu0 0
        %2251 = vmatprep.subr.bf16.mxu0 0
        %2252 = vmatpush2.bf16.msra.mxu0 0
        %2253 = vmatprep.subr.bf16.mxu0 0
        %2254 = vmatpush2.bf16.msra.mxu0 0
        %2255 = vmatprep.subr.bf16.mxu0 0
        %2256 = vmatpush2.bf16.msra.mxu0 0
        %2257 = vmatprep.subr.bf16.mxu0 0
        %2258 = vmatpush2.bf16.msra.mxu0 0
        %2259 = vmatprep.mubr.bf16.mxu0 0
        %2260 = vmatmul.mubr.bf16.gmra.mxu0 %v2216
        %v2261 = vpop.f32.mrf.mxu0
        %v2262 = vadd.f32 0.0, %v2261
        %v2263 = vpop.f32.mrf.mxu0
        %v2264 = vpop.f32.mrf.mxu0
        %v2265 = vadd.f32 0.0, %v2264
        %v2266 = vpop.f32.mrf.mxu0
        %2267 = vmatprep.mubr.bf16.mxu0 0
        %2268 = vmatmul.mubr.bf16.gmra.mxu0 %v2219
        %v2269 = vpop.f32.mrf.mxu0
        %v2270 = vadd.f32 0.0, %v2269
        %v2271 = vpop.f32.mrf.mxu0
        %v2272 = vpop.f32.mrf.mxu0
        %v2273 = vadd.f32 0.0, %v2272
        %v2274 = vpop.f32.mrf.mxu0
        %2275 = vmatprep.mubr.bf16.mxu0 0
        %2276 = vmatmul.mubr.bf16.gmra.mxu0 %v2222
        %v2277 = vpop.f32.mrf.mxu0
        %v2278 = vadd.f32 0.0, %v2277
        %v2279 = vpop.f32.mrf.mxu0
        %v2280 = vpop.f32.mrf.mxu0
        %v2281 = vadd.f32 0.0, %v2280
        %v2282 = vpop.f32.mrf.mxu0
        %2283 = vmatprep.mubr.bf16.mxu0 0
        %2284 = vmatmul.mubr.bf16.gmra.mxu0 %v2225
        %v2285 = vpop.f32.mrf.mxu0
        %v2286 = vadd.f32 0.0, %v2285
        %v2287 = vpop.f32.mrf.mxu0
        %v2288 = vpop.f32.mrf.mxu0
        %v2289 = vadd.f32 0.0, %v2288
        %v2290 = vpop.f32.mrf.mxu0
        %2291 = vdwg.mxu0
        %2292 = vrot.lane.b32.xlu0 %v1293, 64
        %v2293 = vpop.permute.xlu0 %2292
        %2294 = vrot.lane.b32.xlu0 %v1295, 64
        %v2295 = vpop.permute.xlu0 %2294
        %2296 = vrot.lane.b32.xlu0 %v1297, 64
        %v2297 = vpop.permute.xlu0 %2296
        %2298 = vrot.lane.b32.xlu0 %v1299, 64
        %v2299 = vpop.permute.xlu0 %2298
        %v2305 = vsel %vm1745, %v2106, 0
        %v2308 = vsel %vm1745, %v2107, 0
        %v2311 = vsel %vm1745, %v2108, 0
        %v2314 = vsel %vm1745, %v2109, 0
        %2316 = vmatprep.subr.bf16.mxu0 0
        %2317 = vmatpush1.bf16.msra.mxu0 0
        %2318 = vmatprep.subr.bf16.mxu0 0
        %2319 = vmatpush1.bf16.msra.mxu0 0
        %2320 = vmatprep.subr.bf16.mxu0 0
        %2321 = vmatpush1.bf16.msra.mxu0 0
        %2322 = vmatprep.subr.bf16.mxu0 0
        %2323 = vmatpush1.bf16.msra.mxu0 0
        %2324 = vmatprep.subr.bf16.mxu0 0
        %2325 = vmatpush1.bf16.msra.mxu0 %v2299
        %2326 = vmatprep.subr.bf16.mxu0 0
        %2327 = vmatpush1.bf16.msra.mxu0 %v2297
        %2328 = vmatprep.subr.bf16.mxu0 0
        %2329 = vmatpush1.bf16.msra.mxu0 %v2295
        %2330 = vmatprep.subr.bf16.mxu0 0
        %2331 = vmatpush1.bf16.msra.mxu0 %v2293
        %2332 = vmatprep.subr.bf16.mxu0 0
        %2333 = vmatpush2.bf16.msra.mxu0 0
        %2334 = vmatprep.subr.bf16.mxu0 0
        %2335 = vmatpush2.bf16.msra.mxu0 0
        %2336 = vmatprep.subr.bf16.mxu0 0
        %2337 = vmatpush2.bf16.msra.mxu0 0
        %2338 = vmatprep.subr.bf16.mxu0 0
        %2339 = vmatpush2.bf16.msra.mxu0 0
        %2340 = vmatprep.subr.bf16.mxu0 0
        %2341 = vmatpush2.bf16.msra.mxu0 0
        %2342 = vmatprep.subr.bf16.mxu0 0
        %2343 = vmatpush2.bf16.msra.mxu0 0
        %2344 = vmatprep.subr.bf16.mxu0 0
        %2345 = vmatpush2.bf16.msra.mxu0 0
        %2346 = vmatprep.subr.bf16.mxu0 0
        %2347 = vmatpush2.bf16.msra.mxu0 0
        %2348 = vmatprep.mubr.bf16.mxu0 0
        %2349 = vmatmul.mubr.bf16.gmra.mxu0 %v2305
        %v2350 = vpop.f32.mrf.mxu0
        %v2351 = vadd.f32 0.0, %v2350
        %v2352 = vpop.f32.mrf.mxu0
        %v2353 = vpop.f32.mrf.mxu0
        %v2354 = vadd.f32 0.0, %v2353
        %v2355 = vpop.f32.mrf.mxu0
        %2356 = vmatprep.mubr.bf16.mxu0 0
        %2357 = vmatmul.mubr.bf16.gmra.mxu0 %v2308
        %v2358 = vpop.f32.mrf.mxu0
        %v2359 = vadd.f32 0.0, %v2358
        %v2360 = vpop.f32.mrf.mxu0
        %v2361 = vpop.f32.mrf.mxu0
        %v2362 = vadd.f32 0.0, %v2361
        %v2363 = vpop.f32.mrf.mxu0
        %2364 = vmatprep.mubr.bf16.mxu0 0
        %2365 = vmatmul.mubr.bf16.gmra.mxu0 %v2311
        %v2366 = vpop.f32.mrf.mxu0
        %v2367 = vadd.f32 0.0, %v2366
        %v2368 = vpop.f32.mrf.mxu0
        %v2369 = vpop.f32.mrf.mxu0
        %v2370 = vadd.f32 0.0, %v2369
        %v2371 = vpop.f32.mrf.mxu0
        %2372 = vmatprep.mubr.bf16.mxu0 0
        %2373 = vmatmul.mubr.bf16.gmra.mxu0 %v2314
        %v2374 = vpop.f32.mrf.mxu0
        %v2375 = vadd.f32 0.0, %v2374
        %v2376 = vpop.f32.mrf.mxu0
        %v2377 = vpop.f32.mrf.mxu0
        %v2378 = vadd.f32 0.0, %v2377
        %v2379 = vpop.f32.mrf.mxu0
        %2380 = vdwg.mxu0
        %2381 = vrot.lane.b32.xlu0 %v1301, 64
        %v2382 = vpop.permute.xlu0 %2381
        %2383 = vrot.lane.b32.xlu0 %v1303, 64
        %v2384 = vpop.permute.xlu0 %2383
        %2385 = vrot.lane.b32.xlu0 %v1305, 64
        %v2386 = vpop.permute.xlu0 %2385
        %2387 = vrot.lane.b32.xlu0 %v1307, 64
        %v2388 = vpop.permute.xlu0 %2387
        %v2394 = vsel %vm1745, %v2110, 0
        %v2397 = vsel %vm1745, %v2111, 0
        %v2400 = vsel %vm1745, %v2112, 0
        %v2403 = vsel %vm1745, %v2113, 0
        %2405 = vmatprep.subr.bf16.mxu0 0
        %2406 = vmatpush1.bf16.msra.mxu0 0
        %2407 = vmatprep.subr.bf16.mxu0 0
        %2408 = vmatpush1.bf16.msra.mxu0 0
        %2409 = vmatprep.subr.bf16.mxu0 0
        %2410 = vmatpush1.bf16.msra.mxu0 0
        %2411 = vmatprep.subr.bf16.mxu0 0
        %2412 = vmatpush1.bf16.msra.mxu0 0
        %2413 = vmatprep.subr.bf16.mxu0 0
        %2414 = vmatpush1.bf16.msra.mxu0 %v2388
        %2415 = vmatprep.subr.bf16.mxu0 0
        %2416 = vmatpush1.bf16.msra.mxu0 %v2386
        %2417 = vmatprep.subr.bf16.mxu0 0
        %2418 = vmatpush1.bf16.msra.mxu0 %v2384
        %2419 = vmatprep.subr.bf16.mxu0 0
        %2420 = vmatpush1.bf16.msra.mxu0 %v2382
        %2421 = vmatprep.subr.bf16.mxu0 0
        %2422 = vmatpush2.bf16.msra.mxu0 0
        %2423 = vmatprep.subr.bf16.mxu0 0
        %2424 = vmatpush2.bf16.msra.mxu0 0
        %2425 = vmatprep.subr.bf16.mxu0 0
        %2426 = vmatpush2.bf16.msra.mxu0 0
        %2427 = vmatprep.subr.bf16.mxu0 0
        %2428 = vmatpush2.bf16.msra.mxu0 0
        %2429 = vmatprep.subr.bf16.mxu0 0
        %2430 = vmatpush2.bf16.msra.mxu0 0
        %2431 = vmatprep.subr.bf16.mxu0 0
        %2432 = vmatpush2.bf16.msra.mxu0 0
        %2433 = vmatprep.subr.bf16.mxu0 0
        %2434 = vmatpush2.bf16.msra.mxu0 0
        %2435 = vmatprep.subr.bf16.mxu0 0
        %2436 = vmatpush2.bf16.msra.mxu0 0
        %2437 = vmatprep.mubr.bf16.mxu0 0
        %2438 = vmatmul.mubr.bf16.gmra.mxu0 %v2394
        %v2439 = vpop.f32.mrf.mxu0
        %v2440 = vadd.f32 0.0, %v2439
        %v2441 = vpop.f32.mrf.mxu0
        %v2442 = vpop.f32.mrf.mxu0
        %v2443 = vadd.f32 0.0, %v2442
        %v2444 = vpop.f32.mrf.mxu0
        %2445 = vmatprep.mubr.bf16.mxu0 0
        %2446 = vmatmul.mubr.bf16.gmra.mxu0 %v2397
        %v2447 = vpop.f32.mrf.mxu0
        %v2448 = vadd.f32 0.0, %v2447
        %v2449 = vpop.f32.mrf.mxu0
        %v2450 = vpop.f32.mrf.mxu0
        %v2451 = vadd.f32 0.0, %v2450
        %v2452 = vpop.f32.mrf.mxu0
        %2453 = vmatprep.mubr.bf16.mxu0 0
        %2454 = vmatmul.mubr.bf16.gmra.mxu0 %v2400
        %v2455 = vpop.f32.mrf.mxu0
        %v2456 = vadd.f32 0.0, %v2455
        %v2457 = vpop.f32.mrf.mxu0
        %v2458 = vpop.f32.mrf.mxu0
        %v2459 = vadd.f32 0.0, %v2458
        %v2460 = vpop.f32.mrf.mxu0
        %2461 = vmatprep.mubr.bf16.mxu0 0
        %2462 = vmatmul.mubr.bf16.gmra.mxu0 %v2403
        %v2463 = vpop.f32.mrf.mxu0
        %v2464 = vadd.f32 0.0, %v2463
        %v2465 = vpop.f32.mrf.mxu0
        %v2466 = vpop.f32.mrf.mxu0
        %v2467 = vadd.f32 0.0, %v2466
        %v2468 = vpop.f32.mrf.mxu0
        %2469 = vdwg.mxu0
        %2478 = vrot.lane.b32.xlu0 %v2262, 8
        %v2479 = vpop.permute.xlu0 %2478
        %2480 = vrot.lane.b32.xlu0 %v2265, 8
        %v2481 = vpop.permute.xlu0 %2480
        %2482 = vrot.lane.b32.xlu0 %v2270, 8
        %v2483 = vpop.permute.xlu0 %2482
        %2484 = vrot.lane.b32.xlu0 %v2273, 8
        %v2485 = vpop.permute.xlu0 %2484
        %2486 = vrot.lane.b32.xlu0 %v2278, 8
        %v2487 = vpop.permute.xlu0 %2486
        %2488 = vrot.lane.b32.xlu0 %v2281, 8
        %v2489 = vpop.permute.xlu0 %2488
        %2490 = vrot.lane.b32.xlu0 %v2286, 8
        %v2491 = vpop.permute.xlu0 %2490
        %2492 = vrot.lane.b32.xlu0 %v2289, 8
        %v2493 = vpop.permute.xlu0 %2492
        %2510 = vrot.lane.b32.xlu0 %v2351, 16
        %v2511 = vpop.permute.xlu0 %2510
        %2512 = vrot.lane.b32.xlu0 %v2354, 16
        %v2513 = vpop.permute.xlu0 %2512
        %2514 = vrot.lane.b32.xlu0 %v2359, 16
        %v2515 = vpop.permute.xlu0 %2514
        %2516 = vrot.lane.b32.xlu0 %v2362, 16
        %v2517 = vpop.permute.xlu0 %2516
        %2518 = vrot.lane.b32.xlu0 %v2367, 16
        %v2519 = vpop.permute.xlu0 %2518
        %2520 = vrot.lane.b32.xlu0 %v2370, 16
        %v2521 = vpop.permute.xlu0 %2520
        %2522 = vrot.lane.b32.xlu0 %v2375, 16
        %v2523 = vpop.permute.xlu0 %2522
        %2524 = vrot.lane.b32.xlu0 %v2378, 16
        %v2525 = vpop.permute.xlu0 %2524
        %2542 = vrot.lane.b32.xlu0 %v2440, 24
        %v2543 = vpop.permute.xlu0 %2542
        %2544 = vrot.lane.b32.xlu0 %v2443, 24
        %v2545 = vpop.permute.xlu0 %2544
        %2546 = vrot.lane.b32.xlu0 %v2448, 24
        %v2547 = vpop.permute.xlu0 %2546
        %2548 = vrot.lane.b32.xlu0 %v2451, 24
        %v2549 = vpop.permute.xlu0 %2548
        %2550 = vrot.lane.b32.xlu0 %v2456, 24
        %v2551 = vpop.permute.xlu0 %2550
        %2552 = vrot.lane.b32.xlu0 %v2459, 24
        %v2553 = vpop.permute.xlu0 %2552
        %2554 = vrot.lane.b32.xlu0 %v2464, 24
        %v2555 = vpop.permute.xlu0 %2554
        %2556 = vrot.lane.b32.xlu0 %v2467, 24
        %v2557 = vpop.permute.xlu0 %2556
        %v2566 = vsel %vm1316, %v2173, %v2479
        %v2567 = vsel %vm1316, %v2176, %v2481
        %v2568 = vsel %vm1316, %v2181, %v2483
        %v2569 = vsel %vm1316, %v2184, %v2485
        %v2570 = vsel %vm1316, %v2189, %v2487
        %v2571 = vsel %vm1316, %v2192, %v2489
        %v2572 = vsel %vm1316, %v2197, %v2491
        %v2573 = vsel %vm1316, %v2200, %v2493
        %vm2574 = vcmask 130048
        %v2575 = vsel %vm2574, %v2566, %v2511
        %v2576 = vsel %vm2574, %v2567, %v2513
        %v2577 = vsel %vm2574, %v2568, %v2515
        %v2578 = vsel %vm2574, %v2569, %v2517
        %v2579 = vsel %vm2574, %v2570, %v2519
        %v2580 = vsel %vm2574, %v2571, %v2521
        %v2581 = vsel %vm2574, %v2572, %v2523
        %v2582 = vsel %vm2574, %v2573, %v2525
        %vm2583 = vcmask 195584
        %v2584 = vsel %vm2583, %v2575, %v2543
        %v2585 = vsel %vm2583, %v2576, %v2545
        %v2586 = vsel %vm2583, %v2577, %v2547
        %v2587 = vsel %vm2583, %v2578, %v2549
        %v2588 = vsel %vm2583, %v2579, %v2551
        %v2589 = vsel %vm2583, %v2580, %v2553
        %v2590 = vsel %vm2583, %v2581, %v2555
        %v2591 = vsel %vm2583, %v2582, %v2557
        %v2592 = vpack.c.bf16 %v2585, %v2584
        %v2593 = vpack.c.bf16 %v2587, %v2586
        %v2594 = vpack.c.bf16 %v2589, %v2588
        %v2595 = vpack.c.bf16 %v2591, %v2590
        %v2596 = vld [vmem:[%s790] sm:$0xf]
        %v2597 = vld [vmem:[%s790 + $0x4] sm:$0xf]
        %v2598 = vld [vmem:[%s790 + $0x8] sm:$0xf]
        %v2599 = vld [vmem:[%s790 + $0xc] sm:$0xf]
        %v2604 = vunpack.c.l.b16 %v2596
        %v2605 = vunpack.c.l.b16 %v2597
        %v2606 = vunpack.c.l.b16 %v2598
        %v2607 = vunpack.c.l.b16 %v2599
        %v2608 = vpack.c.b16 %v2605, %v2604
        %v2609 = vpack.c.b16 %v2607, %v2606
        %v2613 = vsel %vm1038, %v2592, 0
        %v2616 = vsel %vm1038, %v2593, 0
        %v2619 = vsel %vm1038, %v2594, 0
        %v2622 = vsel %vm1038, %v2595, 0
        %2624 = vmatprep.subr.bf16.mxu0 0
        %2625 = vmatpush1.bf16.msra.mxu0 0
        %2626 = vmatprep.subr.bf16.mxu0 0
        %2627 = vmatpush1.bf16.msra.mxu0 0
        %2628 = vmatprep.subr.bf16.mxu0 0
        %2629 = vmatpush1.bf16.msra.mxu0 0
        %2630 = vmatprep.subr.bf16.mxu0 0
        %2631 = vmatpush1.bf16.msra.mxu0 0
        %2632 = vmatprep.subr.bf16.mxu0 0
        %2633 = vmatpush1.bf16.msra.mxu0 0
        %2634 = vmatprep.subr.bf16.mxu0 0
        %2635 = vmatpush1.bf16.msra.mxu0 0
        %2636 = vmatprep.subr.bf16.mxu0 0
        %2637 = vmatpush1.bf16.msra.mxu0 %v2609
        %2638 = vmatprep.subr.bf16.mxu0 0
        %2639 = vmatpush1.bf16.msra.mxu0 %v2608
        %2640 = vmatprep.subr.bf16.mxu0 0
        %2641 = vmatpush2.bf16.msra.mxu0 0
        %2642 = vmatprep.subr.bf16.mxu0 0
        %2643 = vmatpush2.bf16.msra.mxu0 0
        %2644 = vmatprep.subr.bf16.mxu0 0
        %2645 = vmatpush2.bf16.msra.mxu0 0
        %2646 = vmatprep.subr.bf16.mxu0 0
        %2647 = vmatpush2.bf16.msra.mxu0 0
        %2648 = vmatprep.subr.bf16.mxu0 0
        %2649 = vmatpush2.bf16.msra.mxu0 0
        %2650 = vmatprep.subr.bf16.mxu0 0
        %2651 = vmatpush2.bf16.msra.mxu0 0
        %2652 = vmatprep.subr.bf16.mxu0 0
        %2653 = vmatpush2.bf16.msra.mxu0 0
        %2654 = vmatprep.subr.bf16.mxu0 0
        %2655 = vmatpush2.bf16.msra.mxu0 0
        %2656 = vmatprep.mubr.bf16.mxu0 0
        %2657 = vmatmul.mubr.bf16.gmra.mxu0 %v2613
        %v2658 = vpop.f32.mrf.mxu0
        %v2659 = vadd.f32 0.0, %v2658
        %v2660 = vpop.f32.mrf.mxu0
        %v2661 = vpop.f32.mrf.mxu0
        %v2662 = vadd.f32 0.0, %v2661
        %v2663 = vpop.f32.mrf.mxu0
        %2664 = vmatprep.mubr.bf16.mxu0 0
        %2665 = vmatmul.mubr.bf16.gmra.mxu0 %v2616
        %v2666 = vpop.f32.mrf.mxu0
        %v2667 = vadd.f32 0.0, %v2666
        %v2668 = vpop.f32.mrf.mxu0
        %v2669 = vpop.f32.mrf.mxu0
        %v2670 = vadd.f32 0.0, %v2669
        %v2671 = vpop.f32.mrf.mxu0
        %2672 = vmatprep.mubr.bf16.mxu0 0
        %2673 = vmatmul.mubr.bf16.gmra.mxu0 %v2619
        %v2674 = vpop.f32.mrf.mxu0
        %v2675 = vadd.f32 0.0, %v2674
        %v2676 = vpop.f32.mrf.mxu0
        %v2677 = vpop.f32.mrf.mxu0
        %v2678 = vadd.f32 0.0, %v2677
        %v2679 = vpop.f32.mrf.mxu0
        %2680 = vmatprep.mubr.bf16.mxu0 0
        %2681 = vmatmul.mubr.bf16.gmra.mxu0 %v2622
        %v2682 = vpop.f32.mrf.mxu0
        %v2683 = vadd.f32 0.0, %v2682
        %v2684 = vpop.f32.mrf.mxu0
        %v2685 = vpop.f32.mrf.mxu0
        %v2686 = vadd.f32 0.0, %v2685
        %v2687 = vpop.f32.mrf.mxu0
        %2688 = vdwg.mxu0
        %v2689 = vadd.f32 %v1009, %v2659
        %v2690 = vadd.f32 %v1010, %v2662
        %v2691 = vadd.f32 %v1011, %v2667
        %v2692 = vadd.f32 %v1012, %v2670
        %v2693 = vadd.f32 %v1013, %v2675
        %v2694 = vadd.f32 %v1014, %v2678
        %v2695 = vadd.f32 %v1015, %v2683
        %v2696 = vadd.f32 %v1016, %v2686
        %v2697 = vld [vmem:[%s793] sm:$0x1]
        %v2699 = vlaneseq
        %v2700 = vshrl.u32 %v2699, 7
        %v2701 = vsub.s32 0, %v2700
        %v2702 = vrot.slane %v2697, %v2701
        %v2704 = vadd.f32 %v2689, %v2702
        %v2705 = vadd.f32 %v2690, %v2702
        %v2706 = vadd.f32 %v2691, %v2702
        %v2707 = vadd.f32 %v2692, %v2702
        %v2708 = vadd.f32 %v2693, %v2702
        %v2709 = vadd.f32 %v2694, %v2702
        %v2710 = vadd.f32 %v2695, %v2702
        %v2711 = vadd.f32 %v2696, %v2702
        %v2712 = vld [vmem:[%s796] sm:$0x1]
        %v2713 = vld [vmem:[%s799] sm:$0x1]
        %v2714 = vsel %vm1038, %v2704, 0.0
        %2715 = vadd.xlane.f32.xlu0 %v2714
        %v2716 = vpop.xlane.xlu0 %2715
        %v2717 = vsel %vm1038, %v2705, 0.0
        %2718 = vadd.xlane.f32.xlu0 %v2717
        %v2719 = vpop.xlane.xlu0 %2718
        %v2720 = vsel %vm1038, %v2706, 0.0
        %2721 = vadd.xlane.f32.xlu0 %v2720
        %v2722 = vpop.xlane.xlu0 %2721
        %v2723 = vsel %vm1038, %v2707, 0.0
        %2724 = vadd.xlane.f32.xlu0 %v2723
        %v2725 = vpop.xlane.xlu0 %2724
        %v2726 = vsel %vm1038, %v2708, 0.0
        %2727 = vadd.xlane.f32.xlu0 %v2726
        %v2728 = vpop.xlane.xlu0 %2727
        %v2729 = vsel %vm1038, %v2709, 0.0
        %2730 = vadd.xlane.f32.xlu0 %v2729
        %v2731 = vpop.xlane.xlu0 %2730
        %v2732 = vsel %vm1038, %v2710, 0.0
        %2733 = vadd.xlane.f32.xlu0 %v2732
        %v2734 = vpop.xlane.xlu0 %2733
        %v2735 = vsel %vm1038, %v2711, 0.0
        %2736 = vadd.xlane.f32.xlu0 %v2735
        %v2737 = vpop.xlane.xlu0 %2736
        %v2738 = vmul.f32 %v2716, %v1063
        %v2739 = vmul.f32 %v2719, %v1063
        %v2740 = vmul.f32 %v2722, %v1063
        %v2741 = vmul.f32 %v2725, %v1063
        %v2742 = vmul.f32 %v2728, %v1063
        %v2743 = vmul.f32 %v2731, %v1063
        %v2744 = vmul.f32 %v2734, %v1063
        %v2745 = vmul.f32 %v2737, %v1063
        %v2746 = vsub.f32 %v2704, %v2738
        %v2747 = vsub.f32 %v2705, %v2739
        %v2748 = vsub.f32 %v2706, %v2740
        %v2749 = vsub.f32 %v2707, %v2741
        %v2750 = vsub.f32 %v2708, %v2742
        %v2751 = vsub.f32 %v2709, %v2743
        %v2752 = vsub.f32 %v2710, %v2744
        %v2753 = vsub.f32 %v2711, %v2745
        %v2754 = vmul.f32 %v2746, %v2746
        %v2755 = vmul.f32 %v2747, %v2747
        %v2756 = vmul.f32 %v2748, %v2748
        %v2757 = vmul.f32 %v2749, %v2749
        %v2758 = vmul.f32 %v2750, %v2750
        %v2759 = vmul.f32 %v2751, %v2751
        %v2760 = vmul.f32 %v2752, %v2752
        %v2761 = vmul.f32 %v2753, %v2753
        %v2762 = vsel %vm1038, %v2754, 0.0
        %2763 = vadd.xlane.f32.xlu0 %v2762
        %v2764 = vpop.xlane.xlu0 %2763
        %v2765 = vsel %vm1038, %v2755, 0.0
        %2766 = vadd.xlane.f32.xlu0 %v2765
        %v2767 = vpop.xlane.xlu0 %2766
        %v2768 = vsel %vm1038, %v2756, 0.0
        %2769 = vadd.xlane.f32.xlu0 %v2768
        %v2770 = vpop.xlane.xlu0 %2769
        %v2771 = vsel %vm1038, %v2757, 0.0
        %2772 = vadd.xlane.f32.xlu0 %v2771
        %v2773 = vpop.xlane.xlu0 %2772
        %v2774 = vsel %vm1038, %v2758, 0.0
        %2775 = vadd.xlane.f32.xlu0 %v2774
        %v2776 = vpop.xlane.xlu0 %2775
        %v2777 = vsel %vm1038, %v2759, 0.0
        %2778 = vadd.xlane.f32.xlu0 %v2777
        %v2779 = vpop.xlane.xlu0 %2778
        %v2780 = vsel %vm1038, %v2760, 0.0
        %2781 = vadd.xlane.f32.xlu0 %v2780
        %v2782 = vpop.xlane.xlu0 %2781
        %v2783 = vsel %vm1038, %v2761, 0.0
        %2784 = vadd.xlane.f32.xlu0 %v2783
        %v2785 = vpop.xlane.xlu0 %2784
        %v2786 = vmul.f32 %v2764, %v1063
        %v2787 = vmul.f32 %v2767, %v1063
        %v2788 = vmul.f32 %v2770, %v1063
        %v2789 = vmul.f32 %v2773, %v1063
        %v2790 = vmul.f32 %v2776, %v1063
        %v2791 = vmul.f32 %v2779, %v1063
        %v2792 = vmul.f32 %v2782, %v1063
        %v2793 = vmul.f32 %v2785, %v1063
        %v2794 = vadd.f32 %v2786, 1e-05
        %v2795 = vadd.f32 %v2787, 1e-05
        %v2796 = vadd.f32 %v2788, 1e-05
        %v2797 = vadd.f32 %v2789, 1e-05
        %v2798 = vadd.f32 %v2790, 1e-05
        %v2799 = vadd.f32 %v2791, 1e-05
        %v2800 = vadd.f32 %v2792, 1e-05
        %v2801 = vadd.f32 %v2793, 1e-05
        %v2802 = vrsqrt.pop %v2794
        %v2803 = vrsqrt.pop %v2795
        %v2804 = vrsqrt.pop %v2796
        %v2805 = vrsqrt.pop %v2797
        %v2806 = vrsqrt.pop %v2798
        %v2807 = vrsqrt.pop %v2799
        %v2808 = vrsqrt.pop %v2800
        %v2809 = vrsqrt.pop %v2801
        %v2810 = vmul.f32 %v2746, %v2802
        %v2811 = vmul.f32 %v2747, %v2803
        %v2812 = vmul.f32 %v2748, %v2804
        %v2813 = vmul.f32 %v2749, %v2805
        %v2814 = vmul.f32 %v2750, %v2806
        %v2815 = vmul.f32 %v2751, %v2807
        %v2816 = vmul.f32 %v2752, %v2808
        %v2817 = vmul.f32 %v2753, %v2809
        %v2819 = vlaneseq
        %v2820 = vshrl.u32 %v2819, 7
        %v2821 = vsub.s32 0, %v2820
        %v2822 = vrot.slane %v2712, %v2821
        %v2824 = vmul.f32 %v2810, %v2822
        %v2825 = vmul.f32 %v2811, %v2822
        %v2826 = vmul.f32 %v2812, %v2822
        %v2827 = vmul.f32 %v2813, %v2822
        %v2828 = vmul.f32 %v2814, %v2822
        %v2829 = vmul.f32 %v2815, %v2822
        %v2830 = vmul.f32 %v2816, %v2822
        %v2831 = vmul.f32 %v2817, %v2822
        %v2833 = vlaneseq
        %v2834 = vshrl.u32 %v2833, 7
        %v2835 = vsub.s32 0, %v2834
        %v2836 = vrot.slane %v2713, %v2835
        %v2838 = vadd.f32 %v2824, %v2836
        %v2839 = vadd.f32 %v2825, %v2836
        %v2840 = vadd.f32 %v2826, %v2836
        %v2841 = vadd.f32 %v2827, %v2836
        %v2842 = vadd.f32 %v2828, %v2836
        %v2843 = vadd.f32 %v2829, %v2836
        %v2844 = vadd.f32 %v2830, %v2836
        %v2845 = vadd.f32 %v2831, %v2836
        %v2846 = vpack.c.bf16 %v2839, %v2838
        %v2847 = vpack.c.bf16 %v2841, %v2840
        %v2848 = vpack.c.bf16 %v2843, %v2842
        %v2849 = vpack.c.bf16 %v2845, %v2844
        %v2850 = vld [vmem:[%s667] sm:$0xf]
        %v2851 = vld [vmem:[%s667 + $0x4] sm:$0xf]
        %v2852 = vld [vmem:[%s667 + $0x8] sm:$0xf]
        %v2853 = vld [vmem:[%s667 + $0xc] sm:$0xf]
        %v2854 = vld [vmem:[%s802] sm:$0x1]
        %v2856 = vlaneseq
        %v2857 = vshrl.u32 %v2856, 7
        %v2858 = vsub.s32 0, %v2857
        %v2859 = vrot.slane %v2854, %v2858
        %v2865 = vunpack.c.l.b16 %v2850
        %v2866 = vunpack.c.l.b16 %v2851
        %v2867 = vunpack.c.l.b16 %v2852
        %v2868 = vunpack.c.l.b16 %v2853
        %v2869 = vpack.c.b16 %v2866, %v2865
        %v2870 = vpack.c.b16 %v2868, %v2867
        %v2874 = vsel %vm1038, %v2846, 0
        %v2877 = vsel %vm1038, %v2847, 0
        %v2880 = vsel %vm1038, %v2848, 0
        %v2883 = vsel %vm1038, %v2849, 0
        %2885 = vmatprep.subr.bf16.mxu0 0
        %2886 = vmatpush1.bf16.msra.mxu0 0
        %2887 = vmatprep.subr.bf16.mxu0 0
        %2888 = vmatpush1.bf16.msra.mxu0 0
        %2889 = vmatprep.subr.bf16.mxu0 0
        %2890 = vmatpush1.bf16.msra.mxu0 0
        %2891 = vmatprep.subr.bf16.mxu0 0
        %2892 = vmatpush1.bf16.msra.mxu0 0
        %2893 = vmatprep.subr.bf16.mxu0 0
        %2894 = vmatpush1.bf16.msra.mxu0 0
        %2895 = vmatprep.subr.bf16.mxu0 0
        %2896 = vmatpush1.bf16.msra.mxu0 0
        %2897 = vmatprep.subr.bf16.mxu0 0
        %2898 = vmatpush1.bf16.msra.mxu0 %v2870
        %2899 = vmatprep.subr.bf16.mxu0 0
        %2900 = vmatpush1.bf16.msra.mxu0 %v2869
        %2901 = vmatprep.subr.bf16.mxu0 0
        %2902 = vmatpush2.bf16.msra.mxu0 0
        %2903 = vmatprep.subr.bf16.mxu0 0
        %2904 = vmatpush2.bf16.msra.mxu0 0
        %2905 = vmatprep.subr.bf16.mxu0 0
        %2906 = vmatpush2.bf16.msra.mxu0 0
        %2907 = vmatprep.subr.bf16.mxu0 0
        %2908 = vmatpush2.bf16.msra.mxu0 0
        %2909 = vmatprep.subr.bf16.mxu0 0
        %2910 = vmatpush2.bf16.msra.mxu0 0
        %2911 = vmatprep.subr.bf16.mxu0 0
        %2912 = vmatpush2.bf16.msra.mxu0 0
        %2913 = vmatprep.subr.bf16.mxu0 0
        %2914 = vmatpush2.bf16.msra.mxu0 0
        %2915 = vmatprep.subr.bf16.mxu0 0
        %2916 = vmatpush2.bf16.msra.mxu0 0
        %2917 = vmatprep.mubr.bf16.mxu0 0
        %2918 = vmatmul.mubr.bf16.gmra.mxu0 %v2874
        %v2919 = vpop.f32.mrf.mxu0
        %v2920 = vadd.f32 %v2859, %v2919
        %v2921 = vpop.f32.mrf.mxu0
        %v2922 = vpop.f32.mrf.mxu0
        %v2923 = vadd.f32 %v2859, %v2922
        %v2924 = vpop.f32.mrf.mxu0
        %2925 = vmatprep.mubr.bf16.mxu0 0
        %2926 = vmatmul.mubr.bf16.gmra.mxu0 %v2877
        %v2927 = vpop.f32.mrf.mxu0
        %v2928 = vadd.f32 %v2859, %v2927
        %v2929 = vpop.f32.mrf.mxu0
        %v2930 = vpop.f32.mrf.mxu0
        %v2931 = vadd.f32 %v2859, %v2930
        %v2932 = vpop.f32.mrf.mxu0
        %2933 = vmatprep.mubr.bf16.mxu0 0
        %2934 = vmatmul.mubr.bf16.gmra.mxu0 %v2880
        %v2935 = vpop.f32.mrf.mxu0
        %v2936 = vadd.f32 %v2859, %v2935
        %v2937 = vpop.f32.mrf.mxu0
        %v2938 = vpop.f32.mrf.mxu0
        %v2939 = vadd.f32 %v2859, %v2938
        %v2940 = vpop.f32.mrf.mxu0
        %2941 = vmatprep.mubr.bf16.mxu0 0
        %2942 = vmatmul.mubr.bf16.gmra.mxu0 %v2883
        %v2943 = vpop.f32.mrf.mxu0
        %v2944 = vadd.f32 %v2859, %v2943
        %v2945 = vpop.f32.mrf.mxu0
        %v2946 = vpop.f32.mrf.mxu0
        %v2947 = vadd.f32 %v2859, %v2946
        %v2948 = vpop.f32.mrf.mxu0
        %2949 = vdwg.mxu0
        %v2950 = vmul.f32 %v2920, %v2920
        %v2951 = vmul.f32 %v2923, %v2923
        %v2952 = vmul.f32 %v2928, %v2928
        %v2953 = vmul.f32 %v2931, %v2931
        %v2954 = vmul.f32 %v2936, %v2936
        %v2955 = vmul.f32 %v2939, %v2939
        %v2956 = vmul.f32 %v2944, %v2944
        %v2957 = vmul.f32 %v2947, %v2947
        %v2958 = vmul.f32 %v2920, %v2950
        %v2959 = vmul.f32 %v2923, %v2951
        %v2960 = vmul.f32 %v2928, %v2952
        %v2961 = vmul.f32 %v2931, %v2953
        %v2962 = vmul.f32 %v2936, %v2954
        %v2963 = vmul.f32 %v2939, %v2955
        %v2964 = vmul.f32 %v2944, %v2956
        %v2965 = vmul.f32 %v2947, %v2957
        %v2966 = vmul.f32 %v2958, 0.044715
        %v2967 = vmul.f32 %v2959, 0.044715
        %v2968 = vmul.f32 %v2960, 0.044715
        %v2969 = vmul.f32 %v2961, 0.044715
        %v2970 = vmul.f32 %v2962, 0.044715
        %v2971 = vmul.f32 %v2963, 0.044715
        %v2972 = vmul.f32 %v2964, 0.044715
        %v2973 = vmul.f32 %v2965, 0.044715
        %v2974 = vadd.f32 %v2920, %v2966
        %v2975 = vadd.f32 %v2923, %v2967
        %v2976 = vadd.f32 %v2928, %v2968
        %v2977 = vadd.f32 %v2931, %v2969
        %v2978 = vadd.f32 %v2936, %v2970
        %v2979 = vadd.f32 %v2939, %v2971
        %v2980 = vadd.f32 %v2944, %v2972
        %v2981 = vadd.f32 %v2947, %v2973
        %v2982 = vmul.f32 %v2974, 0.7978846
        %v2983 = vmul.f32 %v2975, 0.7978846
        %v2984 = vmul.f32 %v2976, 0.7978846
        %v2985 = vmul.f32 %v2977, 0.7978846
        %v2986 = vmul.f32 %v2978, 0.7978846
        %v2987 = vmul.f32 %v2979, 0.7978846
        %v2988 = vmul.f32 %v2980, 0.7978846
        %v2989 = vmul.f32 %v2981, 0.7978846
        %v2990 = vtanh.pop %v2982
        %v2991 = vtanh.pop %v2983
        %v2992 = vtanh.pop %v2984
        %v2993 = vtanh.pop %v2985
        %v2994 = vtanh.pop %v2986
        %v2995 = vtanh.pop %v2987
        %v2996 = vtanh.pop %v2988
        %v2997 = vtanh.pop %v2989
        %v2998 = vadd.f32 %v2990, 1.0
        %v2999 = vadd.f32 %v2991, 1.0
        %v3000 = vadd.f32 %v2992, 1.0
        %v3001 = vadd.f32 %v2993, 1.0
        %v3002 = vadd.f32 %v2994, 1.0
        %v3003 = vadd.f32 %v2995, 1.0
        %v3004 = vadd.f32 %v2996, 1.0
        %v3005 = vadd.f32 %v2997, 1.0
        %v3006 = vmul.f32 %v2998, 0.5
        %v3007 = vmul.f32 %v2999, 0.5
        %v3008 = vmul.f32 %v3000, 0.5
        %v3009 = vmul.f32 %v3001, 0.5
        %v3010 = vmul.f32 %v3002, 0.5
        %v3011 = vmul.f32 %v3003, 0.5
        %v3012 = vmul.f32 %v3004, 0.5
        %v3013 = vmul.f32 %v3005, 0.5
        %v3014 = vmul.f32 %v2920, %v3006
        %v3015 = vmul.f32 %v2923, %v3007
        %v3016 = vmul.f32 %v2928, %v3008
        %v3017 = vmul.f32 %v2931, %v3009
        %v3018 = vmul.f32 %v2936, %v3010
        %v3019 = vmul.f32 %v2939, %v3011
        %v3020 = vmul.f32 %v2944, %v3012
        %v3021 = vmul.f32 %v2947, %v3013
        %v3022 = vpack.c.bf16 %v3015, %v3014
        %v3023 = vpack.c.bf16 %v3017, %v3016
        %v3024 = vpack.c.bf16 %v3019, %v3018
        %v3025 = vpack.c.bf16 %v3021, %v3020
        %v3026 = vld [vmem:[%s807] sm:$0xf]
        %v3027 = vld [vmem:[%s807 + $0x4] sm:$0xf]
        %v3028 = vld [vmem:[%s807 + $0x8] sm:$0xf]
        %v3029 = vld [vmem:[%s807 + $0xc] sm:$0xf]
        %v3030 = vld [vmem:[%s807 + $0x10] sm:$0xf]
        %v3031 = vld [vmem:[%s807 + $0x14] sm:$0xf]
        %v3032 = vld [vmem:[%s807 + $0x18] sm:$0xf]
        %v3033 = vld [vmem:[%s807 + $0x1c] sm:$0xf]
        %v3034 = vld [vmem:[%s807 + $0x20] sm:$0xf]
        %v3035 = vld [vmem:[%s807 + $0x24] sm:$0xf]
        %v3036 = vld [vmem:[%s807 + $0x28] sm:$0xf]
        %v3037 = vld [vmem:[%s807 + $0x2c] sm:$0xf]
        %v3038 = vld [vmem:[%s807 + $0x30] sm:$0xf]
        %v3039 = vld [vmem:[%s807 + $0x34] sm:$0xf]
        %v3040 = vld [vmem:[%s807 + $0x38] sm:$0xf]
        %v3041 = vld [vmem:[%s807 + $0x3c] sm:$0xf]
        %v3058 = vunpack.c.l.b16 %v3026
        %v3059 = vunpack.c.l.b16 %v3027
        %v3060 = vunpack.c.l.b16 %v3028
        %v3061 = vunpack.c.l.b16 %v3029
        %v3062 = vunpack.c.l.b16 %v3030
        %v3063 = vunpack.c.l.b16 %v3031
        %v3064 = vunpack.c.l.b16 %v3032
        %v3065 = vunpack.c.l.b16 %v3033
        %v3066 = vunpack.c.l.b16 %v3034
        %v3067 = vunpack.c.l.b16 %v3035
        %v3068 = vunpack.c.l.b16 %v3036
        %v3069 = vunpack.c.l.b16 %v3037
        %v3070 = vunpack.c.l.b16 %v3038
        %v3071 = vunpack.c.l.b16 %v3039
        %v3072 = vunpack.c.l.b16 %v3040
        %v3073 = vunpack.c.l.b16 %v3041
        %v3074 = vpack.c.b16 %v3059, %v3058
        %v3075 = vpack.c.b16 %v3061, %v3060
        %v3076 = vpack.c.b16 %v3063, %v3062
        %v3077 = vpack.c.b16 %v3065, %v3064
        %v3078 = vpack.c.b16 %v3067, %v3066
        %v3079 = vpack.c.b16 %v3069, %v3068
        %v3080 = vpack.c.b16 %v3071, %v3070
        %v3081 = vpack.c.b16 %v3073, %v3072
        %3090 = vmatprep.subr.bf16.mxu0 0
        %3091 = vmatpush1.bf16.msra.mxu0 %v3081
        %3092 = vmatprep.subr.bf16.mxu0 0
        %3093 = vmatpush1.bf16.msra.mxu0 %v3080
        %3094 = vmatprep.subr.bf16.mxu0 0
        %3095 = vmatpush1.bf16.msra.mxu0 %v3079
        %3096 = vmatprep.subr.bf16.mxu0 0
        %3097 = vmatpush1.bf16.msra.mxu0 %v3078
        %3098 = vmatprep.subr.bf16.mxu0 0
        %3099 = vmatpush1.bf16.msra.mxu0 %v3077
        %3100 = vmatprep.subr.bf16.mxu0 0
        %3101 = vmatpush1.bf16.msra.mxu0 %v3076
        %3102 = vmatprep.subr.bf16.mxu0 0
        %3103 = vmatpush1.bf16.msra.mxu0 %v3075
        %3104 = vmatprep.subr.bf16.mxu0 0
        %3105 = vmatpush1.bf16.msra.mxu0 %v3074
        %3106 = vmatprep.subr.bf16.mxu0 0
        %3107 = vmatpush2.bf16.msra.mxu0 0
        %3108 = vmatprep.subr.bf16.mxu0 0
        %3109 = vmatpush2.bf16.msra.mxu0 0
        %3110 = vmatprep.subr.bf16.mxu0 0
        %3111 = vmatpush2.bf16.msra.mxu0 0
        %3112 = vmatprep.subr.bf16.mxu0 0
        %3113 = vmatpush2.bf16.msra.mxu0 0
        %3114 = vmatprep.subr.bf16.mxu0 0
        %3115 = vmatpush2.bf16.msra.mxu0 0
        %3116 = vmatprep.subr.bf16.mxu0 0
        %3117 = vmatpush2.bf16.msra.mxu0 0
        %3118 = vmatprep.subr.bf16.mxu0 0
        %3119 = vmatpush2.bf16.msra.mxu0 0
        %3120 = vmatprep.subr.bf16.mxu0 0
        %3121 = vmatpush2.bf16.msra.mxu0 0
        %3122 = vmatprep.mubr.bf16.mxu0 0
        %3123 = vmatmul.mubr.bf16.gmra.mxu0 %v3022
        %v3124 = vpop.f32.mrf.mxu0
        %v3125 = vadd.f32 0.0, %v3124
        %v3126 = vpop.f32.mrf.mxu0
        %v3127 = vpop.f32.mrf.mxu0
        %v3128 = vadd.f32 0.0, %v3127
        %v3129 = vpop.f32.mrf.mxu0
        %3130 = vmatprep.mubr.bf16.mxu0 0
        %3131 = vmatmul.mubr.bf16.gmra.mxu0 %v3023
        %v3132 = vpop.f32.mrf.mxu0
        %v3133 = vadd.f32 0.0, %v3132
        %v3134 = vpop.f32.mrf.mxu0
        %v3135 = vpop.f32.mrf.mxu0
        %v3136 = vadd.f32 0.0, %v3135
        %v3137 = vpop.f32.mrf.mxu0
        %3138 = vmatprep.mubr.bf16.mxu0 0
        %3139 = vmatmul.mubr.bf16.gmra.mxu0 %v3024
        %v3140 = vpop.f32.mrf.mxu0
        %v3141 = vadd.f32 0.0, %v3140
        %v3142 = vpop.f32.mrf.mxu0
        %v3143 = vpop.f32.mrf.mxu0
        %v3144 = vadd.f32 0.0, %v3143
        %v3145 = vpop.f32.mrf.mxu0
        %3146 = vmatprep.mubr.bf16.mxu0 0
        %3147 = vmatmul.mubr.bf16.gmra.mxu0 %v3025
        %v3148 = vpop.f32.mrf.mxu0
        %v3149 = vadd.f32 0.0, %v3148
        %v3150 = vpop.f32.mrf.mxu0
        %v3151 = vpop.f32.mrf.mxu0
        %v3152 = vadd.f32 0.0, %v3151
        %v3153 = vpop.f32.mrf.mxu0
        %3154 = vdwg.mxu0
        %v3155 = vadd.f32 %v2704, %v3125
        %v3156 = vadd.f32 %v2705, %v3128
        %v3157 = vadd.f32 %v2706, %v3133
        %v3158 = vadd.f32 %v2707, %v3136
        %v3159 = vadd.f32 %v2708, %v3141
        %v3160 = vadd.f32 %v2709, %v3144
        %v3161 = vadd.f32 %v2710, %v3149
        %v3162 = vadd.f32 %v2711, %v3152
        %v3163 = vld [vmem:[%s810] sm:$0x1]
        %v3165 = vlaneseq
        %v3166 = vshrl.u32 %v3165, 7
        %v3167 = vsub.s32 0, %v3166
        %v3168 = vrot.slane %v3163, %v3167
        %v3170 = vadd.f32 %v3155, %v3168
        %v3171 = vadd.f32 %v3156, %v3168
        %v3172 = vadd.f32 %v3157, %v3168
        %v3173 = vadd.f32 %v3158, %v3168
        %v3174 = vadd.f32 %v3159, %v3168
        %v3175 = vadd.f32 %v3160, %v3168
        %v3176 = vadd.f32 %v3161, %v3168
        %v3177 = vadd.f32 %v3162, %v3168
        %3178 = vst.msk [vmem:[#allocation2] sm:$0xff] %vm1038, %v3170
        %3179 = vst.msk [vmem:[#allocation2 + $0x8] sm:$0xff] %vm1038, %v3171
        %3180 = vst.msk [vmem:[#allocation2 + $0x10] sm:$0xff] %vm1038, %v3172
        %3181 = vst.msk [vmem:[#allocation2 + $0x18] sm:$0xff] %vm1038, %v3173
        %3182 = vst.msk [vmem:[#allocation2 + $0x20] sm:$0xff] %vm1038, %v3174
        %3183 = vst.msk [vmem:[#allocation2 + $0x28] sm:$0xff] %vm1038, %v3175
        %3184 = vst.msk [vmem:[#allocation2 + $0x30] sm:$0xff] %vm1038, %v3176
        %3185 = vst.msk [vmem:[#allocation2 + $0x38] sm:$0xff] %vm1038, %v3177
        %p3186 = scmp.eq.s32.totalorder %s35, 1
        // Predicated region
        $region109: #{_lambda_.1} parent=87 // pred_check
          %p3187 = pneg %p3186
        $region110: #{_lambda_.1} parent=87 // pred_check_branch
          %3189 = sbr.rel (%p3187) target = $region112
        $region111: #{_lambda_.1} parent=87 // pred_region
          %v3190 = vld [vmem:[#allocation8] sm:$0xf]
          %v3191 = vld [vmem:[#allocation8 + $0x4] sm:$0xf]
          %v3192 = vld [vmem:[%s16] sm:$0xff]
          %v3193 = vld [vmem:[%s16 + $0x8] sm:$0xff]
          %v3194 = vpack.c.bf16 %v3171, %v3170
          %v3195 = vpack.c.bf16 %v3173, %v3172
          %v3196 = vpack.c.bf16 %v3175, %v3174
          %v3197 = vpack.c.bf16 %v3177, %v3176
          %3199 = vset.pattern.permute.xlu0 0
          %3200 = vperm.xlu0 %3199, %v3192
          %v3201 = vpop.permute.xlu0 %3200
          %3204 = vset.pattern.permute.xlu0 0
          %3205 = vperm.xlu0 %3204, %v3193
          %v3206 = vpop.permute.xlu0 %3205
          %v3210 = vunpack.c.l.b16 %v3190
          %v3211 = vunpack.c.l.b16 %v3191
          %v3212 = vpack.c.b16 %v3211, %v3210
          %v3214 = vsel %vm1038, %v3212, 0
          %v3217 = vsel %vm1038, %v3194, 0
          %v3220 = vsel %vm1038, %v3195, 0
          %v3223 = vsel %vm1038, %v3196, 0
          %v3226 = vsel %vm1038, %v3197, 0
          %3228 = vmatprep.subr.bf16.mxu0 0
          %3229 = vmatpush1.bf16.xpose.msra.mxu0 0
          %3230 = vmatprep.subr.bf16.mxu0 0
          %3231 = vmatpush1.bf16.xpose.msra.mxu0 0
          %3232 = vmatprep.subr.bf16.mxu0 0
          %3233 = vmatpush1.bf16.xpose.msra.mxu0 0
          %3234 = vmatprep.subr.bf16.mxu0 0
          %3235 = vmatpush1.bf16.xpose.msra.mxu0 0
          %3236 = vmatprep.subr.bf16.mxu0 0
          %3237 = vmatpush1.bf16.xpose.msra.mxu0 %v3226
          %3238 = vmatprep.subr.bf16.mxu0 0
          %3239 = vmatpush1.bf16.xpose.msra.mxu0 %v3223
          %3240 = vmatprep.subr.bf16.mxu0 0
          %3241 = vmatpush1.bf16.xpose.msra.mxu0 %v3220
          %3242 = vmatprep.subr.bf16.mxu0 0
          %3243 = vmatpush1.bf16.xpose.msra.mxu0 %v3217
          %3244 = vmatprep.subr.bf16.mxu0 0
          %3245 = vmatpush2.bf16.xpose.msra.mxu0 0
          %3246 = vmatprep.subr.bf16.mxu0 0
          %3247 = vmatpush2.bf16.xpose.msra.mxu0 0
          %3248 = vmatprep.subr.bf16.mxu0 0
          %3249 = vmatpush2.bf16.xpose.msra.mxu0 0
          %3250 = vmatprep.subr.bf16.mxu0 0
          %3251 = vmatpush2.bf16.xpose.msra.mxu0 0
          %3252 = vmatprep.subr.bf16.mxu0 0
          %3253 = vmatpush2.bf16.xpose.msra.mxu0 0
          %3254 = vmatprep.subr.bf16.mxu0 0
          %3255 = vmatpush2.bf16.xpose.msra.mxu0 0
          %3256 = vmatprep.subr.bf16.mxu0 0
          %3257 = vmatpush2.bf16.xpose.msra.mxu0 0
          %3258 = vmatprep.subr.bf16.mxu0 0
          %3259 = vmatpush2.bf16.xpose.msra.mxu0 0
          %3260 = vmatprep.mubr.bf16.mxu0 0
          %3261 = vmatmul.mubr.bf16.gmra.mxu0 %v3214
          %v3262 = vpop.f32.mrf.mxu0
          %v3263 = vadd.f32 %v3201, %v3262
          %v3264 = vpop.f32.mrf.mxu0
          %v3265 = vpop.f32.mrf.mxu0
          %v3266 = vadd.f32 %v3206, %v3265
          %v3267 = vpop.f32.mrf.mxu0
          %3268 = vdwg.mxu0
          %3269 = vst.msk [vmem:[%s815] sm:$0xff] %vm1745, %v3263
          %3270 = vst.msk [vmem:[%s815 + $0x8] sm:$0xff] %vm1745, %v3266
        $region112: #{_lambda_.1} parent=87 // pred_fallthru
          _
        %p3271 = scmp.lt.s32.totalorder %s34, 1
        %s3272 = scalar_select %p3271, %s34, 1
        %s3273 = smul.addr %s3272, 2
        %s3274 = smul.addr %s3273, 8
        %s3275 = scalar_lea.vmem %s17, %s3274
        // Predicated region
        $region113: #{_lambda_.1} parent=87 // pred_check
          %p3276 = pneg %p482
        $region114: #{_lambda_.1} parent=87 // pred_check_branch
          %3278 = sbr.rel (%p3276) target = $region116
        $region115: #{_lambda_.1} parent=87 // pred_region
          _
        $region116: #{_lambda_.1} parent=87 // pred_fallthru
          _
      $region88: #{_lambda_.1} parent=5 // pred_fallthru
        _
      %p3279 = scmp.le.s32.totalorder 2, %s25
      // Predicated region
      $region117: #{_lambda_.1} parent=5 // pred_check
        %p3280 = pneg %p3279
      $region118: #{_lambda_.1} parent=5 // pred_check_branch
        %3282 = sbr.rel (%p3280) target = $region120
      $region119: #{_lambda_.1} parent=5 // pred_region
        %s3283 = ssub.s32 %s25, 2
        // Predicated region
        $region121: #{_lambda_.1} parent=119 // pred_check
          %p3284 = pneg %p488
        $region122: #{_lambda_.1} parent=119 // pred_check_branch
          %3286 = sbr.rel (%p3284) target = $region124
        $region123: #{_lambda_.1} parent=119 // pred_region
          %p3287 = scmp.lt.s32.totalorder %s36, 1
          %s3288 = scalar_select %p3287, %s36, 1
          %s3289 = smul.addr %s3288, 2
          %s3290 = smul.addr %s3289, 8
          %s3291 = scalar_lea.vmem %s17, %s3290
        $region124: #{_lambda_.1} parent=119 // pred_fallthru
          _
      $region120: #{_lambda_.1} parent=5 // pred_fallthru
        _
    $region6: #{_lambda_.1} parent=1 // loop_footer
      %s29 = sadd.s32 1, %s25
    $region7: #{_lambda_.1} parent=1 // loop_footer_branch
      %24 = sbr.rel target = $region3
    $region8: #{_lambda_.1} parent=1 // loop_exit
      _
    %3292 = vsyncpa [#allocation4], 1
    %s3293 = scalar_lea.sflag [#allocation4], 1
    %3294 = vsyncpa %s3293, 1
    %3295 = vsyncpa [#allocation6], 1

</llo_original>
